<compile_context>
chip_gen: v7x
topology: tpu7x:2x2x1
jax: 0.10.0
libtpu: 0.0.40
codegen_flags: <defaults>
</compile_context>

<pallas_src>
import jax
import jax.numpy as jnp
from jax import lax
from jax.experimental import pallas as pl
from jax.experimental.pallas import tpu as pltpu


def _poly_upsample_conv_kernel(xm_ref, xh_ref, w_ref, b_ref, o_ref, xs_ref):
    """One (image, row-block, Co-tile) step of the fused 2x-upsample + 3x3 conv.

    xm_ref : (1, TR, W+2, C)      padded input rows [r*TR, r*TR+TR)
    xh_ref : (1, 2,  W+2, C)      2-row halo: padded rows [r*TR+TR, r*TR+TR+2)
    w_ref  : (4, 4C, TCO)         per-phase K-concat filter banks (phase = a*2+b)
    b_ref  : (1, TCO)             conv bias (f32) for this Co tile
    o_ref  : (1, 1, TR*W, 4*TCO)  output block, phases packed along lanes
    xs_ref : (TR+2, W+2, C)       VMEM scratch: main rows + halo merged
    """
    TR = xm_ref.shape[1]
    W = xm_ref.shape[2] - 2
    C = xm_ref.shape[3]
    TCO = b_ref.shape[1]

    # Merge the TR main rows and the 2-row bottom halo into one window so every
    # tap below is a single full-height slice (no split main/halo matmuls).
    xs_ref[0:TR] = xm_ref[0]
    xs_ref[TR:TR + 2] = xh_ref[0]

    bias = b_ref[...].astype(jnp.float32)                      # (1, TCO)

    for pa in range(2):            # output row phase
        for pb in range(2):        # output col phase
            p = pa * 2 + pb
            # K-concat: stack the four 2x2-tap windows along the contraction dim.
            slab = jnp.concatenate(
                [xs_ref[pa + u:pa + u + TR, pb + v:pb + v + W, :]
                 for u in range(2) for v in range(2)], axis=-1)   # (TR, W, 4C)
            slab = slab.reshape(TR * W, 4 * C)
            y = jnp.dot(slab, w_ref[p], preferred_element_type=jnp.float32)
            # Bias fused with the cast/store; one write per phase, no acc RMW.
            o_ref[0, 0, :, p * TCO:(p + 1) * TCO] = (y + bias).astype(o_ref.dtype)


def _pick_row_block(H, W, max_rows=512):
    """Largest even row block TR | H with TR*W <= max_rows (sublane-friendly)."""
    if H % 2 != 0:
        # TODO(synk): odd spatial heights (needs a 1-row halo spec) not supported.
        raise NotImplementedError("odd spatial height not supported by this kernel")
    cands = [tr for tr in range(2, H + 1, 2)
             if H % tr == 0 and ((tr * W) % 8 == 0 or tr == H)]
    fitting = [tr for tr in cands if tr * W <= max_rows]
    return max(fitting) if fitting else min(cands)


def _upsample_conv_raw(x_nhwc, weight_oihw, bias, compute_dtype, row_block, co_tile):
    """Fused nearest-2x + 3x3 conv. Returns phase-packed (N, NCO, H*W, 4*TCO)."""
    N, H, W, C = x_nhwc.shape
    Co = weight_oihw.shape[0]
    assert weight_oihw.shape[1:] == (C, 3, 3)
    odt = x_nhwc.dtype
    cdt = compute_dtype if compute_dtype is not None else odt

    # Co tiling (bounds VMEM at LDM channel counts; keep co_tile a multiple of 128).
    if Co <= co_tile:
        TCO, NCO = Co, 1
    else:
        assert co_tile % 128 == 0
        TCO = co_tile
        NCO = -(-Co // TCO)
    Co_pad = NCO * TCO

    TR = row_block if row_block is not None else _pick_row_block(H, W)
    assert H % TR == 0 and TR % 2 == 0 and ((TR * W) % 8 == 0 or TR == H)
    NR = H // TR

    # Original-resolution, channels-last, 1-px zero pad; the 4x upsampled tensor is
    # never materialized.
    # TODO(synk): fuse this pad into the kernel with edge masking to save one pass.
    x_pad = jnp.pad(x_nhwc, ((0, 0), (1, 1), (1, 1), (0, 0))).astype(cdt)

    # Polyphase folding of the 3x3 kernel into 4 per-phase (4C, Co) K-concat banks.
    fold = jnp.array([[[1., 0., 0.], [0., 1., 1.]],
                      [[1., 1., 0.], [0., 0., 1.]]], jnp.float32)    # (phase, tap, 3)
    w_hwio = jnp.transpose(weight_oihw, (2, 3, 1, 0)).astype(jnp.float32)  # (3,3,C,Co)
    wp = jnp.einsum('auy,bvx,yxcf->abuvcf', fold, fold, w_hwio)      # (2,2,2,2,C,Co)
    wp = wp.reshape(4, 4 * C, Co)
    b2 = bias.reshape(1, Co).astype(jnp.float32)
    if Co_pad != Co:
        wp = jnp.pad(wp, ((0, 0), (0, 0), (0, Co_pad - Co)))
        b2 = jnp.pad(b2, ((0, 0), (0, Co_pad - Co)))
    wp = wp.astype(cdt)

    # VMEM limit from actual (double-buffered) block bytes, not a fixed constant.
    dsi = jnp.dtype(cdt).itemsize
    dso = jnp.dtype(odt).itemsize
    blk_bytes = (2 * (TR + 2) * (W + 2) * C * dsi        # x main + halo blocks (x2 buf)
                 + 2 * 4 * 4 * C * TCO * dsi             # weight banks (x2 buf)
                 + 2 * TCO * 4                           # bias (x2 buf)
                 + 2 * TR * W * 4 * TCO * dso            # output block (x2 buf)
                 + (TR + 2) * (W + 2) * C * dsi)         # merged-window scratch
    vmem_limit = min(max(int(blk_bytes * 1.5) + (4 << 20), 32 << 20), 128 << 20)
    # NOTE: on v7x, weight/bias BlockSpecs could additionally be single-buffered
    # (pipeline_mode=pl.Buffered(1)) when NCO == 1 to shave VMEM further.

    out = pl.pallas_call(
        _poly_upsample_conv_kernel,
        out_shape=jax.ShapeDtypeStruct((N, NCO, H * W, 4 * TCO), odt),
        grid=(N, NR, NCO),
        in_specs=[
            # TR main padded rows of this row block.  Index map is independent of the
            # innermost Co axis so the tile stays resident across Co tiles.
            pl.BlockSpec((1, TR, W + 2, C), lambda n, r, co: (n, r, 0, 0)),
            # 2-row halo just below the block (second view of the same padded array).
            pl.BlockSpec((1, 2, W + 2, C),
                         lambda n, r, co: (n, (r + 1) * (TR // 2), 0, 0)),
            # Per-phase K-concat weights + bias for this Co tile.
            pl.BlockSpec((4, 4 * C, TCO), lambda n, r, co: (0, 0, co)),
            pl.BlockSpec((1, TCO), lambda n, r, co: (0, co)),
        ],
        out_specs=pl.BlockSpec((1, 1, TR * W, 4 * TCO),
                               lambda n, r, co: (n, co, r, 0)),
        scratch_shapes=[pltpu.VMEM((TR + 2, W + 2, C), cdt)],
        compiler_params=pltpu.CompilerParams(
            dimension_semantics=("parallel", "parallel", "parallel"),
            vmem_limit_bytes=vmem_limit),
    )(x_pad, x_pad, wp, b2)
    return out, NCO, TCO, Co


def upsample_forward_nhwc(x_nhwc, weight_oihw, bias, compute_dtype=None,
                          row_block=None, co_tile=256):
    """NHWC in/out entry point (skips the NCHW<->NHWC transposes of the module API)."""
    N, H, W, _ = x_nhwc.shape
    out, NCO, TCO, Co = _upsample_conv_raw(
        x_nhwc, weight_oihw, bias, compute_dtype, row_block, co_tile)
    out = out.reshape(N, NCO, H, W, 2, 2, TCO)
    out = jnp.transpose(out, (0, 2, 4, 3, 5, 1, 6))      # (N, H, a, W, b, NCO, TCO)
    return out.reshape(N, 2 * H, 2 * W, NCO * TCO)[..., :Co]


def upsample_forward(x_nchw, weight_oihw=None, bias=None, use_conv=True,
                     compute_dtype=None, row_block=None, co_tile=256):
    """Forward of Upsample(channels, use_conv, dims=2, padding=1); NCHW in/out.

    compute_dtype=jnp.bfloat16 is the recommended path on v6e/v7x (f32 accumulation).
    """
    N, C, H, W = x_nchw.shape
    if not use_conv:
        return jnp.repeat(jnp.repeat(x_nchw, 2, axis=2), 2, axis=3)
    # TODO(synk): dims=3 branch (depth kept, H/W doubled) not implemented.

    out, NCO, TCO, Co = _upsample_conv_raw(
        jnp.transpose(x_nchw, (0, 2, 3, 1)), weight_oihw, bias,
        compute_dtype, row_block, co_tile)
    # Single un-interleave to NCHW: output pixel (2i+a, 2j+b), channel t*TCO+c comes
    # from out[n, t, i*W+j, (a*2+b)*TCO + c].
    out = out.reshape(N, NCO, H, W, 2, 2, TCO)
    out = jnp.transpose(out, (0, 1, 6, 2, 4, 3, 5))      # (N, NCO, TCO, H, a, W, b)
    return out.reshape(N, NCO * TCO, 2 * H, 2 * W)[:, :Co]


def _reference(x_nchw, weight_oihw, bias):
    x_up = jnp.repeat(jnp.repeat(x_nchw, 2, axis=2), 2, axis=3)
    y = lax.conv_general_dilated(
        x_up.astype(jnp.float32), weight_oihw.astype(jnp.float32),
        window_strides=(1, 1), padding=((1, 1), (1, 1)),
        dimension_numbers=("NCHW", "OIHW", "NCHW"))
    return y + bias.reshape(1, -1, 1, 1)


if __name__ == "__main__":
    key = jax.random.PRNGKey(0)
    k_x, k_w, k_b, k_x2, k_w2, k_b2 = jax.random.split(key, 6)

    # Module config: channels=4, use_conv=True, dims=2, out_channels=4, padding=1.
    N, C, H, W, Co = 2, 4, 16, 16, 4
    x = jax.random.normal(k_x, (N, C, H, W), dtype=jnp.float32)
    weight = 0.05 * jax.random.normal(k_w, (Co, C, 3, 3), dtype=jnp.float32)
    bias = 0.01 * jax.random.normal(k_b, (Co,), dtype=jnp.float32)
    ref = _reference(x, weight, bias)

    # f32 path, NCHW module contract.
    out = jax.block_until_ready(upsample_forward(x, weight, bias, use_conv=True))
    assert out.shape == (N, Co, 2 * H, 2 * W), out.shape
    assert jnp.allclose(out, ref, atol=1e-4, rtol=1e-4), \
        float(jnp.max(jnp.abs(out - ref)))

    # NHWC entry point (no wrapper transposes).
    out_nhwc = jax.block_until_ready(
        upsample_forward_nhwc(jnp.transpose(x, (0, 2, 3, 1)), weight, bias))
    assert jnp.allclose(jnp.transpose(out_nhwc, (0, 3, 1, 2)), ref,
                        atol=1e-4, rtol=1e-4)

    # bf16 compute path (half HBM/VMEM bytes, ~2x MXU rate on v6e/v7x); f32 accum.
    out_bf16 = jax.block_until_ready(
        upsample_forward(x, weight, bias, compute_dtype=jnp.bfloat16))
    assert jnp.allclose(out_bf16, ref, atol=3e-2, rtol=3e-2), \
        float(jnp.max(jnp.abs(out_bf16 - ref)))

    # Co-tiled path (NCO > 1, padded Co) at a still-small shape.
    C2, Co2, H2, W2 = 8, 160, 8, 8
    x2 = jax.random.normal(k_x2, (1, C2, H2, W2), dtype=jnp.float32)
    w2 = 0.05 * jax.random.normal(k_w2, (Co2, C2, 3, 3), dtype=jnp.float32)
    b2 = 0.01 * jax.random.normal(k_b2, (Co2,), dtype=jnp.float32)
    ref2 = _reference(x2, w2, b2)
    out2 = jax.block_until_ready(upsample_forward(x2, w2, b2, co_tile=128))
    assert out2.shape == (1, Co2, 2 * H2, 2 * W2), out2.shape
    assert jnp.allclose(out2, ref2, atol=1e-4, rtol=1e-4), \
        float(jnp.max(jnp.abs(out2 - ref2)))

    print("KERNEL_OK")
</pallas_src>

<mosaic_0001>
module attributes {stable_mosaic.version = 11 : i64} {
  func.func @_poly_upsample_conv_kernel(%arg0: i32, %arg1: i32, %arg2: i32, %arg3: memref<1x16x18x4xf32, #tpu.memory_space<vmem>>, %arg4: memref<1x2x18x4xf32, #tpu.memory_space<vmem>>, %arg5: memref<4x16x4xf32, #tpu.memory_space<vmem>>, %arg6: memref<1x4xf32, #tpu.memory_space<vmem>>, %arg7: memref<1x1x256x16xf32, #tpu.memory_space<vmem>>, %arg8: memref<18x18x4xf32, #tpu.memory_space<vmem>>) attributes {dimension_semantics = [#tpu.dimension_semantics<parallel>, #tpu.dimension_semantics<parallel>, #tpu.dimension_semantics<parallel>], iteration_bounds = array<i64: 2, 1, 1>, scalar_prefetch = 0 : i64, scratch_operands = 1 : i64, tpu.core_type = #tpu.core_type<tc>, window_params = [{transform_indices = @transform_0, window_bounds = array<i64: 1, 16, 18, 4>}, {transform_indices = @transform_1, window_bounds = array<i64: 1, 2, 18, 4>}, {transform_indices = @transform_2, window_bounds = array<i64: 4, 16, 4>}, {transform_indices = @transform_3, window_bounds = array<i64: 1, 4>}, {transform_indices = @transform_4, window_bounds = array<i64: 1, 1, 256, 16>}]} {
    %c0 = arith.constant 0 : index
    %c0_0 = arith.constant 0 : index
    %c0_1 = arith.constant 0 : index
    %c0_2 = arith.constant 0 : index
    %0 = vector.load %arg3[%c0, %c0_0, %c0_1, %c0_2] : memref<1x16x18x4xf32, #tpu.memory_space<vmem>>, vector<1x16x18x4xf32>
    %1 = vector.shape_cast %0 : vector<1x16x18x4xf32> to vector<16x18x4xf32>
    %c0_3 = arith.constant 0 : index
    %c0_4 = arith.constant 0 : index
    %c0_5 = arith.constant 0 : index
    %2 = vector.load %arg8[%c0_3, %c0_4, %c0_5] : memref<18x18x4xf32, #tpu.memory_space<vmem>>, vector<16x18x4xf32>
    tpu.vector_store %arg8[%c0_3, %c0_4, %c0_5], %1 {strides = array<i32>} : memref<18x18x4xf32, #tpu.memory_space<vmem>>, vector<16x18x4xf32>,
    %c0_6 = arith.constant 0 : index
    %c0_7 = arith.constant 0 : index
    %c0_8 = arith.constant 0 : index
    %c0_9 = arith.constant 0 : index
    %3 = vector.load %arg4[%c0_6, %c0_7, %c0_8, %c0_9] : memref<1x2x18x4xf32, #tpu.memory_space<vmem>>, vector<1x2x18x4xf32>
    %4 = vector.shape_cast %3 : vector<1x2x18x4xf32> to vector<2x18x4xf32>
    %c16 = arith.constant 16 : index
    %c0_10 = arith.constant 0 : index
    %c0_11 = arith.constant 0 : index
    %5 = vector.load %arg8[%c16, %c0_10, %c0_11] : memref<18x18x4xf32, #tpu.memory_space<vmem>>, vector<2x18x4xf32>
    tpu.vector_store %arg8[%c16, %c0_10, %c0_11], %4 {strides = array<i32>} : memref<18x18x4xf32, #tpu.memory_space<vmem>>, vector<2x18x4xf32>,
    %c0_12 = arith.constant 0 : index
    %c0_13 = arith.constant 0 : index
    %6 = vector.load %arg6[%c0_12, %c0_13] : memref<1x4xf32, #tpu.memory_space<vmem>>, vector<1x4xf32>
    %c0_14 = arith.constant 0 : index
    %c0_15 = arith.constant 0 : index
    %c0_16 = arith.constant 0 : index
    %7 = vector.load %arg8[%c0_14, %c0_15, %c0_16] : memref<18x18x4xf32, #tpu.memory_space<vmem>>, vector<16x16x4xf32>
    %c0_17 = arith.constant 0 : index
    %c1 = arith.constant 1 : index
    %c0_18 = arith.constant 0 : index
    %8 = vector.load %arg8[%c0_17, %c1, %c0_18] : memref<18x18x4xf32, #tpu.memory_space<vmem>>, vector<16x16x4xf32>
    %c1_19 = arith.constant 1 : index
    %c0_20 = arith.constant 0 : index
    %c0_21 = arith.constant 0 : index
    %9 = vector.load %arg8[%c1_19, %c0_20, %c0_21] : memref<18x18x4xf32, #tpu.memory_space<vmem>>, vector<16x16x4xf32>
    %c1_22 = arith.constant 1 : index
    %c1_23 = arith.constant 1 : index
    %c0_24 = arith.constant 0 : index
    %10 = vector.load %arg8[%c1_22, %c1_23, %c0_24] : memref<18x18x4xf32, #tpu.memory_space<vmem>>, vector<16x16x4xf32>
    %11 = tpu.concatenate %7, %8, %9, %10 in 2 : vector<16x16x4xf32>, vector<16x16x4xf32>, vector<16x16x4xf32>, vector<16x16x4xf32> -> vector<16x16x16xf32>
    %12 = vector.shape_cast %11 : vector<16x16x16xf32> to vector<256x16xf32>
    %c0_25 = arith.constant 0 : index
    %c0_26 = arith.constant 0 : index
    %c0_27 = arith.constant 0 : index
    %13 = vector.load %arg5[%c0_25, %c0_26, %c0_27] : memref<4x16x4xf32, #tpu.memory_space<vmem>>, vector<1x16x4xf32>
    %14 = vector.shape_cast %13 : vector<1x16x4xf32> to vector<16x4xf32>
    %cst = arith.constant dense<0.000000e+00> : vector<256x4xf32>
    %15 = tpu.matmul %12, %14, %cst {dimension_numbers = #tpu.dot_dimension_numbers<[1], [0], [0], [1], [0, 0, 1, 1], [], []>} : vector<256x16xf32>, vector<16x4xf32>, vector<256x4xf32> -> vector<256x4xf32>
    %16 = vector.broadcast %6 : vector<1x4xf32> to vector<256x4xf32>
    %17 = arith.addf %15, %16 : vector<256x4xf32>
    %c0_28 = arith.constant 0 : index
    %c0_29 = arith.constant 0 : index
    %c0_30 = arith.constant 0 : index
    %c0_31 = arith.constant 0 : index
    %18 = vector.load %arg7[%c0_28, %c0_29, %c0_30, %c0_31] : memref<1x1x256x16xf32, #tpu.memory_space<vmem>>, vector<1x1x256x4xf32>
    %19 = vector.shape_cast %18 : vector<1x1x256x4xf32> to vector<256x4xf32>
    %20 = vector.shape_cast %17 : vector<256x4xf32> to vector<1x1x256x4xf32>
    tpu.vector_store %arg7[%c0_28, %c0_29, %c0_30, %c0_31], %20 {strides = array<i32>} : memref<1x1x256x16xf32, #tpu.memory_space<vmem>>, vector<1x1x256x4xf32>,
    %c0_32 = arith.constant 0 : index
    %c1_33 = arith.constant 1 : index
    %c0_34 = arith.constant 0 : index
    %21 = vector.load %arg8[%c0_32, %c1_33, %c0_34] : memref<18x18x4xf32, #tpu.memory_space<vmem>>, vector<16x16x4xf32>
    %c0_35 = arith.constant 0 : index
    %c2 = arith.constant 2 : index
    %c0_36 = arith.constant 0 : index
    %22 = vector.load %arg8[%c0_35, %c2, %c0_36] : memref<18x18x4xf32, #tpu.memory_space<vmem>>, vector<16x16x4xf32>
    %c1_37 = arith.constant 1 : index
    %c1_38 = arith.constant 1 : index
    %c0_39 = arith.constant 0 : index
    %23 = vector.load %arg8[%c1_37, %c1_38, %c0_39] : memref<18x18x4xf32, #tpu.memory_space<vmem>>, vector<16x16x4xf32>
    %c1_40 = arith.constant 1 : index
    %c2_41 = arith.constant 2 : index
    %c0_42 = arith.constant 0 : index
    %24 = vector.load %arg8[%c1_40, %c2_41, %c0_42] : memref<18x18x4xf32, #tpu.memory_space<vmem>>, vector<16x16x4xf32>
    %25 = tpu.concatenate %21, %22, %23, %24 in 2 : vector<16x16x4xf32>, vector<16x16x4xf32>, vector<16x16x4xf32>, vector<16x16x4xf32> -> vector<16x16x16xf32>
    %26 = vector.shape_cast %25 : vector<16x16x16xf32> to vector<256x16xf32>
    %c1_43 = arith.constant 1 : index
    %c0_44 = arith.constant 0 : index
    %c0_45 = arith.constant 0 : index
    %27 = vector.load %arg5[%c1_43, %c0_44, %c0_45] : memref<4x16x4xf32, #tpu.memory_space<vmem>>, vector<1x16x4xf32>
    %28 = vector.shape_cast %27 : vector<1x16x4xf32> to vector<16x4xf32>
    %cst_46 = arith.constant dense<0.000000e+00> : vector<256x4xf32>
    %29 = tpu.matmul %26, %28, %cst_46 {dimension_numbers = #tpu.dot_dimension_numbers<[1], [0], [0], [1], [0, 0, 1, 1], [], []>} : vector<256x16xf32>, vector<16x4xf32>, vector<256x4xf32> -> vector<256x4xf32>
    %30 = vector.broadcast %6 : vector<1x4xf32> to vector<256x4xf32>
    %31 = arith.addf %29, %30 : vector<256x4xf32>
    %c0_47 = arith.constant 0 : index
    %c0_48 = arith.constant 0 : index
    %c0_49 = arith.constant 0 : index
    %c4 = arith.constant 4 : index
    %32 = vector.load %arg7[%c0_47, %c0_48, %c0_49, %c4] : memref<1x1x256x16xf32, #tpu.memory_space<vmem>>, vector<1x1x256x4xf32>
    %33 = vector.shape_cast %32 : vector<1x1x256x4xf32> to vector<256x4xf32>
    %34 = vector.shape_cast %31 : vector<256x4xf32> to vector<1x1x256x4xf32>
    tpu.vector_store %arg7[%c0_47, %c0_48, %c0_49, %c4], %34 {strides = array<i32>} : memref<1x1x256x16xf32, #tpu.memory_space<vmem>>, vector<1x1x256x4xf32>,
    %c1_50 = arith.constant 1 : index
    %c0_51 = arith.constant 0 : index
    %c0_52 = arith.constant 0 : index
    %35 = vector.load %arg8[%c1_50, %c0_51, %c0_52] : memref<18x18x4xf32, #tpu.memory_space<vmem>>, vector<16x16x4xf32>
    %c1_53 = arith.constant 1 : index
    %c1_54 = arith.constant 1 : index
    %c0_55 = arith.constant 0 : index
    %36 = vector.load %arg8[%c1_53, %c1_54, %c0_55] : memref<18x18x4xf32, #tpu.memory_space<vmem>>, vector<16x16x4xf32>
    %c2_56 = arith.constant 2 : index
    %c0_57 = arith.constant 0 : index
    %c0_58 = arith.constant 0 : index
    %37 = vector.load %arg8[%c2_56, %c0_57, %c0_58] : memref<18x18x4xf32, #tpu.memory_space<vmem>>, vector<16x16x4xf32>
    %c2_59 = arith.constant 2 : index
    %c1_60 = arith.constant 1 : index
    %c0_61 = arith.constant 0 : index
    %38 = vector.load %arg8[%c2_59, %c1_60, %c0_61] : memref<18x18x4xf32, #tpu.memory_space<vmem>>, vector<16x16x4xf32>
    %39 = tpu.concatenate %35, %36, %37, %38 in 2 : vector<16x16x4xf32>, vector<16x16x4xf32>, vector<16x16x4xf32>, vector<16x16x4xf32> -> vector<16x16x16xf32>
    %40 = vector.shape_cast %39 : vector<16x16x16xf32> to vector<256x16xf32>
    %c2_62 = arith.constant 2 : index
    %c0_63 = arith.constant 0 : index
    %c0_64 = arith.constant 0 : index
    %41 = vector.load %arg5[%c2_62, %c0_63, %c0_64] : memref<4x16x4xf32, #tpu.memory_space<vmem>>, vector<1x16x4xf32>
    %42 = vector.shape_cast %41 : vector<1x16x4xf32> to vector<16x4xf32>
    %cst_65 = arith.constant dense<0.000000e+00> : vector<256x4xf32>
    %43 = tpu.matmul %40, %42, %cst_65 {dimension_numbers = #tpu.dot_dimension_numbers<[1], [0], [0], [1], [0, 0, 1, 1], [], []>} : vector<256x16xf32>, vector<16x4xf32>, vector<256x4xf32> -> vector<256x4xf32>
    %44 = vector.broadcast %6 : vector<1x4xf32> to vector<256x4xf32>
    %45 = arith.addf %43, %44 : vector<256x4xf32>
    %c0_66 = arith.constant 0 : index
    %c0_67 = arith.constant 0 : index
    %c0_68 = arith.constant 0 : index
    %c8 = arith.constant 8 : index
    %46 = vector.load %arg7[%c0_66, %c0_67, %c0_68, %c8] : memref<1x1x256x16xf32, #tpu.memory_space<vmem>>, vector<1x1x256x4xf32>
    %47 = vector.shape_cast %46 : vector<1x1x256x4xf32> to vector<256x4xf32>
    %48 = vector.shape_cast %45 : vector<256x4xf32> to vector<1x1x256x4xf32>
    tpu.vector_store %arg7[%c0_66, %c0_67, %c0_68, %c8], %48 {strides = array<i32>} : memref<1x1x256x16xf32, #tpu.memory_space<vmem>>, vector<1x1x256x4xf32>,
    %c1_69 = arith.constant 1 : index
    %c1_70 = arith.constant 1 : index
    %c0_71 = arith.constant 0 : index
    %49 = vector.load %arg8[%c1_69, %c1_70, %c0_71] : memref<18x18x4xf32, #tpu.memory_space<vmem>>, vector<16x16x4xf32>
    %c1_72 = arith.constant 1 : index
    %c2_73 = arith.constant 2 : index
    %c0_74 = arith.constant 0 : index
    %50 = vector.load %arg8[%c1_72, %c2_73, %c0_74] : memref<18x18x4xf32, #tpu.memory_space<vmem>>, vector<16x16x4xf32>
    %c2_75 = arith.constant 2 : index
    %c1_76 = arith.constant 1 : index
    %c0_77 = arith.constant 0 : index
    %51 = vector.load %arg8[%c2_75, %c1_76, %c0_77] : memref<18x18x4xf32, #tpu.memory_space<vmem>>, vector<16x16x4xf32>
    %c2_78 = arith.constant 2 : index
    %c2_79 = arith.constant 2 : index
    %c0_80 = arith.constant 0 : index
    %52 = vector.load %arg8[%c2_78, %c2_79, %c0_80] : memref<18x18x4xf32, #tpu.memory_space<vmem>>, vector<16x16x4xf32>
    %53 = tpu.concatenate %49, %50, %51, %52 in 2 : vector<16x16x4xf32>, vector<16x16x4xf32>, vector<16x16x4xf32>, vector<16x16x4xf32> -> vector<16x16x16xf32>
    %54 = vector.shape_cast %53 : vector<16x16x16xf32> to vector<256x16xf32>
    %c3 = arith.constant 3 : index
    %c0_81 = arith.constant 0 : index
    %c0_82 = arith.constant 0 : index
    %55 = vector.load %arg5[%c3, %c0_81, %c0_82] : memref<4x16x4xf32, #tpu.memory_space<vmem>>, vector<1x16x4xf32>
    %56 = vector.shape_cast %55 : vector<1x16x4xf32> to vector<16x4xf32>
    %cst_83 = arith.constant dense<0.000000e+00> : vector<256x4xf32>
    %57 = tpu.matmul %54, %56, %cst_83 {dimension_numbers = #tpu.dot_dimension_numbers<[1], [0], [0], [1], [0, 0, 1, 1], [], []>} : vector<256x16xf32>, vector<16x4xf32>, vector<256x4xf32> -> vector<256x4xf32>
    %58 = vector.broadcast %6 : vector<1x4xf32> to vector<256x4xf32>
    %59 = arith.addf %57, %58 : vector<256x4xf32>
    %c0_84 = arith.constant 0 : index
    %c0_85 = arith.constant 0 : index
    %c0_86 = arith.constant 0 : index
    %c12 = arith.constant 12 : index
    %60 = vector.load %arg7[%c0_84, %c0_85, %c0_86, %c12] : memref<1x1x256x16xf32, #tpu.memory_space<vmem>>, vector<1x1x256x4xf32>
    %61 = vector.shape_cast %60 : vector<1x1x256x4xf32> to vector<256x4xf32>
    %62 = vector.shape_cast %59 : vector<256x4xf32> to vector<1x1x256x4xf32>
    tpu.vector_store %arg7[%c0_84, %c0_85, %c0_86, %c12], %62 {strides = array<i32>} : memref<1x1x256x16xf32, #tpu.memory_space<vmem>>, vector<1x1x256x4xf32>,
    return
  }
  func.func @transform_0(%arg0: i32, %arg1: i32, %arg2: i32) -> (i32, i32, i32, i32) {
    %c0_i32 = arith.constant 0 : i32
    %c0_i32_0 = arith.constant 0 : i32
    %c0_i32_1 = arith.constant 0 : i32
    return %arg0, %arg1, %c0_i32, %c0_i32_0 : i32, i32, i32, i32
  }
  func.func @transform_1(%arg0: i32, %arg1: i32, %arg2: i32) -> (i32, i32, i32, i32) {
    %c1_i32 = arith.constant 1 : i32
    %0 = arith.addi %arg1, %c1_i32 : i32
    %c8_i32 = arith.constant 8 : i32
    %1 = arith.muli %0, %c8_i32 : i32
    %c0_i32 = arith.constant 0 : i32
    %c0_i32_0 = arith.constant 0 : i32
    %c0_i32_1 = arith.constant 0 : i32
    return %arg0, %1, %c0_i32, %c0_i32_0 : i32, i32, i32, i32
  }
  func.func @transform_2(%arg0: i32, %arg1: i32, %arg2: i32) -> (i32, i32, i32) {
    %c0_i32 = arith.constant 0 : i32
    %c0_i32_0 = arith.constant 0 : i32
    %c0_i32_1 = arith.constant 0 : i32
    return %c0_i32, %c0_i32_0, %arg2 : i32, i32, i32
  }
  func.func @transform_3(%arg0: i32, %arg1: i32, %arg2: i32) -> (i32, i32) {
    %c0_i32 = arith.constant 0 : i32
    %c0_i32_0 = arith.constant 0 : i32
    return %c0_i32, %arg2 : i32, i32
  }
  func.func @transform_4(%arg0: i32, %arg1: i32, %arg2: i32) -> (i32, i32, i32, i32) {
    %c0_i32 = arith.constant 0 : i32
    %c0_i32_0 = arith.constant 0 : i32
    return %arg0, %arg2, %arg1, %c0_i32 : i32, i32, i32, i32
  }
}

</mosaic_0001>

<llo_original>
// kernel: tpu_custom_call.1
$region0: #{tpu_custom_call.1}
  #allocation0 [shape = 'u32[]', space=smem, size = 0x4, offset = 0x4, fixed_abs, tag = 'smem constant byte address 0x4 - core index']
  #allocation1 [shape = 'u32[144,128]{1,0:T(1,128)}', space=vmem, size = 0x12000, scoped, tag = 'internal scratch']
  #allocation2 [shape = 'f32[18,18,4]{2,1,0:T(8,128)}', space=vmem, size = 0x36000, scoped, tag = 'scratch operand']
  %s0 = inlined_call_operand.vmem [shape: f32[2,18,18,4], index: 0, kind: input, shape index: {}]
  %s1 = inlined_call_operand.vmem [shape: f32[2,18,18,4], index: 1, kind: input, shape index: {}]
  %s2 = inlined_call_operand.vmem [shape: f32[4,16,4], index: 2, kind: input, shape index: {}]
  %s3 = inlined_call_operand.vmem [shape: f32[1,4], index: 3, kind: input, shape index: {}]
  %s4 = inlined_call_operand.vmem [shape: f32[2,1,256,16], index: 4, kind: output, shape index: {}]
  %s5 = sld [smem:[#allocation0]]
  $region49: #{tpu_custom_call.1} parent=0
    _
  %s7 = ssub.s32 1, %s5
  %s8 = scalar_select 0, %s7, %s5
  loop: start=0, step=1, limit=4
  $region2: #{tpu_custom_call.1} parent=0 // loop_pre_header
    _
  $region3: #{tpu_custom_call.1} parent=0 // loop_header
    %s10 = sphi 0, %s14
    %p11 = scmp.ge.s32.totalorder %s10, 4
    %s17 = sphi 0, %s36
    %s18 = sphi 0, %s32
    %s19 = sphi 0, %s28
    %s20 = sphi 0, %s17
    %s21 = sphi 0, %s18
    %s22 = sphi 0, %s19
    %s23 = sphi 0, %s20
    %s24 = sphi 0, %s21
    %s25 = sphi 0, %s22
    %s41 = sphi 0, %s43
    %s44 = sphi 0, %s41
    %s45 = sphi 0, %s44
    %s61 = sphi 0, %s45
    %s73 = sphi 0, %s75
    %s76 = sphi 0, %s73
    %s77 = sphi 0, %s76
    %s93 = sphi 0, %s77
    %s99 = sphi 0, %s101
    %s102 = sphi 0, %s99
    %s103 = sphi 0, %s102
    %s119 = sphi 0, %s103
    %s125 = sphi 0, %s127
    %s128 = sphi 0, %s125
    %s129 = sphi 0, %s128
    %s145 = sphi 0, %s129
    %s155 = sphi 0, %s157
    %s158 = sphi 0, %s155
    %s159 = sphi 0, %s158
    %s175 = sphi 0, %s159
  $region4: #{tpu_custom_call.1} parent=0 // loop_header_branch
    %13 = sbr.rel (%p11) target = $region8
  $region5: #{tpu_custom_call.1} parent=0 // loop_body
    %s15 = ssub.s32 %s10, 1
    %s16 = ssub.s32 %s10, 2
    %s26 = sadd.s32 1, %s19
    %p27 = scmp.ge.s32.totalorder %s26, 1
    %s28 = scalar_select %p27, 0, %s26
    %s29 = sadd.s32 1, %s18
    %s30 = scalar_select %p27, %s29, %s18
    %p31 = scmp.ge.s32.totalorder %s30, 1
    %s32 = scalar_select %p31, 0, %s30
    %s33 = sadd.s32 1, %s17
    %s34 = scalar_select %p31, %s33, %s17
    %p35 = scmp.ge.s32.totalorder %s34, 2
    %s36 = scalar_select %p35, 0, %s34
    %s37 = ssub.s32 %s17, %s36
    %s38 = ssub.s32 %s18, %s32
    %s39 = sor.u32 %s37, %s38
    %p40 = scmp.eq.s32.totalorder %s39, 0
    %s42 = sadd.s32 %s41, 1
    %s43 = scalar_select %p40, %s41, %s42
    %p46 = pneg %p40
    %p47 = scmp.eq.s32.totalorder %s10, 1
    %p48 = por %p46, %p47
    %p49 = scmp.ne.s32.totalorder %s41, %s44
    %p50 = scmp.eq.s32.totalorder %s10, 0
    %p51 = por %p49, %p50
    %p52 = scmp.ne.s32.totalorder %s41, %s44
    %p53 = scmp.eq.s32.totalorder %s15, 1
    %p54 = por %p52, %p53
    %p55 = scmp.ne.s32.totalorder %s44, %s45
    %p56 = scmp.eq.s32.totalorder %s15, 0
    %p57 = por %p55, %p56
    %p58 = scmp.ne.s32.totalorder %s44, %s45
    %p59 = scmp.eq.s32.totalorder %s16, 1
    %p60 = por %p58, %p59
    %p62 = scmp.ne.s32.totalorder %s45, %s61
    %p63 = scmp.eq.s32.totalorder %s16, 0
    %p64 = por %p62, %p63
    %s65 = sadd.s32 %s18, 1
    %s66 = smul.u32 %s65, 8
    %s67 = sadd.s32 %s32, 1
    %s68 = smul.u32 %s67, 8
    %s69 = ssub.s32 %s17, %s36
    %s70 = ssub.s32 %s66, %s68
    %s71 = sor.u32 %s69, %s70
    %p72 = scmp.eq.s32.totalorder %s71, 0
    %s74 = sadd.s32 %s73, 1
    %s75 = scalar_select %p72, %s73, %s74
    %p78 = pneg %p72
    %p79 = scmp.eq.s32.totalorder %s10, 1
    %p80 = por %p78, %p79
    %p81 = scmp.ne.s32.totalorder %s73, %s76
    %p82 = scmp.eq.s32.totalorder %s10, 0
    %p83 = por %p81, %p82
    %p84 = scmp.ne.s32.totalorder %s73, %s76
    %p85 = scmp.eq.s32.totalorder %s15, 1
    %p86 = por %p84, %p85
    %p87 = scmp.ne.s32.totalorder %s76, %s77
    %p88 = scmp.eq.s32.totalorder %s15, 0
    %p89 = por %p87, %p88
    %p90 = scmp.ne.s32.totalorder %s76, %s77
    %p91 = scmp.eq.s32.totalorder %s16, 1
    %p92 = por %p90, %p91
    %p94 = scmp.ne.s32.totalorder %s77, %s93
    %p95 = scmp.eq.s32.totalorder %s16, 0
    %p96 = por %p94, %p95
    %s97 = ssub.s32 %s19, %s28
    %p98 = scmp.eq.s32.totalorder %s97, 0
    %s100 = sadd.s32 %s99, 1
    %s101 = scalar_select %p98, %s99, %s100
    %p104 = pneg %p98
    %p105 = scmp.eq.s32.totalorder %s10, 1
    %p106 = por %p104, %p105
    %p107 = scmp.ne.s32.totalorder %s99, %s102
    %p108 = scmp.eq.s32.totalorder %s10, 0
    %p109 = por %p107, %p108
    %p110 = scmp.ne.s32.totalorder %s99, %s102
    %p111 = scmp.eq.s32.totalorder %s15, 1
    %p112 = por %p110, %p111
    %p113 = scmp.ne.s32.totalorder %s102, %s103
    %p114 = scmp.eq.s32.totalorder %s15, 0
    %p115 = por %p113, %p114
    %p116 = scmp.ne.s32.totalorder %s102, %s103
    %p117 = scmp.eq.s32.totalorder %s16, 1
    %p118 = por %p116, %p117
    %p120 = scmp.ne.s32.totalorder %s103, %s119
    %p121 = scmp.eq.s32.totalorder %s16, 0
    %p122 = por %p120, %p121
    %s123 = ssub.s32 %s19, %s28
    %p124 = scmp.eq.s32.totalorder %s123, 0
    %s126 = sadd.s32 %s125, 1
    %s127 = scalar_select %p124, %s125, %s126
    %p130 = pneg %p124
    %p131 = scmp.eq.s32.totalorder %s10, 1
    %p132 = por %p130, %p131
    %p133 = scmp.ne.s32.totalorder %s125, %s128
    %p134 = scmp.eq.s32.totalorder %s10, 0
    %p135 = por %p133, %p134
    %p136 = scmp.ne.s32.totalorder %s125, %s128
    %p137 = scmp.eq.s32.totalorder %s15, 1
    %p138 = por %p136, %p137
    %p139 = scmp.ne.s32.totalorder %s128, %s129
    %p140 = scmp.eq.s32.totalorder %s15, 0
    %p141 = por %p139, %p140
    %p142 = scmp.ne.s32.totalorder %s128, %s129
    %p143 = scmp.eq.s32.totalorder %s16, 1
    %p144 = por %p142, %p143
    %p146 = scmp.ne.s32.totalorder %s129, %s145
    %p147 = scmp.eq.s32.totalorder %s16, 0
    %p148 = por %p146, %p147
    %s149 = ssub.s32 %s17, %s36
    %s150 = ssub.s32 %s19, %s28
    %s151 = sor.u32 %s149, %s150
    %s152 = ssub.s32 %s18, %s32
    %s153 = sor.u32 %s151, %s152
    %p154 = scmp.eq.s32.totalorder %s153, 0
    %s156 = sadd.s32 %s155, 1
    %s157 = scalar_select %p154, %s155, %s156
    %p160 = pneg %p154
    %p161 = scmp.eq.s32.totalorder %s10, 1
    %p162 = por %p160, %p161
    %p163 = scmp.ne.s32.totalorder %s155, %s158
    %p164 = scmp.eq.s32.totalorder %s10, 0
    %p165 = por %p163, %p164
    %p166 = scmp.ne.s32.totalorder %s155, %s158
    %p167 = scmp.eq.s32.totalorder %s15, 1
    %p168 = por %p166, %p167
    %p169 = scmp.ne.s32.totalorder %s158, %s159
    %p170 = scmp.eq.s32.totalorder %s15, 0
    %p171 = por %p169, %p170
    %p172 = scmp.ne.s32.totalorder %s158, %s159
    %p173 = scmp.eq.s32.totalorder %s16, 1
    %p174 = por %p172, %p173
    %p176 = scmp.ne.s32.totalorder %s159, %s175
    %p177 = scmp.eq.s32.totalorder %s16, 0
    %p178 = por %p176, %p177
    %p179 = scmp.le.s32.totalorder 1, %s10
    %p180 = scmp.lt.s32.totalorder %s10, 3
    %p181 = pnand %p179, %p180
    %p182 = pneg %p181
    // Predicated region
    $region9: #{tpu_custom_call.1} parent=5 // pred_check
      _
    $region10: #{tpu_custom_call.1} parent=5 // pred_check_branch
      %184 = sbr.rel (%p181) target = $region12
    $region11: #{tpu_custom_call.1} parent=5 // pred_region
      %s185 = ssub.s32 %s10, 1
      // Predicated region
      $region13: #{tpu_custom_call.1} parent=11 // pred_check
        %p186 = pneg %p115
      $region14: #{tpu_custom_call.1} parent=11 // pred_check_branch
        %188 = sbr.rel (%p186) target = $region16
      $region15: #{tpu_custom_call.1} parent=11 // pred_region
        %p189 = scmp.lt.s32.totalorder %s22, 0
        %s190 = scalar_select %p189, %s22, 0
        %s191 = smul.addr %s190, 8
        %s192 = scalar_lea.vmem %s2, %s191
      $region16: #{tpu_custom_call.1} parent=11 // pred_fallthru
        _
      // Predicated region
      $region17: #{tpu_custom_call.1} parent=11 // pred_check
        %p193 = pneg %p141
      $region18: #{tpu_custom_call.1} parent=11 // pred_check_branch
        %195 = sbr.rel (%p193) target = $region20
      $region19: #{tpu_custom_call.1} parent=11 // pred_region
        %p196 = scmp.lt.s32.totalorder %s22, 0
        %s197 = scalar_select %p196, %s22, 0
        %s198 = scalar_lea.vmem %s3, %s197
      $region20: #{tpu_custom_call.1} parent=11 // pred_fallthru
        _
    $region12: #{tpu_custom_call.1} parent=5 // pred_fallthru
      _
    %p199 = scmp.lt.s32.totalorder %s10, 2
    // Predicated region
    $region21: #{tpu_custom_call.1} parent=5 // pred_check
      %p200 = pneg %p199
    $region22: #{tpu_custom_call.1} parent=5 // pred_check_branch
      %202 = sbr.rel (%p200) target = $region24
    $region23: #{tpu_custom_call.1} parent=5 // pred_region
      // Predicated region
      $region25: #{tpu_custom_call.1} parent=23 // pred_check
        %p203 = pneg %p51
      $region26: #{tpu_custom_call.1} parent=23 // pred_check_branch
        %205 = sbr.rel (%p203) target = $region28
      $region27: #{tpu_custom_call.1} parent=23 // pred_region
        %s206 = smul.u32 16, %s18
        %s207 = ssub.s32 18, %s206
        %p208 = scmp.lt.s32.totalorder %s207, 16
        %s209 = scalar_select %p208, %s207, 16
        %s210 = smul.u32 128, %s209
        %s211 = smul.u32 %s210, 3
        %p212 = scmp.lt.s32.totalorder %s17, 1
        %s213 = scalar_select %p212, %s17, 1
        %p214 = scmp.lt.s32.totalorder %s206, 17
        %s215 = scalar_select %p214, %s206, 17
        %s216 = smul.addr %s215, 3
        %s217 = smul.addr %s213, 54
        %s218 = sadd.s32 %s216, %s217
        %s219 = smul.addr %s218, 8
        %s220 = scalar_lea.vmem %s0, %s219
        %s221 = smul.u32 16, %s18
        %s222 = ssub.s32 18, %s221
        %p223 = scmp.lt.s32.totalorder %s222, 16
        %s224 = scalar_select %p223, %s222, 16
        %s225 = smul.u32 128, %s224
        %s226 = smul.u32 %s225, 3
      $region28: #{tpu_custom_call.1} parent=23 // pred_fallthru
        _
      // Predicated region
      $region29: #{tpu_custom_call.1} parent=23 // pred_check
        %p227 = pneg %p83
      $region30: #{tpu_custom_call.1} parent=23 // pred_check_branch
        %229 = sbr.rel (%p227) target = $region32
      $region31: #{tpu_custom_call.1} parent=23 // pred_region
        %s230 = sadd.s32 %s18, 1
        %s231 = smul.u32 %s230, 8
        %s232 = smul.u32 2, %s231
        %p233 = scmp.lt.s32.totalorder %s17, 1
        %s234 = scalar_select %p233, %s17, 1
        %p235 = scmp.lt.s32.totalorder %s232, 17
        %s236 = scalar_select %p235, %s232, 17
        %s237 = smul.addr %s236, 3
        %s238 = smul.addr %s234, 54
        %s239 = sadd.s32 %s237, %s238
        %s240 = smul.addr %s239, 8
        %s241 = scalar_lea.vmem %s1, %s240
        %s242 = sadd.s32 %s18, 1
        %s243 = smul.u32 %s242, 8
        %s244 = smul.u32 2, %s243
      $region32: #{tpu_custom_call.1} parent=23 // pred_fallthru
        _
    $region24: #{tpu_custom_call.1} parent=5 // pred_fallthru
      _
    %p245 = scmp.le.s32.totalorder 1, %s10
    %p246 = scmp.lt.s32.totalorder %s10, 3
    %p247 = pnand %p245, %p246
    %p248 = pneg %p247
    // Predicated region
    $region33: #{tpu_custom_call.1} parent=5 // pred_check
      _
    $region34: #{tpu_custom_call.1} parent=5 // pred_check_branch
      %250 = sbr.rel (%p247) target = $region36
    $region35: #{tpu_custom_call.1} parent=5 // pred_region
      %s251 = ssub.s32 %s10, 1
      %s252 = smul.u32 16, %s21
      %s253 = ssub.s32 18, %s252
      %p254 = scmp.lt.s32.totalorder %s253, 16
      %s255 = scalar_select %p254, %s253, 16
      %s256 = smul.u32 128, %s255
      %s257 = smul.u32 %s256, 3
      %p258 = scmp.lt.s32.totalorder %s20, 1
      %s259 = scalar_select %p258, %s20, 1
      %p260 = scmp.lt.s32.totalorder %s252, 17
      %s261 = scalar_select %p260, %s252, 17
      %s262 = smul.addr %s261, 3
      %s263 = smul.addr %s259, 54
      %s264 = sadd.s32 %s262, %s263
      %s265 = smul.addr %s264, 8
      %s266 = scalar_lea.vmem %s0, %s265
      %p267 = pneg %p57
      %p268 = pneg %p54
      %s269 = sadd.s32 %s21, 1
      %s270 = smul.u32 %s269, 8
      %s271 = smul.u32 2, %s270
      %p272 = scmp.lt.s32.totalorder %s20, 1
      %s273 = scalar_select %p272, %s20, 1
      %p274 = scmp.lt.s32.totalorder %s271, 17
      %s275 = scalar_select %p274, %s271, 17
      %s276 = smul.addr %s275, 3
      %s277 = smul.addr %s273, 54
      %s278 = sadd.s32 %s276, %s277
      %s279 = smul.addr %s278, 8
      %s280 = scalar_lea.vmem %s1, %s279
      %p281 = pneg %p89
      %p282 = pneg %p86
      %p283 = scmp.lt.s32.totalorder %s22, 0
      %s284 = scalar_select %p283, %s22, 0
      %s285 = smul.addr %s284, 8
      %s286 = scalar_lea.vmem %s2, %s285
      %p287 = pneg %p115
      %p288 = pneg %p112
      %p289 = scmp.lt.s32.totalorder %s22, 0
      %s290 = scalar_select %p289, %s22, 0
      %s291 = scalar_lea.vmem %s3, %s290
      %p292 = pneg %p141
      %p293 = pneg %p138
      %p294 = pneg %p171
      %p295 = pneg %p168
      %s296 = smul.u32 32, %s21
      %p297 = scmp.lt.s32.totalorder %s20, 1
      %s298 = scalar_select %p297, %s20, 1
      %p299 = scmp.lt.s32.totalorder %s22, 0
      %s300 = scalar_select %p299, %s22, 0
      %p301 = scmp.lt.s32.totalorder %s296, 31
      %s302 = scalar_select %p301, %s296, 31
      %s303 = smul.addr %s300, 32
      %s304 = sadd.s32 %s302, %s303
      %s305 = smul.addr %s298, 32
      %s306 = sadd.s32 %s304, %s305
      %s307 = smul.addr %s306, 8
      %s308 = scalar_lea.vmem %s4, %s307
      %s309 = smul.u32 16, %s21
      %s310 = ssub.s32 18, %s309
      %p311 = scmp.lt.s32.totalorder %s310, 16
      %s312 = scalar_select %p311, %s310, 16
      %s313 = smul.u32 128, %s312
      %s314 = smul.u32 %s313, 3
      %p315 = scmp.lt.s32.totalorder %s20, 1
      %s316 = scalar_select %p315, %s20, 1
      %p317 = scmp.lt.s32.totalorder %s309, 17
      %s318 = scalar_select %p317, %s309, 17
      %s319 = smul.addr %s318, 3
      %s320 = smul.addr %s316, 54
      %s321 = sadd.s32 %s319, %s320
      %s322 = smul.addr %s321, 8
      %s323 = scalar_lea.vmem %s0, %s322
      %s324 = smul.u32 16, %s21
      %s325 = ssub.s32 18, %s324
      %p326 = scmp.lt.s32.totalorder %s325, 16
      %s327 = scalar_select %p326, %s325, 16
      %s328 = smul.u32 128, %s327
      %s329 = smul.u32 %s328, 3
      %s330 = sadd.s32 %s21, 1
      %s331 = smul.u32 %s330, 8
      %s332 = smul.u32 2, %s331
      %p333 = scmp.lt.s32.totalorder %s20, 1
      %s334 = scalar_select %p333, %s20, 1
      %p335 = scmp.lt.s32.totalorder %s332, 17
      %s336 = scalar_select %p335, %s332, 17
      %s337 = smul.addr %s336, 3
      %s338 = smul.addr %s334, 54
      %s339 = sadd.s32 %s337, %s338
      %s340 = smul.addr %s339, 8
      %s341 = scalar_lea.vmem %s1, %s340
      %s342 = sadd.s32 %s21, 1
      %s343 = smul.u32 %s342, 8
      %s344 = smul.u32 2, %s343
      %p345 = scmp.lt.s32.totalorder %s22, 0
      %s346 = scalar_select %p345, %s22, 0
      %s347 = smul.addr %s346, 8
      %s348 = scalar_lea.vmem %s2, %s347
      %p349 = scmp.lt.s32.totalorder %s22, 0
      %s350 = scalar_select %p349, %s22, 0
      %s351 = scalar_lea.vmem %s3, %s350
      %s352 = smul.u32 32, %s21
      %p353 = scmp.lt.s32.totalorder %s20, 1
      %s354 = scalar_select %p353, %s20, 1
      %p355 = scmp.lt.s32.totalorder %s22, 0
      %s356 = scalar_select %p355, %s22, 0
      %p357 = scmp.lt.s32.totalorder %s352, 31
      %s358 = scalar_select %p357, %s352, 31
      %s359 = smul.addr %s356, 32
      %s360 = sadd.s32 %s358, %s359
      %s361 = smul.addr %s354, 32
      %s362 = sadd.s32 %s360, %s361
      %s363 = smul.addr %s362, 8
      %s364 = scalar_lea.vmem %s4, %s363
      %s365 = smul.u32 32, %s21
      %v366 = vld [vmem:[%s323] sm:$0xff]
      %v367 = vld [vmem:[%s323 + $0x8] sm:$0xff]
      %v368 = vld [vmem:[%s323 + $0x10] sm:$0x3]
      %v369 = vld [vmem:[%s323 + $0x18] sm:$0xff]
      %v370 = vld [vmem:[%s323 + $0x20] sm:$0xff]
      %v371 = vld [vmem:[%s323 + $0x28] sm:$0x3]
      %v372 = vld [vmem:[%s323 + $0x30] sm:$0xff]
      %v373 = vld [vmem:[%s323 + $0x38] sm:$0xff]
      %v374 = vld [vmem:[%s323 + $0x40] sm:$0x3]
      %v375 = vld [vmem:[%s323 + $0x48] sm:$0xff]
      %v376 = vld [vmem:[%s323 + $0x50] sm:$0xff]
      %v377 = vld [vmem:[%s323 + $0x58] sm:$0x3]
      %v378 = vld [vmem:[%s323 + $0x60] sm:$0xff]
      %v379 = vld [vmem:[%s323 + $0x68] sm:$0xff]
      %v380 = vld [vmem:[%s323 + $0x70] sm:$0x3]
      %v381 = vld [vmem:[%s323 + $0x78] sm:$0xff]
      %v382 = vld [vmem:[%s323 + $0x80] sm:$0xff]
      %v383 = vld [vmem:[%s323 + $0x88] sm:$0x3]
      %v384 = vld [vmem:[%s323 + $0x90] sm:$0xff]
      %v385 = vld [vmem:[%s323 + $0x98] sm:$0xff]
      %v386 = vld [vmem:[%s323 + $0xa0] sm:$0x3]
      %v387 = vld [vmem:[%s323 + $0xa8] sm:$0xff]
      %v388 = vld [vmem:[%s323 + $0xb0] sm:$0xff]
      %v389 = vld [vmem:[%s323 + $0xb8] sm:$0x3]
      %v390 = vld [vmem:[%s323 + $0xc0] sm:$0xff]
      %v391 = vld [vmem:[%s323 + $0xc8] sm:$0xff]
      %v392 = vld [vmem:[%s323 + $0xd0] sm:$0x3]
      %v393 = vld [vmem:[%s323 + $0xd8] sm:$0xff]
      %v394 = vld [vmem:[%s323 + $0xe0] sm:$0xff]
      %v395 = vld [vmem:[%s323 + $0xe8] sm:$0x3]
      %v396 = vld [vmem:[%s323 + $0xf0] sm:$0xff]
      %v397 = vld [vmem:[%s323 + $0xf8] sm:$0xff]
      %v398 = vld [vmem:[%s323 + $0x100] sm:$0x3]
      %v399 = vld [vmem:[%s323 + $0x108] sm:$0xff]
      %v400 = vld [vmem:[%s323 + $0x110] sm:$0xff]
      %v401 = vld [vmem:[%s323 + $0x118] sm:$0x3]
      %v402 = vld [vmem:[%s323 + $0x120] sm:$0xff]
      %v403 = vld [vmem:[%s323 + $0x128] sm:$0xff]
      %v404 = vld [vmem:[%s323 + $0x130] sm:$0x3]
      %v405 = vld [vmem:[%s323 + $0x138] sm:$0xff]
      %v406 = vld [vmem:[%s323 + $0x140] sm:$0xff]
      %v407 = vld [vmem:[%s323 + $0x148] sm:$0x3]
      %v408 = vld [vmem:[%s323 + $0x150] sm:$0xff]
      %v409 = vld [vmem:[%s323 + $0x158] sm:$0xff]
      %v410 = vld [vmem:[%s323 + $0x160] sm:$0x3]
      %v411 = vld [vmem:[%s323 + $0x168] sm:$0xff]
      %v412 = vld [vmem:[%s323 + $0x170] sm:$0xff]
      %v413 = vld [vmem:[%s323 + $0x178] sm:$0x3]
      %vm414 = vcmask 31744
      %415 = vst.msk [vmem:[#allocation2] sm:$0xff] %vm414, %v366
      %416 = vst.msk [vmem:[#allocation2 + $0x8] sm:$0xff] %vm414, %v367
      %vm417 = vcmask 25600
      %418 = vst.msk [vmem:[#allocation2 + $0x10] sm:$0x3] %vm417, %v368
      %419 = vst.msk [vmem:[#allocation2 + $0x18] sm:$0xff] %vm414, %v369
      %420 = vst.msk [vmem:[#allocation2 + $0x20] sm:$0xff] %vm414, %v370
      %421 = vst.msk [vmem:[#allocation2 + $0x28] sm:$0x3] %vm417, %v371
      %422 = vst.msk [vmem:[#allocation2 + $0x30] sm:$0xff] %vm414, %v372
      %423 = vst.msk [vmem:[#allocation2 + $0x38] sm:$0xff] %vm414, %v373
      %424 = vst.msk [vmem:[#allocation2 + $0x40] sm:$0x3] %vm417, %v374
      %425 = vst.msk [vmem:[#allocation2 + $0x48] sm:$0xff] %vm414, %v375
      %426 = vst.msk [vmem:[#allocation2 + $0x50] sm:$0xff] %vm414, %v376
      %427 = vst.msk [vmem:[#allocation2 + $0x58] sm:$0x3] %vm417, %v377
      %428 = vst.msk [vmem:[#allocation2 + $0x60] sm:$0xff] %vm414, %v378
      %429 = vst.msk [vmem:[#allocation2 + $0x68] sm:$0xff] %vm414, %v379
      %430 = vst.msk [vmem:[#allocation2 + $0x70] sm:$0x3] %vm417, %v380
      %431 = vst.msk [vmem:[#allocation2 + $0x78] sm:$0xff] %vm414, %v381
      %432 = vst.msk [vmem:[#allocation2 + $0x80] sm:$0xff] %vm414, %v382
      %433 = vst.msk [vmem:[#allocation2 + $0x88] sm:$0x3] %vm417, %v383
      %434 = vst.msk [vmem:[#allocation2 + $0x90] sm:$0xff] %vm414, %v384
      %435 = vst.msk [vmem:[#allocation2 + $0x98] sm:$0xff] %vm414, %v385
      %436 = vst.msk [vmem:[#allocation2 + $0xa0] sm:$0x3] %vm417, %v386
      %437 = vst.msk [vmem:[#allocation2 + $0xa8] sm:$0xff] %vm414, %v387
      %438 = vst.msk [vmem:[#allocation2 + $0xb0] sm:$0xff] %vm414, %v388
      %439 = vst.msk [vmem:[#allocation2 + $0xb8] sm:$0x3] %vm417, %v389
      %440 = vst.msk [vmem:[#allocation2 + $0xc0] sm:$0xff] %vm414, %v390
      %441 = vst.msk [vmem:[#allocation2 + $0xc8] sm:$0xff] %vm414, %v391
      %442 = vst.msk [vmem:[#allocation2 + $0xd0] sm:$0x3] %vm417, %v392
      %443 = vst.msk [vmem:[#allocation2 + $0xd8] sm:$0xff] %vm414, %v393
      %444 = vst.msk [vmem:[#allocation2 + $0xe0] sm:$0xff] %vm414, %v394
      %445 = vst.msk [vmem:[#allocation2 + $0xe8] sm:$0x3] %vm417, %v395
      %446 = vst.msk [vmem:[#allocation2 + $0xf0] sm:$0xff] %vm414, %v396
      %447 = vst.msk [vmem:[#allocation2 + $0xf8] sm:$0xff] %vm414, %v397
      %448 = vst.msk [vmem:[#allocation2 + $0x100] sm:$0x3] %vm417, %v398
      %449 = vst.msk [vmem:[#allocation2 + $0x108] sm:$0xff] %vm414, %v399
      %450 = vst.msk [vmem:[#allocation2 + $0x110] sm:$0xff] %vm414, %v400
      %451 = vst.msk [vmem:[#allocation2 + $0x118] sm:$0x3] %vm417, %v401
      %452 = vst.msk [vmem:[#allocation2 + $0x120] sm:$0xff] %vm414, %v402
      %453 = vst.msk [vmem:[#allocation2 + $0x128] sm:$0xff] %vm414, %v403
      %454 = vst.msk [vmem:[#allocation2 + $0x130] sm:$0x3] %vm417, %v404
      %455 = vst.msk [vmem:[#allocation2 + $0x138] sm:$0xff] %vm414, %v405
      %456 = vst.msk [vmem:[#allocation2 + $0x140] sm:$0xff] %vm414, %v406
      %457 = vst.msk [vmem:[#allocation2 + $0x148] sm:$0x3] %vm417, %v407
      %458 = vst.msk [vmem:[#allocation2 + $0x150] sm:$0xff] %vm414, %v408
      %459 = vst.msk [vmem:[#allocation2 + $0x158] sm:$0xff] %vm414, %v409
      %460 = vst.msk [vmem:[#allocation2 + $0x160] sm:$0x3] %vm417, %v410
      %461 = vst.msk [vmem:[#allocation2 + $0x168] sm:$0xff] %vm414, %v411
      %462 = vst.msk [vmem:[#allocation2 + $0x170] sm:$0xff] %vm414, %v412
      %463 = vst.msk [vmem:[#allocation2 + $0x178] sm:$0x3] %vm417, %v413
      %v464 = vld [vmem:[%s341] sm:$0xff]
      %v465 = vld [vmem:[%s341 + $0x8] sm:$0xff]
      %v466 = vld [vmem:[%s341 + $0x10] sm:$0x3]
      %v467 = vld [vmem:[%s341 + $0x18] sm:$0xff]
      %v468 = vld [vmem:[%s341 + $0x20] sm:$0xff]
      %v469 = vld [vmem:[%s341 + $0x28] sm:$0x3]
      %s470 = scalar_lea.vmem [#allocation2], 384
      %471 = vst.msk [vmem:[%s470] sm:$0xff] %vm414, %v464
      %472 = vst.msk [vmem:[%s470 + $0x8] sm:$0xff] %vm414, %v465
      %473 = vst.msk [vmem:[%s470 + $0x10] sm:$0x3] %vm417, %v466
      %474 = vst.msk [vmem:[%s470 + $0x18] sm:$0xff] %vm414, %v467
      %475 = vst.msk [vmem:[%s470 + $0x20] sm:$0xff] %vm414, %v468
      %476 = vst.msk [vmem:[%s470 + $0x28] sm:$0x3] %vm417, %v469
      %v477 = vld [vmem:[%s351] sm:$0x1]
      %v478 = vld [vmem:[#allocation2] sm:$0xff]
      %v479 = vld [vmem:[#allocation2 + $0x8] sm:$0xff]
      %v480 = vld [vmem:[#allocation2 + $0x18] sm:$0xff]
      %v481 = vld [vmem:[#allocation2 + $0x20] sm:$0xff]
      %v482 = vld [vmem:[#allocation2 + $0x30] sm:$0xff]
      %v483 = vld [vmem:[#allocation2 + $0x38] sm:$0xff]
      %v484 = vld [vmem:[#allocation2 + $0x48] sm:$0xff]
      %v485 = vld [vmem:[#allocation2 + $0x50] sm:$0xff]
      %v486 = vld [vmem:[#allocation2 + $0x60] sm:$0xff]
      %v487 = vld [vmem:[#allocation2 + $0x68] sm:$0xff]
      %v488 = vld [vmem:[#allocation2 + $0x78] sm:$0xff]
      %v489 = vld [vmem:[#allocation2 + $0x80] sm:$0xff]
      %v490 = vld [vmem:[#allocation2 + $0x90] sm:$0xff]
      %v491 = vld [vmem:[#allocation2 + $0x98] sm:$0xff]
      %v492 = vld [vmem:[#allocation2 + $0xa8] sm:$0xff]
      %v493 = vld [vmem:[#allocation2 + $0xb0] sm:$0xff]
      %v494 = vld [vmem:[#allocation2 + $0xc0] sm:$0xff]
      %v495 = vld [vmem:[#allocation2 + $0xc8] sm:$0xff]
      %v496 = vld [vmem:[#allocation2 + $0xd8] sm:$0xff]
      %v497 = vld [vmem:[#allocation2 + $0xe0] sm:$0xff]
      %v498 = vld [vmem:[#allocation2 + $0xf0] sm:$0xff]
      %v499 = vld [vmem:[#allocation2 + $0xf8] sm:$0xff]
      %v500 = vld [vmem:[#allocation2 + $0x108] sm:$0xff]
      %v501 = vld [vmem:[#allocation2 + $0x110] sm:$0xff]
      %v502 = vld [vmem:[#allocation2 + $0x120] sm:$0xff]
      %v503 = vld [vmem:[#allocation2 + $0x128] sm:$0xff]
      %v504 = vld [vmem:[#allocation2 + $0x138] sm:$0xff]
      %v505 = vld [vmem:[#allocation2 + $0x140] sm:$0xff]
      %v506 = vld [vmem:[#allocation2 + $0x150] sm:$0xff]
      %v507 = vld [vmem:[#allocation2 + $0x158] sm:$0xff]
      %v508 = vld [vmem:[#allocation2 + $0x168] sm:$0xff]
      %v509 = vld [vmem:[#allocation2 + $0x170] sm:$0xff]
      %v510 = vld [vmem:[#allocation2 + $0x1] sm:$0xff]
      %v511 = vld [vmem:[#allocation2 + $0x9] sm:$0xff]
      %v512 = vld [vmem:[#allocation2 + $0x19] sm:$0xff]
      %v513 = vld [vmem:[#allocation2 + $0x21] sm:$0xff]
      %v514 = vld [vmem:[#allocation2 + $0x31] sm:$0xff]
      %v515 = vld [vmem:[#allocation2 + $0x39] sm:$0xff]
      %v516 = vld [vmem:[#allocation2 + $0x49] sm:$0xff]
      %v517 = vld [vmem:[#allocation2 + $0x51] sm:$0xff]
      %v518 = vld [vmem:[#allocation2 + $0x61] sm:$0xff]
      %v519 = vld [vmem:[#allocation2 + $0x69] sm:$0xff]
      %v520 = vld [vmem:[#allocation2 + $0x79] sm:$0xff]
      %v521 = vld [vmem:[#allocation2 + $0x81] sm:$0xff]
      %v522 = vld [vmem:[#allocation2 + $0x91] sm:$0xff]
      %v523 = vld [vmem:[#allocation2 + $0x99] sm:$0xff]
      %v524 = vld [vmem:[#allocation2 + $0xa9] sm:$0xff]
      %v525 = vld [vmem:[#allocation2 + $0xb1] sm:$0xff]
      %v526 = vld [vmem:[#allocation2 + $0xc1] sm:$0xff]
      %v527 = vld [vmem:[#allocation2 + $0xc9] sm:$0xff]
      %v528 = vld [vmem:[#allocation2 + $0xd9] sm:$0xff]
      %v529 = vld [vmem:[#allocation2 + $0xe1] sm:$0xff]
      %v530 = vld [vmem:[#allocation2 + $0xf1] sm:$0xff]
      %v531 = vld [vmem:[#allocation2 + $0xf9] sm:$0xff]
      %v532 = vld [vmem:[#allocation2 + $0x109] sm:$0xff]
      %v533 = vld [vmem:[#allocation2 + $0x111] sm:$0xff]
      %v534 = vld [vmem:[#allocation2 + $0x121] sm:$0xff]
      %v535 = vld [vmem:[#allocation2 + $0x129] sm:$0xff]
      %v536 = vld [vmem:[#allocation2 + $0x139] sm:$0xff]
      %v537 = vld [vmem:[#allocation2 + $0x141] sm:$0xff]
      %v538 = vld [vmem:[#allocation2 + $0x151] sm:$0xff]
      %v539 = vld [vmem:[#allocation2 + $0x159] sm:$0xff]
      %v540 = vld [vmem:[#allocation2 + $0x169] sm:$0xff]
      %v541 = vld [vmem:[#allocation2 + $0x171] sm:$0xff]
      %s542 = scalar_lea.vmem [#allocation2], 24
      %v543 = vld [vmem:[%s542] sm:$0xff]
      %v544 = vld [vmem:[%s542 + $0x8] sm:$0xff]
      %v545 = vld [vmem:[%s542 + $0x18] sm:$0xff]
      %v546 = vld [vmem:[%s542 + $0x20] sm:$0xff]
      %v547 = vld [vmem:[%s542 + $0x30] sm:$0xff]
      %v548 = vld [vmem:[%s542 + $0x38] sm:$0xff]
      %v549 = vld [vmem:[%s542 + $0x48] sm:$0xff]
      %v550 = vld [vmem:[%s542 + $0x50] sm:$0xff]
      %v551 = vld [vmem:[%s542 + $0x60] sm:$0xff]
      %v552 = vld [vmem:[%s542 + $0x68] sm:$0xff]
      %v553 = vld [vmem:[%s542 + $0x78] sm:$0xff]
      %v554 = vld [vmem:[%s542 + $0x80] sm:$0xff]
      %v555 = vld [vmem:[%s542 + $0x90] sm:$0xff]
      %v556 = vld [vmem:[%s542 + $0x98] sm:$0xff]
      %v557 = vld [vmem:[%s542 + $0xa8] sm:$0xff]
      %v558 = vld [vmem:[%s542 + $0xb0] sm:$0xff]
      %v559 = vld [vmem:[%s542 + $0xc0] sm:$0xff]
      %v560 = vld [vmem:[%s542 + $0xc8] sm:$0xff]
      %v561 = vld [vmem:[%s542 + $0xd8] sm:$0xff]
      %v562 = vld [vmem:[%s542 + $0xe0] sm:$0xff]
      %v563 = vld [vmem:[%s542 + $0xf0] sm:$0xff]
      %v564 = vld [vmem:[%s542 + $0xf8] sm:$0xff]
      %v565 = vld [vmem:[%s542 + $0x108] sm:$0xff]
      %v566 = vld [vmem:[%s542 + $0x110] sm:$0xff]
      %v567 = vld [vmem:[%s542 + $0x120] sm:$0xff]
      %v568 = vld [vmem:[%s542 + $0x128] sm:$0xff]
      %v569 = vld [vmem:[%s542 + $0x138] sm:$0xff]
      %v570 = vld [vmem:[%s542 + $0x140] sm:$0xff]
      %v571 = vld [vmem:[%s542 + $0x150] sm:$0xff]
      %v572 = vld [vmem:[%s542 + $0x158] sm:$0xff]
      %v573 = vld [vmem:[%s542 + $0x168] sm:$0xff]
      %v574 = vld [vmem:[%s542 + $0x170] sm:$0xff]
      %v575 = vld [vmem:[%s542 + $0x1] sm:$0xff]
      %v576 = vld [vmem:[%s542 + $0x9] sm:$0xff]
      %v577 = vld [vmem:[%s542 + $0x19] sm:$0xff]
      %v578 = vld [vmem:[%s542 + $0x21] sm:$0xff]
      %v579 = vld [vmem:[%s542 + $0x31] sm:$0xff]
      %v580 = vld [vmem:[%s542 + $0x39] sm:$0xff]
      %v581 = vld [vmem:[%s542 + $0x49] sm:$0xff]
      %v582 = vld [vmem:[%s542 + $0x51] sm:$0xff]
      %v583 = vld [vmem:[%s542 + $0x61] sm:$0xff]
      %v584 = vld [vmem:[%s542 + $0x69] sm:$0xff]
      %v585 = vld [vmem:[%s542 + $0x79] sm:$0xff]
      %v586 = vld [vmem:[%s542 + $0x81] sm:$0xff]
      %v587 = vld [vmem:[%s542 + $0x91] sm:$0xff]
      %v588 = vld [vmem:[%s542 + $0x99] sm:$0xff]
      %v589 = vld [vmem:[%s542 + $0xa9] sm:$0xff]
      %v590 = vld [vmem:[%s542 + $0xb1] sm:$0xff]
      %v591 = vld [vmem:[%s542 + $0xc1] sm:$0xff]
      %v592 = vld [vmem:[%s542 + $0xc9] sm:$0xff]
      %v593 = vld [vmem:[%s542 + $0xd9] sm:$0xff]
      %v594 = vld [vmem:[%s542 + $0xe1] sm:$0xff]
      %v595 = vld [vmem:[%s542 + $0xf1] sm:$0xff]
      %v596 = vld [vmem:[%s542 + $0xf9] sm:$0xff]
      %v597 = vld [vmem:[%s542 + $0x109] sm:$0xff]
      %v598 = vld [vmem:[%s542 + $0x111] sm:$0xff]
      %v599 = vld [vmem:[%s542 + $0x121] sm:$0xff]
      %v600 = vld [vmem:[%s542 + $0x129] sm:$0xff]
      %v601 = vld [vmem:[%s542 + $0x139] sm:$0xff]
      %v602 = vld [vmem:[%s542 + $0x141] sm:$0xff]
      %v603 = vld [vmem:[%s542 + $0x151] sm:$0xff]
      %v604 = vld [vmem:[%s542 + $0x159] sm:$0xff]
      %v605 = vld [vmem:[%s542 + $0x169] sm:$0xff]
      %v606 = vld [vmem:[%s542 + $0x171] sm:$0xff]
      %639 = vrot.lane.b32.xlu0 %v510, 4
      %v640 = vpop.permute.xlu0 %639
      %641 = vrot.lane.b32.xlu0 %v511, 4
      %v642 = vpop.permute.xlu0 %641
      %643 = vrot.lane.b32.xlu0 %v512, 4
      %v644 = vpop.permute.xlu0 %643
      %645 = vrot.lane.b32.xlu0 %v513, 4
      %v646 = vpop.permute.xlu0 %645
      %647 = vrot.lane.b32.xlu0 %v514, 4
      %v648 = vpop.permute.xlu0 %647
      %649 = vrot.lane.b32.xlu0 %v515, 4
      %v650 = vpop.permute.xlu0 %649
      %651 = vrot.lane.b32.xlu0 %v516, 4
      %v652 = vpop.permute.xlu0 %651
      %653 = vrot.lane.b32.xlu0 %v517, 4
      %v654 = vpop.permute.xlu0 %653
      %655 = vrot.lane.b32.xlu0 %v518, 4
      %v656 = vpop.permute.xlu0 %655
      %657 = vrot.lane.b32.xlu0 %v519, 4
      %v658 = vpop.permute.xlu0 %657
      %659 = vrot.lane.b32.xlu0 %v520, 4
      %v660 = vpop.permute.xlu0 %659
      %661 = vrot.lane.b32.xlu0 %v521, 4
      %v662 = vpop.permute.xlu0 %661
      %663 = vrot.lane.b32.xlu0 %v522, 4
      %v664 = vpop.permute.xlu0 %663
      %665 = vrot.lane.b32.xlu0 %v523, 4
      %v666 = vpop.permute.xlu0 %665
      %667 = vrot.lane.b32.xlu0 %v524, 4
      %v668 = vpop.permute.xlu0 %667
      %669 = vrot.lane.b32.xlu0 %v525, 4
      %v670 = vpop.permute.xlu0 %669
      %671 = vrot.lane.b32.xlu0 %v526, 4
      %v672 = vpop.permute.xlu0 %671
      %673 = vrot.lane.b32.xlu0 %v527, 4
      %v674 = vpop.permute.xlu0 %673
      %675 = vrot.lane.b32.xlu0 %v528, 4
      %v676 = vpop.permute.xlu0 %675
      %677 = vrot.lane.b32.xlu0 %v529, 4
      %v678 = vpop.permute.xlu0 %677
      %679 = vrot.lane.b32.xlu0 %v530, 4
      %v680 = vpop.permute.xlu0 %679
      %681 = vrot.lane.b32.xlu0 %v531, 4
      %v682 = vpop.permute.xlu0 %681
      %683 = vrot.lane.b32.xlu0 %v532, 4
      %v684 = vpop.permute.xlu0 %683
      %685 = vrot.lane.b32.xlu0 %v533, 4
      %v686 = vpop.permute.xlu0 %685
      %687 = vrot.lane.b32.xlu0 %v534, 4
      %v688 = vpop.permute.xlu0 %687
      %689 = vrot.lane.b32.xlu0 %v535, 4
      %v690 = vpop.permute.xlu0 %689
      %691 = vrot.lane.b32.xlu0 %v536, 4
      %v692 = vpop.permute.xlu0 %691
      %693 = vrot.lane.b32.xlu0 %v537, 4
      %v694 = vpop.permute.xlu0 %693
      %695 = vrot.lane.b32.xlu0 %v538, 4
      %v696 = vpop.permute.xlu0 %695
      %697 = vrot.lane.b32.xlu0 %v539, 4
      %v698 = vpop.permute.xlu0 %697
      %699 = vrot.lane.b32.xlu0 %v540, 4
      %v700 = vpop.permute.xlu0 %699
      %701 = vrot.lane.b32.xlu0 %v541, 4
      %v702 = vpop.permute.xlu0 %701
      %767 = vrot.lane.b32.xlu0 %v543, 8
      %v768 = vpop.permute.xlu0 %767
      %769 = vrot.lane.b32.xlu0 %v544, 8
      %v770 = vpop.permute.xlu0 %769
      %771 = vrot.lane.b32.xlu0 %v545, 8
      %v772 = vpop.permute.xlu0 %771
      %773 = vrot.lane.b32.xlu0 %v546, 8
      %v774 = vpop.permute.xlu0 %773
      %775 = vrot.lane.b32.xlu0 %v547, 8
      %v776 = vpop.permute.xlu0 %775
      %777 = vrot.lane.b32.xlu0 %v548, 8
      %v778 = vpop.permute.xlu0 %777
      %779 = vrot.lane.b32.xlu0 %v549, 8
      %v780 = vpop.permute.xlu0 %779
      %781 = vrot.lane.b32.xlu0 %v550, 8
      %v782 = vpop.permute.xlu0 %781
      %783 = vrot.lane.b32.xlu0 %v551, 8
      %v784 = vpop.permute.xlu0 %783
      %785 = vrot.lane.b32.xlu0 %v552, 8
      %v786 = vpop.permute.xlu0 %785
      %787 = vrot.lane.b32.xlu0 %v553, 8
      %v788 = vpop.permute.xlu0 %787
      %789 = vrot.lane.b32.xlu0 %v554, 8
      %v790 = vpop.permute.xlu0 %789
      %791 = vrot.lane.b32.xlu0 %v555, 8
      %v792 = vpop.permute.xlu0 %791
      %793 = vrot.lane.b32.xlu0 %v556, 8
      %v794 = vpop.permute.xlu0 %793
      %795 = vrot.lane.b32.xlu0 %v557, 8
      %v796 = vpop.permute.xlu0 %795
      %797 = vrot.lane.b32.xlu0 %v558, 8
      %v798 = vpop.permute.xlu0 %797
      %799 = vrot.lane.b32.xlu0 %v559, 8
      %v800 = vpop.permute.xlu0 %799
      %801 = vrot.lane.b32.xlu0 %v560, 8
      %v802 = vpop.permute.xlu0 %801
      %803 = vrot.lane.b32.xlu0 %v561, 8
      %v804 = vpop.permute.xlu0 %803
      %805 = vrot.lane.b32.xlu0 %v562, 8
      %v806 = vpop.permute.xlu0 %805
      %807 = vrot.lane.b32.xlu0 %v563, 8
      %v808 = vpop.permute.xlu0 %807
      %809 = vrot.lane.b32.xlu0 %v564, 8
      %v810 = vpop.permute.xlu0 %809
      %811 = vrot.lane.b32.xlu0 %v565, 8
      %v812 = vpop.permute.xlu0 %811
      %813 = vrot.lane.b32.xlu0 %v566, 8
      %v814 = vpop.permute.xlu0 %813
      %815 = vrot.lane.b32.xlu0 %v567, 8
      %v816 = vpop.permute.xlu0 %815
      %817 = vrot.lane.b32.xlu0 %v568, 8
      %v818 = vpop.permute.xlu0 %817
      %819 = vrot.lane.b32.xlu0 %v569, 8
      %v820 = vpop.permute.xlu0 %819
      %821 = vrot.lane.b32.xlu0 %v570, 8
      %v822 = vpop.permute.xlu0 %821
      %823 = vrot.lane.b32.xlu0 %v571, 8
      %v824 = vpop.permute.xlu0 %823
      %825 = vrot.lane.b32.xlu0 %v572, 8
      %v826 = vpop.permute.xlu0 %825
      %827 = vrot.lane.b32.xlu0 %v573, 8
      %v828 = vpop.permute.xlu0 %827
      %829 = vrot.lane.b32.xlu0 %v574, 8
      %v830 = vpop.permute.xlu0 %829
      %895 = vrot.lane.b32.xlu0 %v575, 12
      %v896 = vpop.permute.xlu0 %895
      %897 = vrot.lane.b32.xlu0 %v576, 12
      %v898 = vpop.permute.xlu0 %897
      %899 = vrot.lane.b32.xlu0 %v577, 12
      %v900 = vpop.permute.xlu0 %899
      %901 = vrot.lane.b32.xlu0 %v578, 12
      %v902 = vpop.permute.xlu0 %901
      %903 = vrot.lane.b32.xlu0 %v579, 12
      %v904 = vpop.permute.xlu0 %903
      %905 = vrot.lane.b32.xlu0 %v580, 12
      %v906 = vpop.permute.xlu0 %905
      %907 = vrot.lane.b32.xlu0 %v581, 12
      %v908 = vpop.permute.xlu0 %907
      %909 = vrot.lane.b32.xlu0 %v582, 12
      %v910 = vpop.permute.xlu0 %909
      %911 = vrot.lane.b32.xlu0 %v583, 12
      %v912 = vpop.permute.xlu0 %911
      %913 = vrot.lane.b32.xlu0 %v584, 12
      %v914 = vpop.permute.xlu0 %913
      %915 = vrot.lane.b32.xlu0 %v585, 12
      %v916 = vpop.permute.xlu0 %915
      %917 = vrot.lane.b32.xlu0 %v586, 12
      %v918 = vpop.permute.xlu0 %917
      %919 = vrot.lane.b32.xlu0 %v587, 12
      %v920 = vpop.permute.xlu0 %919
      %921 = vrot.lane.b32.xlu0 %v588, 12
      %v922 = vpop.permute.xlu0 %921
      %923 = vrot.lane.b32.xlu0 %v589, 12
      %v924 = vpop.permute.xlu0 %923
      %925 = vrot.lane.b32.xlu0 %v590, 12
      %v926 = vpop.permute.xlu0 %925
      %927 = vrot.lane.b32.xlu0 %v591, 12
      %v928 = vpop.permute.xlu0 %927
      %929 = vrot.lane.b32.xlu0 %v592, 12
      %v930 = vpop.permute.xlu0 %929
      %931 = vrot.lane.b32.xlu0 %v593, 12
      %v932 = vpop.permute.xlu0 %931
      %933 = vrot.lane.b32.xlu0 %v594, 12
      %v934 = vpop.permute.xlu0 %933
      %935 = vrot.lane.b32.xlu0 %v595, 12
      %v936 = vpop.permute.xlu0 %935
      %937 = vrot.lane.b32.xlu0 %v596, 12
      %v938 = vpop.permute.xlu0 %937
      %939 = vrot.lane.b32.xlu0 %v597, 12
      %v940 = vpop.permute.xlu0 %939
      %941 = vrot.lane.b32.xlu0 %v598, 12
      %v942 = vpop.permute.xlu0 %941
      %943 = vrot.lane.b32.xlu0 %v599, 12
      %v944 = vpop.permute.xlu0 %943
      %945 = vrot.lane.b32.xlu0 %v600, 12
      %v946 = vpop.permute.xlu0 %945
      %947 = vrot.lane.b32.xlu0 %v601, 12
      %v948 = vpop.permute.xlu0 %947
      %949 = vrot.lane.b32.xlu0 %v602, 12
      %v950 = vpop.permute.xlu0 %949
      %951 = vrot.lane.b32.xlu0 %v603, 12
      %v952 = vpop.permute.xlu0 %951
      %953 = vrot.lane.b32.xlu0 %v604, 12
      %v954 = vpop.permute.xlu0 %953
      %955 = vrot.lane.b32.xlu0 %v605, 12
      %v956 = vpop.permute.xlu0 %955
      %957 = vrot.lane.b32.xlu0 %v606, 12
      %v958 = vpop.permute.xlu0 %957
      %v991 = vsel %vm414, %v478, %v640
      %v992 = vsel %vm414, %v479, %v642
      %v993 = vsel %vm414, %v480, %v644
      %v994 = vsel %vm414, %v481, %v646
      %v995 = vsel %vm414, %v482, %v648
      %v996 = vsel %vm414, %v483, %v650
      %v997 = vsel %vm414, %v484, %v652
      %v998 = vsel %vm414, %v485, %v654
      %v999 = vsel %vm414, %v486, %v656
      %v1000 = vsel %vm414, %v487, %v658
      %v1001 = vsel %vm414, %v488, %v660
      %v1002 = vsel %vm414, %v489, %v662
      %v1003 = vsel %vm414, %v490, %v664
      %v1004 = vsel %vm414, %v491, %v666
      %v1005 = vsel %vm414, %v492, %v668
      %v1006 = vsel %vm414, %v493, %v670
      %v1007 = vsel %vm414, %v494, %v672
      %v1008 = vsel %vm414, %v495, %v674
      %v1009 = vsel %vm414, %v496, %v676
      %v1010 = vsel %vm414, %v497, %v678
      %v1011 = vsel %vm414, %v498, %v680
      %v1012 = vsel %vm414, %v499, %v682
      %v1013 = vsel %vm414, %v500, %v684
      %v1014 = vsel %vm414, %v501, %v686
      %v1015 = vsel %vm414, %v502, %v688
      %v1016 = vsel %vm414, %v503, %v690
      %v1017 = vsel %vm414, %v504, %v692
      %v1018 = vsel %vm414, %v505, %v694
      %v1019 = vsel %vm414, %v506, %v696
      %v1020 = vsel %vm414, %v507, %v698
      %v1021 = vsel %vm414, %v508, %v700
      %v1022 = vsel %vm414, %v509, %v702
      %vm1023 = vcmask 64512
      %v1024 = vsel %vm1023, %v991, %v768
      %v1025 = vsel %vm1023, %v992, %v770
      %v1026 = vsel %vm1023, %v993, %v772
      %v1027 = vsel %vm1023, %v994, %v774
      %v1028 = vsel %vm1023, %v995, %v776
      %v1029 = vsel %vm1023, %v996, %v778
      %v1030 = vsel %vm1023, %v997, %v780
      %v1031 = vsel %vm1023, %v998, %v782
      %v1032 = vsel %vm1023, %v999, %v784
      %v1033 = vsel %vm1023, %v1000, %v786
      %v1034 = vsel %vm1023, %v1001, %v788
      %v1035 = vsel %vm1023, %v1002, %v790
      %v1036 = vsel %vm1023, %v1003, %v792
      %v1037 = vsel %vm1023, %v1004, %v794
      %v1038 = vsel %vm1023, %v1005, %v796
      %v1039 = vsel %vm1023, %v1006, %v798
      %v1040 = vsel %vm1023, %v1007, %v800
      %v1041 = vsel %vm1023, %v1008, %v802
      %v1042 = vsel %vm1023, %v1009, %v804
      %v1043 = vsel %vm1023, %v1010, %v806
      %v1044 = vsel %vm1023, %v1011, %v808
      %v1045 = vsel %vm1023, %v1012, %v810
      %v1046 = vsel %vm1023, %v1013, %v812
      %v1047 = vsel %vm1023, %v1014, %v814
      %v1048 = vsel %vm1023, %v1015, %v816
      %v1049 = vsel %vm1023, %v1016, %v818
      %v1050 = vsel %vm1023, %v1017, %v820
      %v1051 = vsel %vm1023, %v1018, %v822
      %v1052 = vsel %vm1023, %v1019, %v824
      %v1053 = vsel %vm1023, %v1020, %v826
      %v1054 = vsel %vm1023, %v1021, %v828
      %v1055 = vsel %vm1023, %v1022, %v830
      %vm1056 = vcmask 97280
      %v1057 = vsel %vm1056, %v1024, %v896
      %v1058 = vsel %vm1056, %v1025, %v898
      %v1059 = vsel %vm1056, %v1026, %v900
      %v1060 = vsel %vm1056, %v1027, %v902
      %v1061 = vsel %vm1056, %v1028, %v904
      %v1062 = vsel %vm1056, %v1029, %v906
      %v1063 = vsel %vm1056, %v1030, %v908
      %v1064 = vsel %vm1056, %v1031, %v910
      %v1065 = vsel %vm1056, %v1032, %v912
      %v1066 = vsel %vm1056, %v1033, %v914
      %v1067 = vsel %vm1056, %v1034, %v916
      %v1068 = vsel %vm1056, %v1035, %v918
      %v1069 = vsel %vm1056, %v1036, %v920
      %v1070 = vsel %vm1056, %v1037, %v922
      %v1071 = vsel %vm1056, %v1038, %v924
      %v1072 = vsel %vm1056, %v1039, %v926
      %v1073 = vsel %vm1056, %v1040, %v928
      %v1074 = vsel %vm1056, %v1041, %v930
      %v1075 = vsel %vm1056, %v1042, %v932
      %v1076 = vsel %vm1056, %v1043, %v934
      %v1077 = vsel %vm1056, %v1044, %v936
      %v1078 = vsel %vm1056, %v1045, %v938
      %v1079 = vsel %vm1056, %v1046, %v940
      %v1080 = vsel %vm1056, %v1047, %v942
      %v1081 = vsel %vm1056, %v1048, %v944
      %v1082 = vsel %vm1056, %v1049, %v946
      %v1083 = vsel %vm1056, %v1050, %v948
      %v1084 = vsel %vm1056, %v1051, %v950
      %v1085 = vsel %vm1056, %v1052, %v952
      %v1086 = vsel %vm1056, %v1053, %v954
      %v1087 = vsel %vm1056, %v1054, %v956
      %v1088 = vsel %vm1056, %v1055, %v958
      %v1089 = vld [vmem:[%s348] sm:$0xff]
      %v1090 = vld [vmem:[%s348 + $0x8] sm:$0xff]
      %v1092 = vlaneseq
      %v1093 = vshrl.u32 %v1092, 7
      %v1094 = vsub.s32 0, %v1093
      %v1095 = vrot.slane %v477, %v1094
      %vm1097 = vcmask 130048
      %v1099 = vsel %vm1097, %v1057, 0
      %v1102 = vsel %vm1097, %v1058, 0
      %v1105 = vsel %vm1097, %v1059, 0
      %v1108 = vsel %vm1097, %v1060, 0
      %v1111 = vsel %vm1097, %v1061, 0
      %v1114 = vsel %vm1097, %v1062, 0
      %v1117 = vsel %vm1097, %v1063, 0
      %v1120 = vsel %vm1097, %v1064, 0
      %v1123 = vsel %vm1097, %v1065, 0
      %v1126 = vsel %vm1097, %v1066, 0
      %v1129 = vsel %vm1097, %v1067, 0
      %v1132 = vsel %vm1097, %v1068, 0
      %v1135 = vsel %vm1097, %v1069, 0
      %v1138 = vsel %vm1097, %v1070, 0
      %v1141 = vsel %vm1097, %v1071, 0
      %v1144 = vsel %vm1097, %v1072, 0
      %v1147 = vsel %vm1097, %v1073, 0
      %v1150 = vsel %vm1097, %v1074, 0
      %v1153 = vsel %vm1097, %v1075, 0
      %v1156 = vsel %vm1097, %v1076, 0
      %v1159 = vsel %vm1097, %v1077, 0
      %v1162 = vsel %vm1097, %v1078, 0
      %v1165 = vsel %vm1097, %v1079, 0
      %v1168 = vsel %vm1097, %v1080, 0
      %v1171 = vsel %vm1097, %v1081, 0
      %v1174 = vsel %vm1097, %v1082, 0
      %v1177 = vsel %vm1097, %v1083, 0
      %v1180 = vsel %vm1097, %v1084, 0
      %v1183 = vsel %vm1097, %v1085, 0
      %v1186 = vsel %vm1097, %v1086, 0
      %v1189 = vsel %vm1097, %v1087, 0
      %v1192 = vsel %vm1097, %v1088, 0
      %1194 = vmatprep.subr.mxu0 0.0
      %1195 = vmatpush1.msra.mxu0 %v1089
      %1196 = vmatprep.subr.mxu0 0.0
      %1197 = vmatpush1.msra.mxu0 %v1090
      %1198 = vmatprep.subr.mxu0 0.0
      %1199 = vmatpush1.msra.mxu0 0.0
      %1200 = vmatprep.subr.mxu0 0.0
      %1201 = vmatpush1.msra.mxu0 0.0
      %1202 = vmatprep.subr.mxu0 0.0
      %1203 = vmatpush1.msra.mxu0 0.0
      %1204 = vmatprep.subr.mxu0 0.0
      %1205 = vmatpush1.msra.mxu0 0.0
      %1206 = vmatprep.subr.mxu0 0.0
      %1207 = vmatpush1.msra.mxu0 0.0
      %1208 = vmatprep.subr.mxu0 0.0
      %1209 = vmatpush1.msra.mxu0 0.0
      %1210 = vmatprep.subr.mxu0 0.0
      %1211 = vmatpush1.msra.mxu0 0.0
      %1212 = vmatprep.subr.mxu0 0.0
      %1213 = vmatpush1.msra.mxu0 0.0
      %1214 = vmatprep.subr.mxu0 0.0
      %1215 = vmatpush1.msra.mxu0 0.0
      %1216 = vmatprep.subr.mxu0 0.0
      %1217 = vmatpush1.msra.mxu0 0.0
      %1218 = vmatprep.subr.mxu0 0.0
      %1219 = vmatpush1.msra.mxu0 0.0
      %1220 = vmatprep.subr.mxu0 0.0
      %1221 = vmatpush1.msra.mxu0 0.0
      %1222 = vmatprep.subr.mxu0 0.0
      %1223 = vmatpush1.msra.mxu0 0.0
      %1224 = vmatprep.subr.mxu0 0.0
      %1225 = vmatpush1.msra.mxu0 0.0
      %1226 = vmatprep.subr.mxu0 0.0
      %1227 = vmatpush1.msra.mxu0 0.0
      %1228 = vmatprep.subr.mxu0 0.0
      %1229 = vmatpush1.msra.mxu0 0.0
      %1230 = vmatprep.subr.mxu0 0.0
      %1231 = vmatpush1.msra.mxu0 0.0
      %1232 = vmatprep.subr.mxu0 0.0
      %1233 = vmatpush1.msra.mxu0 0.0
      %1234 = vmatprep.subr.mxu0 0.0
      %1235 = vmatpush1.msra.mxu0 0.0
      %1236 = vmatprep.subr.mxu0 0.0
      %1237 = vmatpush1.msra.mxu0 0.0
      %1238 = vmatprep.subr.mxu0 0.0
      %1239 = vmatpush1.msra.mxu0 0.0
      %1240 = vmatprep.subr.mxu0 0.0
      %1241 = vmatpush1.msra.mxu0 0.0
      %1242 = vmatprep.subr.mxu0 0.0
      %1243 = vmatpush1.msra.mxu0 0.0
      %1244 = vmatprep.subr.mxu0 0.0
      %1245 = vmatpush1.msra.mxu0 0.0
      %1246 = vmatprep.subr.mxu0 0.0
      %1247 = vmatpush1.msra.mxu0 0.0
      %1248 = vmatprep.subr.mxu0 0.0
      %1249 = vmatpush1.msra.mxu0 0.0
      %1250 = vmatprep.subr.mxu0 0.0
      %1251 = vmatpush1.msra.mxu0 0.0
      %1252 = vmatprep.subr.mxu0 0.0
      %1253 = vmatpush1.msra.mxu0 0.0
      %1254 = vmatprep.subr.mxu0 0.0
      %1255 = vmatpush1.msra.mxu0 0.0
      %1256 = vmatprep.subr.mxu0 0.0
      %1257 = vmatpush1.msra.mxu0 0.0
      %1258 = vmatprep.mubr.f32.mxu0 0.0
      %1259 = vmatmul.mubr.f32.gmra.mrb[0].mxu0 %v1099
      %v1260 = vpop.f32.mrb[0].mxu0
      %v1261 = vadd.f32 %v1095, %v1260
      %v1262 = vpop.f32.mrb[0].mxu0
      %1263 = vmatprep.mubr.f32.mxu0 0.0
      %1264 = vmatmul.mubr.f32.gmra.mrb[0].mxu0 %v1102
      %v1265 = vpop.f32.mrb[0].mxu0
      %v1266 = vadd.f32 %v1095, %v1265
      %v1267 = vpop.f32.mrb[0].mxu0
      %1268 = vmatprep.mubr.f32.mxu0 0.0
      %1269 = vmatmul.mubr.f32.gmra.mrb[0].mxu0 %v1105
      %v1270 = vpop.f32.mrb[0].mxu0
      %v1271 = vadd.f32 %v1095, %v1270
      %v1272 = vpop.f32.mrb[0].mxu0
      %1273 = vmatprep.mubr.f32.mxu0 0.0
      %1274 = vmatmul.mubr.f32.gmra.mrb[0].mxu0 %v1108
      %v1275 = vpop.f32.mrb[0].mxu0
      %v1276 = vadd.f32 %v1095, %v1275
      %v1277 = vpop.f32.mrb[0].mxu0
      %1278 = vmatprep.mubr.f32.mxu0 0.0
      %1279 = vmatmul.mubr.f32.gmra.mrb[0].mxu0 %v1111
      %v1280 = vpop.f32.mrb[0].mxu0
      %v1281 = vadd.f32 %v1095, %v1280
      %v1282 = vpop.f32.mrb[0].mxu0
      %1283 = vmatprep.mubr.f32.mxu0 0.0
      %1284 = vmatmul.mubr.f32.gmra.mrb[0].mxu0 %v1114
      %v1285 = vpop.f32.mrb[0].mxu0
      %v1286 = vadd.f32 %v1095, %v1285
      %v1287 = vpop.f32.mrb[0].mxu0
      %1288 = vmatprep.mubr.f32.mxu0 0.0
      %1289 = vmatmul.mubr.f32.gmra.mrb[0].mxu0 %v1117
      %v1290 = vpop.f32.mrb[0].mxu0
      %v1291 = vadd.f32 %v1095, %v1290
      %v1292 = vpop.f32.mrb[0].mxu0
      %1293 = vmatprep.mubr.f32.mxu0 0.0
      %1294 = vmatmul.mubr.f32.gmra.mrb[0].mxu0 %v1120
      %v1295 = vpop.f32.mrb[0].mxu0
      %v1296 = vadd.f32 %v1095, %v1295
      %v1297 = vpop.f32.mrb[0].mxu0
      %1298 = vmatprep.mubr.f32.mxu0 0.0
      %1299 = vmatmul.mubr.f32.gmra.mrb[0].mxu0 %v1123
      %v1300 = vpop.f32.mrb[0].mxu0
      %v1301 = vadd.f32 %v1095, %v1300
      %v1302 = vpop.f32.mrb[0].mxu0
      %1303 = vmatprep.mubr.f32.mxu0 0.0
      %1304 = vmatmul.mubr.f32.gmra.mrb[0].mxu0 %v1126
      %v1305 = vpop.f32.mrb[0].mxu0
      %v1306 = vadd.f32 %v1095, %v1305
      %v1307 = vpop.f32.mrb[0].mxu0
      %1308 = vmatprep.mubr.f32.mxu0 0.0
      %1309 = vmatmul.mubr.f32.gmra.mrb[0].mxu0 %v1129
      %v1310 = vpop.f32.mrb[0].mxu0
      %v1311 = vadd.f32 %v1095, %v1310
      %v1312 = vpop.f32.mrb[0].mxu0
      %1313 = vmatprep.mubr.f32.mxu0 0.0
      %1314 = vmatmul.mubr.f32.gmra.mrb[0].mxu0 %v1132
      %v1315 = vpop.f32.mrb[0].mxu0
      %v1316 = vadd.f32 %v1095, %v1315
      %v1317 = vpop.f32.mrb[0].mxu0
      %1318 = vmatprep.mubr.f32.mxu0 0.0
      %1319 = vmatmul.mubr.f32.gmra.mrb[0].mxu0 %v1135
      %v1320 = vpop.f32.mrb[0].mxu0
      %v1321 = vadd.f32 %v1095, %v1320
      %v1322 = vpop.f32.mrb[0].mxu0
      %1323 = vmatprep.mubr.f32.mxu0 0.0
      %1324 = vmatmul.mubr.f32.gmra.mrb[0].mxu0 %v1138
      %v1325 = vpop.f32.mrb[0].mxu0
      %v1326 = vadd.f32 %v1095, %v1325
      %v1327 = vpop.f32.mrb[0].mxu0
      %1328 = vmatprep.mubr.f32.mxu0 0.0
      %1329 = vmatmul.mubr.f32.gmra.mrb[0].mxu0 %v1141
      %v1330 = vpop.f32.mrb[0].mxu0
      %v1331 = vadd.f32 %v1095, %v1330
      %v1332 = vpop.f32.mrb[0].mxu0
      %1333 = vmatprep.mubr.f32.mxu0 0.0
      %1334 = vmatmul.mubr.f32.gmra.mrb[0].mxu0 %v1144
      %v1335 = vpop.f32.mrb[0].mxu0
      %v1336 = vadd.f32 %v1095, %v1335
      %v1337 = vpop.f32.mrb[0].mxu0
      %1338 = vmatprep.mubr.f32.mxu0 0.0
      %1339 = vmatmul.mubr.f32.gmra.mrb[0].mxu0 %v1147
      %v1340 = vpop.f32.mrb[0].mxu0
      %v1341 = vadd.f32 %v1095, %v1340
      %v1342 = vpop.f32.mrb[0].mxu0
      %1343 = vmatprep.mubr.f32.mxu0 0.0
      %1344 = vmatmul.mubr.f32.gmra.mrb[0].mxu0 %v1150
      %v1345 = vpop.f32.mrb[0].mxu0
      %v1346 = vadd.f32 %v1095, %v1345
      %v1347 = vpop.f32.mrb[0].mxu0
      %1348 = vmatprep.mubr.f32.mxu0 0.0
      %1349 = vmatmul.mubr.f32.gmra.mrb[0].mxu0 %v1153
      %v1350 = vpop.f32.mrb[0].mxu0
      %v1351 = vadd.f32 %v1095, %v1350
      %v1352 = vpop.f32.mrb[0].mxu0
      %1353 = vmatprep.mubr.f32.mxu0 0.0
      %1354 = vmatmul.mubr.f32.gmra.mrb[0].mxu0 %v1156
      %v1355 = vpop.f32.mrb[0].mxu0
      %v1356 = vadd.f32 %v1095, %v1355
      %v1357 = vpop.f32.mrb[0].mxu0
      %1358 = vmatprep.mubr.f32.mxu0 0.0
      %1359 = vmatmul.mubr.f32.gmra.mrb[0].mxu0 %v1159
      %v1360 = vpop.f32.mrb[0].mxu0
      %v1361 = vadd.f32 %v1095, %v1360
      %v1362 = vpop.f32.mrb[0].mxu0
      %1363 = vmatprep.mubr.f32.mxu0 0.0
      %1364 = vmatmul.mubr.f32.gmra.mrb[0].mxu0 %v1162
      %v1365 = vpop.f32.mrb[0].mxu0
      %v1366 = vadd.f32 %v1095, %v1365
      %v1367 = vpop.f32.mrb[0].mxu0
      %1368 = vmatprep.mubr.f32.mxu0 0.0
      %1369 = vmatmul.mubr.f32.gmra.mrb[0].mxu0 %v1165
      %v1370 = vpop.f32.mrb[0].mxu0
      %v1371 = vadd.f32 %v1095, %v1370
      %v1372 = vpop.f32.mrb[0].mxu0
      %1373 = vmatprep.mubr.f32.mxu0 0.0
      %1374 = vmatmul.mubr.f32.gmra.mrb[0].mxu0 %v1168
      %v1375 = vpop.f32.mrb[0].mxu0
      %v1376 = vadd.f32 %v1095, %v1375
      %v1377 = vpop.f32.mrb[0].mxu0
      %1378 = vmatprep.mubr.f32.mxu0 0.0
      %1379 = vmatmul.mubr.f32.gmra.mrb[0].mxu0 %v1171
      %v1380 = vpop.f32.mrb[0].mxu0
      %v1381 = vadd.f32 %v1095, %v1380
      %v1382 = vpop.f32.mrb[0].mxu0
      %1383 = vmatprep.mubr.f32.mxu0 0.0
      %1384 = vmatmul.mubr.f32.gmra.mrb[0].mxu0 %v1174
      %v1385 = vpop.f32.mrb[0].mxu0
      %v1386 = vadd.f32 %v1095, %v1385
      %v1387 = vpop.f32.mrb[0].mxu0
      %1388 = vmatprep.mubr.f32.mxu0 0.0
      %1389 = vmatmul.mubr.f32.gmra.mrb[0].mxu0 %v1177
      %v1390 = vpop.f32.mrb[0].mxu0
      %v1391 = vadd.f32 %v1095, %v1390
      %v1392 = vpop.f32.mrb[0].mxu0
      %1393 = vmatprep.mubr.f32.mxu0 0.0
      %1394 = vmatmul.mubr.f32.gmra.mrb[0].mxu0 %v1180
      %v1395 = vpop.f32.mrb[0].mxu0
      %v1396 = vadd.f32 %v1095, %v1395
      %v1397 = vpop.f32.mrb[0].mxu0
      %1398 = vmatprep.mubr.f32.mxu0 0.0
      %1399 = vmatmul.mubr.f32.gmra.mrb[0].mxu0 %v1183
      %v1400 = vpop.f32.mrb[0].mxu0
      %v1401 = vadd.f32 %v1095, %v1400
      %v1402 = vpop.f32.mrb[0].mxu0
      %1403 = vmatprep.mubr.f32.mxu0 0.0
      %1404 = vmatmul.mubr.f32.gmra.mrb[0].mxu0 %v1186
      %v1405 = vpop.f32.mrb[0].mxu0
      %v1406 = vadd.f32 %v1095, %v1405
      %v1407 = vpop.f32.mrb[0].mxu0
      %1408 = vmatprep.mubr.f32.mxu0 0.0
      %1409 = vmatmul.mubr.f32.gmra.mrb[0].mxu0 %v1189
      %v1410 = vpop.f32.mrb[0].mxu0
      %v1411 = vadd.f32 %v1095, %v1410
      %v1412 = vpop.f32.mrb[0].mxu0
      %1413 = vmatprep.mubr.f32.mxu0 0.0
      %1414 = vmatmul.mubr.f32.gmra.mrb[0].mxu0 %v1192
      %v1415 = vpop.f32.mrb[0].mxu0
      %v1416 = vadd.f32 %v1095, %v1415
      %v1417 = vpop.f32.mrb[0].mxu0
      %1418 = vdwg.mxu0
      %1419 = vst.msk [vmem:[%s364] sm:$0xff] %vm414, %v1261
      %1420 = vst.msk [vmem:[%s364 + $0x8] sm:$0xff] %vm414, %v1266
      %1421 = vst.msk [vmem:[%s364 + $0x10] sm:$0xff] %vm414, %v1271
      %1422 = vst.msk [vmem:[%s364 + $0x18] sm:$0xff] %vm414, %v1276
      %1423 = vst.msk [vmem:[%s364 + $0x20] sm:$0xff] %vm414, %v1281
      %1424 = vst.msk [vmem:[%s364 + $0x28] sm:$0xff] %vm414, %v1286
      %1425 = vst.msk [vmem:[%s364 + $0x30] sm:$0xff] %vm414, %v1291
      %1426 = vst.msk [vmem:[%s364 + $0x38] sm:$0xff] %vm414, %v1296
      %1427 = vst.msk [vmem:[%s364 + $0x40] sm:$0xff] %vm414, %v1301
      %1428 = vst.msk [vmem:[%s364 + $0x48] sm:$0xff] %vm414, %v1306
      %1429 = vst.msk [vmem:[%s364 + $0x50] sm:$0xff] %vm414, %v1311
      %1430 = vst.msk [vmem:[%s364 + $0x58] sm:$0xff] %vm414, %v1316
      %1431 = vst.msk [vmem:[%s364 + $0x60] sm:$0xff] %vm414, %v1321
      %1432 = vst.msk [vmem:[%s364 + $0x68] sm:$0xff] %vm414, %v1326
      %1433 = vst.msk [vmem:[%s364 + $0x70] sm:$0xff] %vm414, %v1331
      %1434 = vst.msk [vmem:[%s364 + $0x78] sm:$0xff] %vm414, %v1336
      %1435 = vst.msk [vmem:[%s364 + $0x80] sm:$0xff] %vm414, %v1341
      %1436 = vst.msk [vmem:[%s364 + $0x88] sm:$0xff] %vm414, %v1346
      %1437 = vst.msk [vmem:[%s364 + $0x90] sm:$0xff] %vm414, %v1351
      %1438 = vst.msk [vmem:[%s364 + $0x98] sm:$0xff] %vm414, %v1356
      %1439 = vst.msk [vmem:[%s364 + $0xa0] sm:$0xff] %vm414, %v1361
      %1440 = vst.msk [vmem:[%s364 + $0xa8] sm:$0xff] %vm414, %v1366
      %1441 = vst.msk [vmem:[%s364 + $0xb0] sm:$0xff] %vm414, %v1371
      %1442 = vst.msk [vmem:[%s364 + $0xb8] sm:$0xff] %vm414, %v1376
      %1443 = vst.msk [vmem:[%s364 + $0xc0] sm:$0xff] %vm414, %v1381
      %1444 = vst.msk [vmem:[%s364 + $0xc8] sm:$0xff] %vm414, %v1386
      %1445 = vst.msk [vmem:[%s364 + $0xd0] sm:$0xff] %vm414, %v1391
      %1446 = vst.msk [vmem:[%s364 + $0xd8] sm:$0xff] %vm414, %v1396
      %1447 = vst.msk [vmem:[%s364 + $0xe0] sm:$0xff] %vm414, %v1401
      %1448 = vst.msk [vmem:[%s364 + $0xe8] sm:$0xff] %vm414, %v1406
      %1449 = vst.msk [vmem:[%s364 + $0xf0] sm:$0xff] %vm414, %v1411
      %1450 = vst.msk [vmem:[%s364 + $0xf8] sm:$0xff] %vm414, %v1416
      %v1451 = vld [vmem:[#allocation2 + $0x1] sm:$0xff]
      %v1452 = vld [vmem:[#allocation2 + $0x9] sm:$0xff]
      %v1453 = vld [vmem:[#allocation2 + $0x19] sm:$0xff]
      %v1454 = vld [vmem:[#allocation2 + $0x21] sm:$0xff]
      %v1455 = vld [vmem:[#allocation2 + $0x31] sm:$0xff]
      %v1456 = vld [vmem:[#allocation2 + $0x39] sm:$0xff]
      %v1457 = vld [vmem:[#allocation2 + $0x49] sm:$0xff]
      %v1458 = vld [vmem:[#allocation2 + $0x51] sm:$0xff]
      %v1459 = vld [vmem:[#allocation2 + $0x61] sm:$0xff]
      %v1460 = vld [vmem:[#allocation2 + $0x69] sm:$0xff]
      %v1461 = vld [vmem:[#allocation2 + $0x79] sm:$0xff]
      %v1462 = vld [vmem:[#allocation2 + $0x81] sm:$0xff]
      %v1463 = vld [vmem:[#allocation2 + $0x91] sm:$0xff]
      %v1464 = vld [vmem:[#allocation2 + $0x99] sm:$0xff]
      %v1465 = vld [vmem:[#allocation2 + $0xa9] sm:$0xff]
      %v1466 = vld [vmem:[#allocation2 + $0xb1] sm:$0xff]
      %v1467 = vld [vmem:[#allocation2 + $0xc1] sm:$0xff]
      %v1468 = vld [vmem:[#allocation2 + $0xc9] sm:$0xff]
      %v1469 = vld [vmem:[#allocation2 + $0xd9] sm:$0xff]
      %v1470 = vld [vmem:[#allocation2 + $0xe1] sm:$0xff]
      %v1471 = vld [vmem:[#allocation2 + $0xf1] sm:$0xff]
      %v1472 = vld [vmem:[#allocation2 + $0xf9] sm:$0xff]
      %v1473 = vld [vmem:[#allocation2 + $0x109] sm:$0xff]
      %v1474 = vld [vmem:[#allocation2 + $0x111] sm:$0xff]
      %v1475 = vld [vmem:[#allocation2 + $0x121] sm:$0xff]
      %v1476 = vld [vmem:[#allocation2 + $0x129] sm:$0xff]
      %v1477 = vld [vmem:[#allocation2 + $0x139] sm:$0xff]
      %v1478 = vld [vmem:[#allocation2 + $0x141] sm:$0xff]
      %v1479 = vld [vmem:[#allocation2 + $0x151] sm:$0xff]
      %v1480 = vld [vmem:[#allocation2 + $0x159] sm:$0xff]
      %v1481 = vld [vmem:[#allocation2 + $0x169] sm:$0xff]
      %v1482 = vld [vmem:[#allocation2 + $0x171] sm:$0xff]
      %v1483 = vld [vmem:[#allocation2 + $0x2] sm:$0xff]
      %v1484 = vld [vmem:[#allocation2 + $0xa] sm:$0xff]
      %v1485 = vld [vmem:[#allocation2 + $0x1a] sm:$0xff]
      %v1486 = vld [vmem:[#allocation2 + $0x22] sm:$0xff]
      %v1487 = vld [vmem:[#allocation2 + $0x32] sm:$0xff]
      %v1488 = vld [vmem:[#allocation2 + $0x3a] sm:$0xff]
      %v1489 = vld [vmem:[#allocation2 + $0x4a] sm:$0xff]
      %v1490 = vld [vmem:[#allocation2 + $0x52] sm:$0xff]
      %v1491 = vld [vmem:[#allocation2 + $0x62] sm:$0xff]
      %v1492 = vld [vmem:[#allocation2 + $0x6a] sm:$0xff]
      %v1493 = vld [vmem:[#allocation2 + $0x7a] sm:$0xff]
      %v1494 = vld [vmem:[#allocation2 + $0x82] sm:$0xff]
      %v1495 = vld [vmem:[#allocation2 + $0x92] sm:$0xff]
      %v1496 = vld [vmem:[#allocation2 + $0x9a] sm:$0xff]
      %v1497 = vld [vmem:[#allocation2 + $0xaa] sm:$0xff]
      %v1498 = vld [vmem:[#allocation2 + $0xb2] sm:$0xff]
      %v1499 = vld [vmem:[#allocation2 + $0xc2] sm:$0xff]
      %v1500 = vld [vmem:[#allocation2 + $0xca] sm:$0xff]
      %v1501 = vld [vmem:[#allocation2 + $0xda] sm:$0xff]
      %v1502 = vld [vmem:[#allocation2 + $0xe2] sm:$0xff]
      %v1503 = vld [vmem:[#allocation2 + $0xf2] sm:$0xff]
      %v1504 = vld [vmem:[#allocation2 + $0xfa] sm:$0xff]
      %v1505 = vld [vmem:[#allocation2 + $0x10a] sm:$0xff]
      %v1506 = vld [vmem:[#allocation2 + $0x112] sm:$0xff]
      %v1507 = vld [vmem:[#allocation2 + $0x122] sm:$0xff]
      %v1508 = vld [vmem:[#allocation2 + $0x12a] sm:$0xff]
      %v1509 = vld [vmem:[#allocation2 + $0x13a] sm:$0xff]
      %v1510 = vld [vmem:[#allocation2 + $0x142] sm:$0xff]
      %v1511 = vld [vmem:[#allocation2 + $0x152] sm:$0xff]
      %v1512 = vld [vmem:[#allocation2 + $0x15a] sm:$0xff]
      %v1513 = vld [vmem:[#allocation2 + $0x16a] sm:$0xff]
      %v1514 = vld [vmem:[#allocation2 + $0x172] sm:$0xff]
      %v1515 = vld [vmem:[%s542 + $0x1] sm:$0xff]
      %v1516 = vld [vmem:[%s542 + $0x9] sm:$0xff]
      %v1517 = vld [vmem:[%s542 + $0x19] sm:$0xff]
      %v1518 = vld [vmem:[%s542 + $0x21] sm:$0xff]
      %v1519 = vld [vmem:[%s542 + $0x31] sm:$0xff]
      %v1520 = vld [vmem:[%s542 + $0x39] sm:$0xff]
      %v1521 = vld [vmem:[%s542 + $0x49] sm:$0xff]
      %v1522 = vld [vmem:[%s542 + $0x51] sm:$0xff]
      %v1523 = vld [vmem:[%s542 + $0x61] sm:$0xff]
      %v1524 = vld [vmem:[%s542 + $0x69] sm:$0xff]
      %v1525 = vld [vmem:[%s542 + $0x79] sm:$0xff]
      %v1526 = vld [vmem:[%s542 + $0x81] sm:$0xff]
      %v1527 = vld [vmem:[%s542 + $0x91] sm:$0xff]
      %v1528 = vld [vmem:[%s542 + $0x99] sm:$0xff]
      %v1529 = vld [vmem:[%s542 + $0xa9] sm:$0xff]
      %v1530 = vld [vmem:[%s542 + $0xb1] sm:$0xff]
      %v1531 = vld [vmem:[%s542 + $0xc1] sm:$0xff]
      %v1532 = vld [vmem:[%s542 + $0xc9] sm:$0xff]
      %v1533 = vld [vmem:[%s542 + $0xd9] sm:$0xff]
      %v1534 = vld [vmem:[%s542 + $0xe1] sm:$0xff]
      %v1535 = vld [vmem:[%s542 + $0xf1] sm:$0xff]
      %v1536 = vld [vmem:[%s542 + $0xf9] sm:$0xff]
      %v1537 = vld [vmem:[%s542 + $0x109] sm:$0xff]
      %v1538 = vld [vmem:[%s542 + $0x111] sm:$0xff]
      %v1539 = vld [vmem:[%s542 + $0x121] sm:$0xff]
      %v1540 = vld [vmem:[%s542 + $0x129] sm:$0xff]
      %v1541 = vld [vmem:[%s542 + $0x139] sm:$0xff]
      %v1542 = vld [vmem:[%s542 + $0x141] sm:$0xff]
      %v1543 = vld [vmem:[%s542 + $0x151] sm:$0xff]
      %v1544 = vld [vmem:[%s542 + $0x159] sm:$0xff]
      %v1545 = vld [vmem:[%s542 + $0x169] sm:$0xff]
      %v1546 = vld [vmem:[%s542 + $0x171] sm:$0xff]
      %v1547 = vld [vmem:[%s542 + $0x2] sm:$0xff]
      %v1548 = vld [vmem:[%s542 + $0xa] sm:$0xff]
      %v1549 = vld [vmem:[%s542 + $0x1a] sm:$0xff]
      %v1550 = vld [vmem:[%s542 + $0x22] sm:$0xff]
      %v1551 = vld [vmem:[%s542 + $0x32] sm:$0xff]
      %v1552 = vld [vmem:[%s542 + $0x3a] sm:$0xff]
      %v1553 = vld [vmem:[%s542 + $0x4a] sm:$0xff]
      %v1554 = vld [vmem:[%s542 + $0x52] sm:$0xff]
      %v1555 = vld [vmem:[%s542 + $0x62] sm:$0xff]
      %v1556 = vld [vmem:[%s542 + $0x6a] sm:$0xff]
      %v1557 = vld [vmem:[%s542 + $0x7a] sm:$0xff]
      %v1558 = vld [vmem:[%s542 + $0x82] sm:$0xff]
      %v1559 = vld [vmem:[%s542 + $0x92] sm:$0xff]
      %v1560 = vld [vmem:[%s542 + $0x9a] sm:$0xff]
      %v1561 = vld [vmem:[%s542 + $0xaa] sm:$0xff]
      %v1562 = vld [vmem:[%s542 + $0xb2] sm:$0xff]
      %v1563 = vld [vmem:[%s542 + $0xc2] sm:$0xff]
      %v1564 = vld [vmem:[%s542 + $0xca] sm:$0xff]
      %v1565 = vld [vmem:[%s542 + $0xda] sm:$0xff]
      %v1566 = vld [vmem:[%s542 + $0xe2] sm:$0xff]
      %v1567 = vld [vmem:[%s542 + $0xf2] sm:$0xff]
      %v1568 = vld [vmem:[%s542 + $0xfa] sm:$0xff]
      %v1569 = vld [vmem:[%s542 + $0x10a] sm:$0xff]
      %v1570 = vld [vmem:[%s542 + $0x112] sm:$0xff]
      %v1571 = vld [vmem:[%s542 + $0x122] sm:$0xff]
      %v1572 = vld [vmem:[%s542 + $0x12a] sm:$0xff]
      %v1573 = vld [vmem:[%s542 + $0x13a] sm:$0xff]
      %v1574 = vld [vmem:[%s542 + $0x142] sm:$0xff]
      %v1575 = vld [vmem:[%s542 + $0x152] sm:$0xff]
      %v1576 = vld [vmem:[%s542 + $0x15a] sm:$0xff]
      %v1577 = vld [vmem:[%s542 + $0x16a] sm:$0xff]
      %v1578 = vld [vmem:[%s542 + $0x172] sm:$0xff]
      %1611 = vrot.lane.b32.xlu0 %v1483, 4
      %v1612 = vpop.permute.xlu0 %1611
      %1613 = vrot.lane.b32.xlu0 %v1484, 4
      %v1614 = vpop.permute.xlu0 %1613
      %1615 = vrot.lane.b32.xlu0 %v1485, 4
      %v1616 = vpop.permute.xlu0 %1615
      %1617 = vrot.lane.b32.xlu0 %v1486, 4
      %v1618 = vpop.permute.xlu0 %1617
      %1619 = vrot.lane.b32.xlu0 %v1487, 4
      %v1620 = vpop.permute.xlu0 %1619
      %1621 = vrot.lane.b32.xlu0 %v1488, 4
      %v1622 = vpop.permute.xlu0 %1621
      %1623 = vrot.lane.b32.xlu0 %v1489, 4
      %v1624 = vpop.permute.xlu0 %1623
      %1625 = vrot.lane.b32.xlu0 %v1490, 4
      %v1626 = vpop.permute.xlu0 %1625
      %1627 = vrot.lane.b32.xlu0 %v1491, 4
      %v1628 = vpop.permute.xlu0 %1627
      %1629 = vrot.lane.b32.xlu0 %v1492, 4
      %v1630 = vpop.permute.xlu0 %1629
      %1631 = vrot.lane.b32.xlu0 %v1493, 4
      %v1632 = vpop.permute.xlu0 %1631
      %1633 = vrot.lane.b32.xlu0 %v1494, 4
      %v1634 = vpop.permute.xlu0 %1633
      %1635 = vrot.lane.b32.xlu0 %v1495, 4
      %v1636 = vpop.permute.xlu0 %1635
      %1637 = vrot.lane.b32.xlu0 %v1496, 4
      %v1638 = vpop.permute.xlu0 %1637
      %1639 = vrot.lane.b32.xlu0 %v1497, 4
      %v1640 = vpop.permute.xlu0 %1639
      %1641 = vrot.lane.b32.xlu0 %v1498, 4
      %v1642 = vpop.permute.xlu0 %1641
      %1643 = vrot.lane.b32.xlu0 %v1499, 4
      %v1644 = vpop.permute.xlu0 %1643
      %1645 = vrot.lane.b32.xlu0 %v1500, 4
      %v1646 = vpop.permute.xlu0 %1645
      %1647 = vrot.lane.b32.xlu0 %v1501, 4
      %v1648 = vpop.permute.xlu0 %1647
      %1649 = vrot.lane.b32.xlu0 %v1502, 4
      %v1650 = vpop.permute.xlu0 %1649
      %1651 = vrot.lane.b32.xlu0 %v1503, 4
      %v1652 = vpop.permute.xlu0 %1651
      %1653 = vrot.lane.b32.xlu0 %v1504, 4
      %v1654 = vpop.permute.xlu0 %1653
      %1655 = vrot.lane.b32.xlu0 %v1505, 4
      %v1656 = vpop.permute.xlu0 %1655
      %1657 = vrot.lane.b32.xlu0 %v1506, 4
      %v1658 = vpop.permute.xlu0 %1657
      %1659 = vrot.lane.b32.xlu0 %v1507, 4
      %v1660 = vpop.permute.xlu0 %1659
      %1661 = vrot.lane.b32.xlu0 %v1508, 4
      %v1662 = vpop.permute.xlu0 %1661
      %1663 = vrot.lane.b32.xlu0 %v1509, 4
      %v1664 = vpop.permute.xlu0 %1663
      %1665 = vrot.lane.b32.xlu0 %v1510, 4
      %v1666 = vpop.permute.xlu0 %1665
      %1667 = vrot.lane.b32.xlu0 %v1511, 4
      %v1668 = vpop.permute.xlu0 %1667
      %1669 = vrot.lane.b32.xlu0 %v1512, 4
      %v1670 = vpop.permute.xlu0 %1669
      %1671 = vrot.lane.b32.xlu0 %v1513, 4
      %v1672 = vpop.permute.xlu0 %1671
      %1673 = vrot.lane.b32.xlu0 %v1514, 4
      %v1674 = vpop.permute.xlu0 %1673
      %1739 = vrot.lane.b32.xlu0 %v1515, 8
      %v1740 = vpop.permute.xlu0 %1739
      %1741 = vrot.lane.b32.xlu0 %v1516, 8
      %v1742 = vpop.permute.xlu0 %1741
      %1743 = vrot.lane.b32.xlu0 %v1517, 8
      %v1744 = vpop.permute.xlu0 %1743
      %1745 = vrot.lane.b32.xlu0 %v1518, 8
      %v1746 = vpop.permute.xlu0 %1745
      %1747 = vrot.lane.b32.xlu0 %v1519, 8
      %v1748 = vpop.permute.xlu0 %1747
      %1749 = vrot.lane.b32.xlu0 %v1520, 8
      %v1750 = vpop.permute.xlu0 %1749
      %1751 = vrot.lane.b32.xlu0 %v1521, 8
      %v1752 = vpop.permute.xlu0 %1751
      %1753 = vrot.lane.b32.xlu0 %v1522, 8
      %v1754 = vpop.permute.xlu0 %1753
      %1755 = vrot.lane.b32.xlu0 %v1523, 8
      %v1756 = vpop.permute.xlu0 %1755
      %1757 = vrot.lane.b32.xlu0 %v1524, 8
      %v1758 = vpop.permute.xlu0 %1757
      %1759 = vrot.lane.b32.xlu0 %v1525, 8
      %v1760 = vpop.permute.xlu0 %1759
      %1761 = vrot.lane.b32.xlu0 %v1526, 8
      %v1762 = vpop.permute.xlu0 %1761
      %1763 = vrot.lane.b32.xlu0 %v1527, 8
      %v1764 = vpop.permute.xlu0 %1763
      %1765 = vrot.lane.b32.xlu0 %v1528, 8
      %v1766 = vpop.permute.xlu0 %1765
      %1767 = vrot.lane.b32.xlu0 %v1529, 8
      %v1768 = vpop.permute.xlu0 %1767
      %1769 = vrot.lane.b32.xlu0 %v1530, 8
      %v1770 = vpop.permute.xlu0 %1769
      %1771 = vrot.lane.b32.xlu0 %v1531, 8
      %v1772 = vpop.permute.xlu0 %1771
      %1773 = vrot.lane.b32.xlu0 %v1532, 8
      %v1774 = vpop.permute.xlu0 %1773
      %1775 = vrot.lane.b32.xlu0 %v1533, 8
      %v1776 = vpop.permute.xlu0 %1775
      %1777 = vrot.lane.b32.xlu0 %v1534, 8
      %v1778 = vpop.permute.xlu0 %1777
      %1779 = vrot.lane.b32.xlu0 %v1535, 8
      %v1780 = vpop.permute.xlu0 %1779
      %1781 = vrot.lane.b32.xlu0 %v1536, 8
      %v1782 = vpop.permute.xlu0 %1781
      %1783 = vrot.lane.b32.xlu0 %v1537, 8
      %v1784 = vpop.permute.xlu0 %1783
      %1785 = vrot.lane.b32.xlu0 %v1538, 8
      %v1786 = vpop.permute.xlu0 %1785
      %1787 = vrot.lane.b32.xlu0 %v1539, 8
      %v1788 = vpop.permute.xlu0 %1787
      %1789 = vrot.lane.b32.xlu0 %v1540, 8
      %v1790 = vpop.permute.xlu0 %1789
      %1791 = vrot.lane.b32.xlu0 %v1541, 8
      %v1792 = vpop.permute.xlu0 %1791
      %1793 = vrot.lane.b32.xlu0 %v1542, 8
      %v1794 = vpop.permute.xlu0 %1793
      %1795 = vrot.lane.b32.xlu0 %v1543, 8
      %v1796 = vpop.permute.xlu0 %1795
      %1797 = vrot.lane.b32.xlu0 %v1544, 8
      %v1798 = vpop.permute.xlu0 %1797
      %1799 = vrot.lane.b32.xlu0 %v1545, 8
      %v1800 = vpop.permute.xlu0 %1799
      %1801 = vrot.lane.b32.xlu0 %v1546, 8
      %v1802 = vpop.permute.xlu0 %1801
      %1867 = vrot.lane.b32.xlu0 %v1547, 12
      %v1868 = vpop.permute.xlu0 %1867
      %1869 = vrot.lane.b32.xlu0 %v1548, 12
      %v1870 = vpop.permute.xlu0 %1869
      %1871 = vrot.lane.b32.xlu0 %v1549, 12
      %v1872 = vpop.permute.xlu0 %1871
      %1873 = vrot.lane.b32.xlu0 %v1550, 12
      %v1874 = vpop.permute.xlu0 %1873
      %1875 = vrot.lane.b32.xlu0 %v1551, 12
      %v1876 = vpop.permute.xlu0 %1875
      %1877 = vrot.lane.b32.xlu0 %v1552, 12
      %v1878 = vpop.permute.xlu0 %1877
      %1879 = vrot.lane.b32.xlu0 %v1553, 12
      %v1880 = vpop.permute.xlu0 %1879
      %1881 = vrot.lane.b32.xlu0 %v1554, 12
      %v1882 = vpop.permute.xlu0 %1881
      %1883 = vrot.lane.b32.xlu0 %v1555, 12
      %v1884 = vpop.permute.xlu0 %1883
      %1885 = vrot.lane.b32.xlu0 %v1556, 12
      %v1886 = vpop.permute.xlu0 %1885
      %1887 = vrot.lane.b32.xlu0 %v1557, 12
      %v1888 = vpop.permute.xlu0 %1887
      %1889 = vrot.lane.b32.xlu0 %v1558, 12
      %v1890 = vpop.permute.xlu0 %1889
      %1891 = vrot.lane.b32.xlu0 %v1559, 12
      %v1892 = vpop.permute.xlu0 %1891
      %1893 = vrot.lane.b32.xlu0 %v1560, 12
      %v1894 = vpop.permute.xlu0 %1893
      %1895 = vrot.lane.b32.xlu0 %v1561, 12
      %v1896 = vpop.permute.xlu0 %1895
      %1897 = vrot.lane.b32.xlu0 %v1562, 12
      %v1898 = vpop.permute.xlu0 %1897
      %1899 = vrot.lane.b32.xlu0 %v1563, 12
      %v1900 = vpop.permute.xlu0 %1899
      %1901 = vrot.lane.b32.xlu0 %v1564, 12
      %v1902 = vpop.permute.xlu0 %1901
      %1903 = vrot.lane.b32.xlu0 %v1565, 12
      %v1904 = vpop.permute.xlu0 %1903
      %1905 = vrot.lane.b32.xlu0 %v1566, 12
      %v1906 = vpop.permute.xlu0 %1905
      %1907 = vrot.lane.b32.xlu0 %v1567, 12
      %v1908 = vpop.permute.xlu0 %1907
      %1909 = vrot.lane.b32.xlu0 %v1568, 12
      %v1910 = vpop.permute.xlu0 %1909
      %1911 = vrot.lane.b32.xlu0 %v1569, 12
      %v1912 = vpop.permute.xlu0 %1911
      %1913 = vrot.lane.b32.xlu0 %v1570, 12
      %v1914 = vpop.permute.xlu0 %1913
      %1915 = vrot.lane.b32.xlu0 %v1571, 12
      %v1916 = vpop.permute.xlu0 %1915
      %1917 = vrot.lane.b32.xlu0 %v1572, 12
      %v1918 = vpop.permute.xlu0 %1917
      %1919 = vrot.lane.b32.xlu0 %v1573, 12
      %v1920 = vpop.permute.xlu0 %1919
      %1921 = vrot.lane.b32.xlu0 %v1574, 12
      %v1922 = vpop.permute.xlu0 %1921
      %1923 = vrot.lane.b32.xlu0 %v1575, 12
      %v1924 = vpop.permute.xlu0 %1923
      %1925 = vrot.lane.b32.xlu0 %v1576, 12
      %v1926 = vpop.permute.xlu0 %1925
      %1927 = vrot.lane.b32.xlu0 %v1577, 12
      %v1928 = vpop.permute.xlu0 %1927
      %1929 = vrot.lane.b32.xlu0 %v1578, 12
      %v1930 = vpop.permute.xlu0 %1929
      %v1963 = vsel %vm414, %v1451, %v1612
      %v1964 = vsel %vm414, %v1452, %v1614
      %v1965 = vsel %vm414, %v1453, %v1616
      %v1966 = vsel %vm414, %v1454, %v1618
      %v1967 = vsel %vm414, %v1455, %v1620
      %v1968 = vsel %vm414, %v1456, %v1622
      %v1969 = vsel %vm414, %v1457, %v1624
      %v1970 = vsel %vm414, %v1458, %v1626
      %v1971 = vsel %vm414, %v1459, %v1628
      %v1972 = vsel %vm414, %v1460, %v1630
      %v1973 = vsel %vm414, %v1461, %v1632
      %v1974 = vsel %vm414, %v1462, %v1634
      %v1975 = vsel %vm414, %v1463, %v1636
      %v1976 = vsel %vm414, %v1464, %v1638
      %v1977 = vsel %vm414, %v1465, %v1640
      %v1978 = vsel %vm414, %v1466, %v1642
      %v1979 = vsel %vm414, %v1467, %v1644
      %v1980 = vsel %vm414, %v1468, %v1646
      %v1981 = vsel %vm414, %v1469, %v1648
      %v1982 = vsel %vm414, %v1470, %v1650
      %v1983 = vsel %vm414, %v1471, %v1652
      %v1984 = vsel %vm414, %v1472, %v1654
      %v1985 = vsel %vm414, %v1473, %v1656
      %v1986 = vsel %vm414, %v1474, %v1658
      %v1987 = vsel %vm414, %v1475, %v1660
      %v1988 = vsel %vm414, %v1476, %v1662
      %v1989 = vsel %vm414, %v1477, %v1664
      %v1990 = vsel %vm414, %v1478, %v1666
      %v1991 = vsel %vm414, %v1479, %v1668
      %v1992 = vsel %vm414, %v1480, %v1670
      %v1993 = vsel %vm414, %v1481, %v1672
      %v1994 = vsel %vm414, %v1482, %v1674
      %v1995 = vsel %vm1023, %v1963, %v1740
      %v1996 = vsel %vm1023, %v1964, %v1742
      %v1997 = vsel %vm1023, %v1965, %v1744
      %v1998 = vsel %vm1023, %v1966, %v1746
      %v1999 = vsel %vm1023, %v1967, %v1748
      %v2000 = vsel %vm1023, %v1968, %v1750
      %v2001 = vsel %vm1023, %v1969, %v1752
      %v2002 = vsel %vm1023, %v1970, %v1754
      %v2003 = vsel %vm1023, %v1971, %v1756
      %v2004 = vsel %vm1023, %v1972, %v1758
      %v2005 = vsel %vm1023, %v1973, %v1760
      %v2006 = vsel %vm1023, %v1974, %v1762
      %v2007 = vsel %vm1023, %v1975, %v1764
      %v2008 = vsel %vm1023, %v1976, %v1766
      %v2009 = vsel %vm1023, %v1977, %v1768
      %v2010 = vsel %vm1023, %v1978, %v1770
      %v2011 = vsel %vm1023, %v1979, %v1772
      %v2012 = vsel %vm1023, %v1980, %v1774
      %v2013 = vsel %vm1023, %v1981, %v1776
      %v2014 = vsel %vm1023, %v1982, %v1778
      %v2015 = vsel %vm1023, %v1983, %v1780
      %v2016 = vsel %vm1023, %v1984, %v1782
      %v2017 = vsel %vm1023, %v1985, %v1784
      %v2018 = vsel %vm1023, %v1986, %v1786
      %v2019 = vsel %vm1023, %v1987, %v1788
      %v2020 = vsel %vm1023, %v1988, %v1790
      %v2021 = vsel %vm1023, %v1989, %v1792
      %v2022 = vsel %vm1023, %v1990, %v1794
      %v2023 = vsel %vm1023, %v1991, %v1796
      %v2024 = vsel %vm1023, %v1992, %v1798
      %v2025 = vsel %vm1023, %v1993, %v1800
      %v2026 = vsel %vm1023, %v1994, %v1802
      %v2027 = vsel %vm1056, %v1995, %v1868
      %v2028 = vsel %vm1056, %v1996, %v1870
      %v2029 = vsel %vm1056, %v1997, %v1872
      %v2030 = vsel %vm1056, %v1998, %v1874
      %v2031 = vsel %vm1056, %v1999, %v1876
      %v2032 = vsel %vm1056, %v2000, %v1878
      %v2033 = vsel %vm1056, %v2001, %v1880
      %v2034 = vsel %vm1056, %v2002, %v1882
      %v2035 = vsel %vm1056, %v2003, %v1884
      %v2036 = vsel %vm1056, %v2004, %v1886
      %v2037 = vsel %vm1056, %v2005, %v1888
      %v2038 = vsel %vm1056, %v2006, %v1890
      %v2039 = vsel %vm1056, %v2007, %v1892
      %v2040 = vsel %vm1056, %v2008, %v1894
      %v2041 = vsel %vm1056, %v2009, %v1896
      %v2042 = vsel %vm1056, %v2010, %v1898
      %v2043 = vsel %vm1056, %v2011, %v1900
      %v2044 = vsel %vm1056, %v2012, %v1902
      %v2045 = vsel %vm1056, %v2013, %v1904
      %v2046 = vsel %vm1056, %v2014, %v1906
      %v2047 = vsel %vm1056, %v2015, %v1908
      %v2048 = vsel %vm1056, %v2016, %v1910
      %v2049 = vsel %vm1056, %v2017, %v1912
      %v2050 = vsel %vm1056, %v2018, %v1914
      %v2051 = vsel %vm1056, %v2019, %v1916
      %v2052 = vsel %vm1056, %v2020, %v1918
      %v2053 = vsel %vm1056, %v2021, %v1920
      %v2054 = vsel %vm1056, %v2022, %v1922
      %v2055 = vsel %vm1056, %v2023, %v1924
      %v2056 = vsel %vm1056, %v2024, %v1926
      %v2057 = vsel %vm1056, %v2025, %v1928
      %v2058 = vsel %vm1056, %v2026, %v1930
      %s2059 = scalar_lea.vmem %s348, 16
      %v2060 = vld [vmem:[%s2059] sm:$0xff]
      %v2061 = vld [vmem:[%s2059 + $0x8] sm:$0xff]
      %v2063 = vsel %vm1097, %v2027, 0
      %v2066 = vsel %vm1097, %v2028, 0
      %v2069 = vsel %vm1097, %v2029, 0
      %v2072 = vsel %vm1097, %v2030, 0
      %v2075 = vsel %vm1097, %v2031, 0
      %v2078 = vsel %vm1097, %v2032, 0
      %v2081 = vsel %vm1097, %v2033, 0
      %v2084 = vsel %vm1097, %v2034, 0
      %v2087 = vsel %vm1097, %v2035, 0
      %v2090 = vsel %vm1097, %v2036, 0
      %v2093 = vsel %vm1097, %v2037, 0
      %v2096 = vsel %vm1097, %v2038, 0
      %v2099 = vsel %vm1097, %v2039, 0
      %v2102 = vsel %vm1097, %v2040, 0
      %v2105 = vsel %vm1097, %v2041, 0
      %v2108 = vsel %vm1097, %v2042, 0
      %v2111 = vsel %vm1097, %v2043, 0
      %v2114 = vsel %vm1097, %v2044, 0
      %v2117 = vsel %vm1097, %v2045, 0
      %v2120 = vsel %vm1097, %v2046, 0
      %v2123 = vsel %vm1097, %v2047, 0
      %v2126 = vsel %vm1097, %v2048, 0
      %v2129 = vsel %vm1097, %v2049, 0
      %v2132 = vsel %vm1097, %v2050, 0
      %v2135 = vsel %vm1097, %v2051, 0
      %v2138 = vsel %vm1097, %v2052, 0
      %v2141 = vsel %vm1097, %v2053, 0
      %v2144 = vsel %vm1097, %v2054, 0
      %v2147 = vsel %vm1097, %v2055, 0
      %v2150 = vsel %vm1097, %v2056, 0
      %v2153 = vsel %vm1097, %v2057, 0
      %v2156 = vsel %vm1097, %v2058, 0
      %2158 = vmatprep.subr.mxu0 0.0
      %2159 = vmatpush1.msra.mxu0 %v2060
      %2160 = vmatprep.subr.mxu0 0.0
      %2161 = vmatpush1.msra.mxu0 %v2061
      %2162 = vmatprep.subr.mxu0 0.0
      %2163 = vmatpush1.msra.mxu0 0.0
      %2164 = vmatprep.subr.mxu0 0.0
      %2165 = vmatpush1.msra.mxu0 0.0
      %2166 = vmatprep.subr.mxu0 0.0
      %2167 = vmatpush1.msra.mxu0 0.0
      %2168 = vmatprep.subr.mxu0 0.0
      %2169 = vmatpush1.msra.mxu0 0.0
      %2170 = vmatprep.subr.mxu0 0.0
      %2171 = vmatpush1.msra.mxu0 0.0
      %2172 = vmatprep.subr.mxu0 0.0
      %2173 = vmatpush1.msra.mxu0 0.0
      %2174 = vmatprep.subr.mxu0 0.0
      %2175 = vmatpush1.msra.mxu0 0.0
      %2176 = vmatprep.subr.mxu0 0.0
      %2177 = vmatpush1.msra.mxu0 0.0
      %2178 = vmatprep.subr.mxu0 0.0
      %2179 = vmatpush1.msra.mxu0 0.0
      %2180 = vmatprep.subr.mxu0 0.0
      %2181 = vmatpush1.msra.mxu0 0.0
      %2182 = vmatprep.subr.mxu0 0.0
      %2183 = vmatpush1.msra.mxu0 0.0
      %2184 = vmatprep.subr.mxu0 0.0
      %2185 = vmatpush1.msra.mxu0 0.0
      %2186 = vmatprep.subr.mxu0 0.0
      %2187 = vmatpush1.msra.mxu0 0.0
      %2188 = vmatprep.subr.mxu0 0.0
      %2189 = vmatpush1.msra.mxu0 0.0
      %2190 = vmatprep.subr.mxu0 0.0
      %2191 = vmatpush1.msra.mxu0 0.0
      %2192 = vmatprep.subr.mxu0 0.0
      %2193 = vmatpush1.msra.mxu0 0.0
      %2194 = vmatprep.subr.mxu0 0.0
      %2195 = vmatpush1.msra.mxu0 0.0
      %2196 = vmatprep.subr.mxu0 0.0
      %2197 = vmatpush1.msra.mxu0 0.0
      %2198 = vmatprep.subr.mxu0 0.0
      %2199 = vmatpush1.msra.mxu0 0.0
      %2200 = vmatprep.subr.mxu0 0.0
      %2201 = vmatpush1.msra.mxu0 0.0
      %2202 = vmatprep.subr.mxu0 0.0
      %2203 = vmatpush1.msra.mxu0 0.0
      %2204 = vmatprep.subr.mxu0 0.0
      %2205 = vmatpush1.msra.mxu0 0.0
      %2206 = vmatprep.subr.mxu0 0.0
      %2207 = vmatpush1.msra.mxu0 0.0
      %2208 = vmatprep.subr.mxu0 0.0
      %2209 = vmatpush1.msra.mxu0 0.0
      %2210 = vmatprep.subr.mxu0 0.0
      %2211 = vmatpush1.msra.mxu0 0.0
      %2212 = vmatprep.subr.mxu0 0.0
      %2213 = vmatpush1.msra.mxu0 0.0
      %2214 = vmatprep.subr.mxu0 0.0
      %2215 = vmatpush1.msra.mxu0 0.0
      %2216 = vmatprep.subr.mxu0 0.0
      %2217 = vmatpush1.msra.mxu0 0.0
      %2218 = vmatprep.subr.mxu0 0.0
      %2219 = vmatpush1.msra.mxu0 0.0
      %2220 = vmatprep.subr.mxu0 0.0
      %2221 = vmatpush1.msra.mxu0 0.0
      %2222 = vmatprep.mubr.f32.mxu0 0.0
      %2223 = vmatmul.mubr.f32.gmra.mrb[0].mxu0 %v2063
      %v2224 = vpop.f32.mrb[0].mxu0
      %v2225 = vadd.f32 %v1095, %v2224
      %v2226 = vpop.f32.mrb[0].mxu0
      %2227 = vmatprep.mubr.f32.mxu0 0.0
      %2228 = vmatmul.mubr.f32.gmra.mrb[0].mxu0 %v2066
      %v2229 = vpop.f32.mrb[0].mxu0
      %v2230 = vadd.f32 %v1095, %v2229
      %v2231 = vpop.f32.mrb[0].mxu0
      %2232 = vmatprep.mubr.f32.mxu0 0.0
      %2233 = vmatmul.mubr.f32.gmra.mrb[0].mxu0 %v2069
      %v2234 = vpop.f32.mrb[0].mxu0
      %v2235 = vadd.f32 %v1095, %v2234
      %v2236 = vpop.f32.mrb[0].mxu0
      %2237 = vmatprep.mubr.f32.mxu0 0.0
      %2238 = vmatmul.mubr.f32.gmra.mrb[0].mxu0 %v2072
      %v2239 = vpop.f32.mrb[0].mxu0
      %v2240 = vadd.f32 %v1095, %v2239
      %v2241 = vpop.f32.mrb[0].mxu0
      %2242 = vmatprep.mubr.f32.mxu0 0.0
      %2243 = vmatmul.mubr.f32.gmra.mrb[0].mxu0 %v2075
      %v2244 = vpop.f32.mrb[0].mxu0
      %v2245 = vadd.f32 %v1095, %v2244
      %v2246 = vpop.f32.mrb[0].mxu0
      %2247 = vmatprep.mubr.f32.mxu0 0.0
      %2248 = vmatmul.mubr.f32.gmra.mrb[0].mxu0 %v2078
      %v2249 = vpop.f32.mrb[0].mxu0
      %v2250 = vadd.f32 %v1095, %v2249
      %v2251 = vpop.f32.mrb[0].mxu0
      %2252 = vmatprep.mubr.f32.mxu0 0.0
      %2253 = vmatmul.mubr.f32.gmra.mrb[0].mxu0 %v2081
      %v2254 = vpop.f32.mrb[0].mxu0
      %v2255 = vadd.f32 %v1095, %v2254
      %v2256 = vpop.f32.mrb[0].mxu0
      %2257 = vmatprep.mubr.f32.mxu0 0.0
      %2258 = vmatmul.mubr.f32.gmra.mrb[0].mxu0 %v2084
      %v2259 = vpop.f32.mrb[0].mxu0
      %v2260 = vadd.f32 %v1095, %v2259
      %v2261 = vpop.f32.mrb[0].mxu0
      %2262 = vmatprep.mubr.f32.mxu0 0.0
      %2263 = vmatmul.mubr.f32.gmra.mrb[0].mxu0 %v2087
      %v2264 = vpop.f32.mrb[0].mxu0
      %v2265 = vadd.f32 %v1095, %v2264
      %v2266 = vpop.f32.mrb[0].mxu0
      %2267 = vmatprep.mubr.f32.mxu0 0.0
      %2268 = vmatmul.mubr.f32.gmra.mrb[0].mxu0 %v2090
      %v2269 = vpop.f32.mrb[0].mxu0
      %v2270 = vadd.f32 %v1095, %v2269
      %v2271 = vpop.f32.mrb[0].mxu0
      %2272 = vmatprep.mubr.f32.mxu0 0.0
      %2273 = vmatmul.mubr.f32.gmra.mrb[0].mxu0 %v2093
      %v2274 = vpop.f32.mrb[0].mxu0
      %v2275 = vadd.f32 %v1095, %v2274
      %v2276 = vpop.f32.mrb[0].mxu0
      %2277 = vmatprep.mubr.f32.mxu0 0.0
      %2278 = vmatmul.mubr.f32.gmra.mrb[0].mxu0 %v2096
      %v2279 = vpop.f32.mrb[0].mxu0
      %v2280 = vadd.f32 %v1095, %v2279
      %v2281 = vpop.f32.mrb[0].mxu0
      %2282 = vmatprep.mubr.f32.mxu0 0.0
      %2283 = vmatmul.mubr.f32.gmra.mrb[0].mxu0 %v2099
      %v2284 = vpop.f32.mrb[0].mxu0
      %v2285 = vadd.f32 %v1095, %v2284
      %v2286 = vpop.f32.mrb[0].mxu0
      %2287 = vmatprep.mubr.f32.mxu0 0.0
      %2288 = vmatmul.mubr.f32.gmra.mrb[0].mxu0 %v2102
      %v2289 = vpop.f32.mrb[0].mxu0
      %v2290 = vadd.f32 %v1095, %v2289
      %v2291 = vpop.f32.mrb[0].mxu0
      %2292 = vmatprep.mubr.f32.mxu0 0.0
      %2293 = vmatmul.mubr.f32.gmra.mrb[0].mxu0 %v2105
      %v2294 = vpop.f32.mrb[0].mxu0
      %v2295 = vadd.f32 %v1095, %v2294
      %v2296 = vpop.f32.mrb[0].mxu0
      %2297 = vmatprep.mubr.f32.mxu0 0.0
      %2298 = vmatmul.mubr.f32.gmra.mrb[0].mxu0 %v2108
      %v2299 = vpop.f32.mrb[0].mxu0
      %v2300 = vadd.f32 %v1095, %v2299
      %v2301 = vpop.f32.mrb[0].mxu0
      %2302 = vmatprep.mubr.f32.mxu0 0.0
      %2303 = vmatmul.mubr.f32.gmra.mrb[0].mxu0 %v2111
      %v2304 = vpop.f32.mrb[0].mxu0
      %v2305 = vadd.f32 %v1095, %v2304
      %v2306 = vpop.f32.mrb[0].mxu0
      %2307 = vmatprep.mubr.f32.mxu0 0.0
      %2308 = vmatmul.mubr.f32.gmra.mrb[0].mxu0 %v2114
      %v2309 = vpop.f32.mrb[0].mxu0
      %v2310 = vadd.f32 %v1095, %v2309
      %v2311 = vpop.f32.mrb[0].mxu0
      %2312 = vmatprep.mubr.f32.mxu0 0.0
      %2313 = vmatmul.mubr.f32.gmra.mrb[0].mxu0 %v2117
      %v2314 = vpop.f32.mrb[0].mxu0
      %v2315 = vadd.f32 %v1095, %v2314
      %v2316 = vpop.f32.mrb[0].mxu0
      %2317 = vmatprep.mubr.f32.mxu0 0.0
      %2318 = vmatmul.mubr.f32.gmra.mrb[0].mxu0 %v2120
      %v2319 = vpop.f32.mrb[0].mxu0
      %v2320 = vadd.f32 %v1095, %v2319
      %v2321 = vpop.f32.mrb[0].mxu0
      %2322 = vmatprep.mubr.f32.mxu0 0.0
      %2323 = vmatmul.mubr.f32.gmra.mrb[0].mxu0 %v2123
      %v2324 = vpop.f32.mrb[0].mxu0
      %v2325 = vadd.f32 %v1095, %v2324
      %v2326 = vpop.f32.mrb[0].mxu0
      %2327 = vmatprep.mubr.f32.mxu0 0.0
      %2328 = vmatmul.mubr.f32.gmra.mrb[0].mxu0 %v2126
      %v2329 = vpop.f32.mrb[0].mxu0
      %v2330 = vadd.f32 %v1095, %v2329
      %v2331 = vpop.f32.mrb[0].mxu0
      %2332 = vmatprep.mubr.f32.mxu0 0.0
      %2333 = vmatmul.mubr.f32.gmra.mrb[0].mxu0 %v2129
      %v2334 = vpop.f32.mrb[0].mxu0
      %v2335 = vadd.f32 %v1095, %v2334
      %v2336 = vpop.f32.mrb[0].mxu0
      %2337 = vmatprep.mubr.f32.mxu0 0.0
      %2338 = vmatmul.mubr.f32.gmra.mrb[0].mxu0 %v2132
      %v2339 = vpop.f32.mrb[0].mxu0
      %v2340 = vadd.f32 %v1095, %v2339
      %v2341 = vpop.f32.mrb[0].mxu0
      %2342 = vmatprep.mubr.f32.mxu0 0.0
      %2343 = vmatmul.mubr.f32.gmra.mrb[0].mxu0 %v2135
      %v2344 = vpop.f32.mrb[0].mxu0
      %v2345 = vadd.f32 %v1095, %v2344
      %v2346 = vpop.f32.mrb[0].mxu0
      %2347 = vmatprep.mubr.f32.mxu0 0.0
      %2348 = vmatmul.mubr.f32.gmra.mrb[0].mxu0 %v2138
      %v2349 = vpop.f32.mrb[0].mxu0
      %v2350 = vadd.f32 %v1095, %v2349
      %v2351 = vpop.f32.mrb[0].mxu0
      %2352 = vmatprep.mubr.f32.mxu0 0.0
      %2353 = vmatmul.mubr.f32.gmra.mrb[0].mxu0 %v2141
      %v2354 = vpop.f32.mrb[0].mxu0
      %v2355 = vadd.f32 %v1095, %v2354
      %v2356 = vpop.f32.mrb[0].mxu0
      %2357 = vmatprep.mubr.f32.mxu0 0.0
      %2358 = vmatmul.mubr.f32.gmra.mrb[0].mxu0 %v2144
      %v2359 = vpop.f32.mrb[0].mxu0
      %v2360 = vadd.f32 %v1095, %v2359
      %v2361 = vpop.f32.mrb[0].mxu0
      %2362 = vmatprep.mubr.f32.mxu0 0.0
      %2363 = vmatmul.mubr.f32.gmra.mrb[0].mxu0 %v2147
      %v2364 = vpop.f32.mrb[0].mxu0
      %v2365 = vadd.f32 %v1095, %v2364
      %v2366 = vpop.f32.mrb[0].mxu0
      %2367 = vmatprep.mubr.f32.mxu0 0.0
      %2368 = vmatmul.mubr.f32.gmra.mrb[0].mxu0 %v2150
      %v2369 = vpop.f32.mrb[0].mxu0
      %v2370 = vadd.f32 %v1095, %v2369
      %v2371 = vpop.f32.mrb[0].mxu0
      %2372 = vmatprep.mubr.f32.mxu0 0.0
      %2373 = vmatmul.mubr.f32.gmra.mrb[0].mxu0 %v2153
      %v2374 = vpop.f32.mrb[0].mxu0
      %v2375 = vadd.f32 %v1095, %v2374
      %v2376 = vpop.f32.mrb[0].mxu0
      %2377 = vmatprep.mubr.f32.mxu0 0.0
      %2378 = vmatmul.mubr.f32.gmra.mrb[0].mxu0 %v2156
      %v2379 = vpop.f32.mrb[0].mxu0
      %v2380 = vadd.f32 %v1095, %v2379
      %v2381 = vpop.f32.mrb[0].mxu0
      %2382 = vdwg.mxu0
      %2415 = vrot.lane.b32.xlu0 %v2225, 4
      %v2416 = vpop.permute.xlu0 %2415
      %2417 = vrot.lane.b32.xlu0 %v2230, 4
      %v2418 = vpop.permute.xlu0 %2417
      %2419 = vrot.lane.b32.xlu0 %v2235, 4
      %v2420 = vpop.permute.xlu0 %2419
      %2421 = vrot.lane.b32.xlu0 %v2240, 4
      %v2422 = vpop.permute.xlu0 %2421
      %2423 = vrot.lane.b32.xlu0 %v2245, 4
      %v2424 = vpop.permute.xlu0 %2423
      %2425 = vrot.lane.b32.xlu0 %v2250, 4
      %v2426 = vpop.permute.xlu0 %2425
      %2427 = vrot.lane.b32.xlu0 %v2255, 4
      %v2428 = vpop.permute.xlu0 %2427
      %2429 = vrot.lane.b32.xlu0 %v2260, 4
      %v2430 = vpop.permute.xlu0 %2429
      %2431 = vrot.lane.b32.xlu0 %v2265, 4
      %v2432 = vpop.permute.xlu0 %2431
      %2433 = vrot.lane.b32.xlu0 %v2270, 4
      %v2434 = vpop.permute.xlu0 %2433
      %2435 = vrot.lane.b32.xlu0 %v2275, 4
      %v2436 = vpop.permute.xlu0 %2435
      %2437 = vrot.lane.b32.xlu0 %v2280, 4
      %v2438 = vpop.permute.xlu0 %2437
      %2439 = vrot.lane.b32.xlu0 %v2285, 4
      %v2440 = vpop.permute.xlu0 %2439
      %2441 = vrot.lane.b32.xlu0 %v2290, 4
      %v2442 = vpop.permute.xlu0 %2441
      %2443 = vrot.lane.b32.xlu0 %v2295, 4
      %v2444 = vpop.permute.xlu0 %2443
      %2445 = vrot.lane.b32.xlu0 %v2300, 4
      %v2446 = vpop.permute.xlu0 %2445
      %2447 = vrot.lane.b32.xlu0 %v2305, 4
      %v2448 = vpop.permute.xlu0 %2447
      %2449 = vrot.lane.b32.xlu0 %v2310, 4
      %v2450 = vpop.permute.xlu0 %2449
      %2451 = vrot.lane.b32.xlu0 %v2315, 4
      %v2452 = vpop.permute.xlu0 %2451
      %2453 = vrot.lane.b32.xlu0 %v2320, 4
      %v2454 = vpop.permute.xlu0 %2453
      %2455 = vrot.lane.b32.xlu0 %v2325, 4
      %v2456 = vpop.permute.xlu0 %2455
      %2457 = vrot.lane.b32.xlu0 %v2330, 4
      %v2458 = vpop.permute.xlu0 %2457
      %2459 = vrot.lane.b32.xlu0 %v2335, 4
      %v2460 = vpop.permute.xlu0 %2459
      %2461 = vrot.lane.b32.xlu0 %v2340, 4
      %v2462 = vpop.permute.xlu0 %2461
      %2463 = vrot.lane.b32.xlu0 %v2345, 4
      %v2464 = vpop.permute.xlu0 %2463
      %2465 = vrot.lane.b32.xlu0 %v2350, 4
      %v2466 = vpop.permute.xlu0 %2465
      %2467 = vrot.lane.b32.xlu0 %v2355, 4
      %v2468 = vpop.permute.xlu0 %2467
      %2469 = vrot.lane.b32.xlu0 %v2360, 4
      %v2470 = vpop.permute.xlu0 %2469
      %2471 = vrot.lane.b32.xlu0 %v2365, 4
      %v2472 = vpop.permute.xlu0 %2471
      %2473 = vrot.lane.b32.xlu0 %v2370, 4
      %v2474 = vpop.permute.xlu0 %2473
      %2475 = vrot.lane.b32.xlu0 %v2375, 4
      %v2476 = vpop.permute.xlu0 %2475
      %2477 = vrot.lane.b32.xlu0 %v2380, 4
      %v2478 = vpop.permute.xlu0 %2477
      %vm2511 = vcmask 64544
      %2512 = vst.msk [vmem:[%s364] sm:$0xff] %vm2511, %v2416
      %2513 = vst.msk [vmem:[%s364 + $0x8] sm:$0xff] %vm2511, %v2418
      %2514 = vst.msk [vmem:[%s364 + $0x10] sm:$0xff] %vm2511, %v2420
      %2515 = vst.msk [vmem:[%s364 + $0x18] sm:$0xff] %vm2511, %v2422
      %2516 = vst.msk [vmem:[%s364 + $0x20] sm:$0xff] %vm2511, %v2424
      %2517 = vst.msk [vmem:[%s364 + $0x28] sm:$0xff] %vm2511, %v2426
      %2518 = vst.msk [vmem:[%s364 + $0x30] sm:$0xff] %vm2511, %v2428
      %2519 = vst.msk [vmem:[%s364 + $0x38] sm:$0xff] %vm2511, %v2430
      %2520 = vst.msk [vmem:[%s364 + $0x40] sm:$0xff] %vm2511, %v2432
      %2521 = vst.msk [vmem:[%s364 + $0x48] sm:$0xff] %vm2511, %v2434
      %2522 = vst.msk [vmem:[%s364 + $0x50] sm:$0xff] %vm2511, %v2436
      %2523 = vst.msk [vmem:[%s364 + $0x58] sm:$0xff] %vm2511, %v2438
      %2524 = vst.msk [vmem:[%s364 + $0x60] sm:$0xff] %vm2511, %v2440
      %2525 = vst.msk [vmem:[%s364 + $0x68] sm:$0xff] %vm2511, %v2442
      %2526 = vst.msk [vmem:[%s364 + $0x70] sm:$0xff] %vm2511, %v2444
      %2527 = vst.msk [vmem:[%s364 + $0x78] sm:$0xff] %vm2511, %v2446
      %2528 = vst.msk [vmem:[%s364 + $0x80] sm:$0xff] %vm2511, %v2448
      %2529 = vst.msk [vmem:[%s364 + $0x88] sm:$0xff] %vm2511, %v2450
      %2530 = vst.msk [vmem:[%s364 + $0x90] sm:$0xff] %vm2511, %v2452
      %2531 = vst.msk [vmem:[%s364 + $0x98] sm:$0xff] %vm2511, %v2454
      %2532 = vst.msk [vmem:[%s364 + $0xa0] sm:$0xff] %vm2511, %v2456
      %2533 = vst.msk [vmem:[%s364 + $0xa8] sm:$0xff] %vm2511, %v2458
      %2534 = vst.msk [vmem:[%s364 + $0xb0] sm:$0xff] %vm2511, %v2460
      %2535 = vst.msk [vmem:[%s364 + $0xb8] sm:$0xff] %vm2511, %v2462
      %2536 = vst.msk [vmem:[%s364 + $0xc0] sm:$0xff] %vm2511, %v2464
      %2537 = vst.msk [vmem:[%s364 + $0xc8] sm:$0xff] %vm2511, %v2466
      %2538 = vst.msk [vmem:[%s364 + $0xd0] sm:$0xff] %vm2511, %v2468
      %2539 = vst.msk [vmem:[%s364 + $0xd8] sm:$0xff] %vm2511, %v2470
      %2540 = vst.msk [vmem:[%s364 + $0xe0] sm:$0xff] %vm2511, %v2472
      %2541 = vst.msk [vmem:[%s364 + $0xe8] sm:$0xff] %vm2511, %v2474
      %2542 = vst.msk [vmem:[%s364 + $0xf0] sm:$0xff] %vm2511, %v2476
      %2543 = vst.msk [vmem:[%s364 + $0xf8] sm:$0xff] %vm2511, %v2478
      %v2544 = vld [vmem:[%s542] sm:$0xff]
      %v2545 = vld [vmem:[%s542 + $0x8] sm:$0xff]
      %v2546 = vld [vmem:[%s542 + $0x18] sm:$0xff]
      %v2547 = vld [vmem:[%s542 + $0x20] sm:$0xff]
      %v2548 = vld [vmem:[%s542 + $0x30] sm:$0xff]
      %v2549 = vld [vmem:[%s542 + $0x38] sm:$0xff]
      %v2550 = vld [vmem:[%s542 + $0x48] sm:$0xff]
      %v2551 = vld [vmem:[%s542 + $0x50] sm:$0xff]
      %v2552 = vld [vmem:[%s542 + $0x60] sm:$0xff]
      %v2553 = vld [vmem:[%s542 + $0x68] sm:$0xff]
      %v2554 = vld [vmem:[%s542 + $0x78] sm:$0xff]
      %v2555 = vld [vmem:[%s542 + $0x80] sm:$0xff]
      %v2556 = vld [vmem:[%s542 + $0x90] sm:$0xff]
      %v2557 = vld [vmem:[%s542 + $0x98] sm:$0xff]
      %v2558 = vld [vmem:[%s542 + $0xa8] sm:$0xff]
      %v2559 = vld [vmem:[%s542 + $0xb0] sm:$0xff]
      %v2560 = vld [vmem:[%s542 + $0xc0] sm:$0xff]
      %v2561 = vld [vmem:[%s542 + $0xc8] sm:$0xff]
      %v2562 = vld [vmem:[%s542 + $0xd8] sm:$0xff]
      %v2563 = vld [vmem:[%s542 + $0xe0] sm:$0xff]
      %v2564 = vld [vmem:[%s542 + $0xf0] sm:$0xff]
      %v2565 = vld [vmem:[%s542 + $0xf8] sm:$0xff]
      %v2566 = vld [vmem:[%s542 + $0x108] sm:$0xff]
      %v2567 = vld [vmem:[%s542 + $0x110] sm:$0xff]
      %v2568 = vld [vmem:[%s542 + $0x120] sm:$0xff]
      %v2569 = vld [vmem:[%s542 + $0x128] sm:$0xff]
      %v2570 = vld [vmem:[%s542 + $0x138] sm:$0xff]
      %v2571 = vld [vmem:[%s542 + $0x140] sm:$0xff]
      %v2572 = vld [vmem:[%s542 + $0x150] sm:$0xff]
      %v2573 = vld [vmem:[%s542 + $0x158] sm:$0xff]
      %v2574 = vld [vmem:[%s542 + $0x168] sm:$0xff]
      %v2575 = vld [vmem:[%s542 + $0x170] sm:$0xff]
      %v2576 = vld [vmem:[%s542 + $0x1] sm:$0xff]
      %v2577 = vld [vmem:[%s542 + $0x9] sm:$0xff]
      %v2578 = vld [vmem:[%s542 + $0x19] sm:$0xff]
      %v2579 = vld [vmem:[%s542 + $0x21] sm:$0xff]
      %v2580 = vld [vmem:[%s542 + $0x31] sm:$0xff]
      %v2581 = vld [vmem:[%s542 + $0x39] sm:$0xff]
      %v2582 = vld [vmem:[%s542 + $0x49] sm:$0xff]
      %v2583 = vld [vmem:[%s542 + $0x51] sm:$0xff]
      %v2584 = vld [vmem:[%s542 + $0x61] sm:$0xff]
      %v2585 = vld [vmem:[%s542 + $0x69] sm:$0xff]
      %v2586 = vld [vmem:[%s542 + $0x79] sm:$0xff]
      %v2587 = vld [vmem:[%s542 + $0x81] sm:$0xff]
      %v2588 = vld [vmem:[%s542 + $0x91] sm:$0xff]
      %v2589 = vld [vmem:[%s542 + $0x99] sm:$0xff]
      %v2590 = vld [vmem:[%s542 + $0xa9] sm:$0xff]
      %v2591 = vld [vmem:[%s542 + $0xb1] sm:$0xff]
      %v2592 = vld [vmem:[%s542 + $0xc1] sm:$0xff]
      %v2593 = vld [vmem:[%s542 + $0xc9] sm:$0xff]
      %v2594 = vld [vmem:[%s542 + $0xd9] sm:$0xff]
      %v2595 = vld [vmem:[%s542 + $0xe1] sm:$0xff]
      %v2596 = vld [vmem:[%s542 + $0xf1] sm:$0xff]
      %v2597 = vld [vmem:[%s542 + $0xf9] sm:$0xff]
      %v2598 = vld [vmem:[%s542 + $0x109] sm:$0xff]
      %v2599 = vld [vmem:[%s542 + $0x111] sm:$0xff]
      %v2600 = vld [vmem:[%s542 + $0x121] sm:$0xff]
      %v2601 = vld [vmem:[%s542 + $0x129] sm:$0xff]
      %v2602 = vld [vmem:[%s542 + $0x139] sm:$0xff]
      %v2603 = vld [vmem:[%s542 + $0x141] sm:$0xff]
      %v2604 = vld [vmem:[%s542 + $0x151] sm:$0xff]
      %v2605 = vld [vmem:[%s542 + $0x159] sm:$0xff]
      %v2606 = vld [vmem:[%s542 + $0x169] sm:$0xff]
      %v2607 = vld [vmem:[%s542 + $0x171] sm:$0xff]
      %s2608 = scalar_lea.vmem [#allocation2], 48
      %v2609 = vld [vmem:[%s2608] sm:$0xff]
      %v2610 = vld [vmem:[%s2608 + $0x8] sm:$0xff]
      %v2611 = vld [vmem:[%s2608 + $0x18] sm:$0xff]
      %v2612 = vld [vmem:[%s2608 + $0x20] sm:$0xff]
      %v2613 = vld [vmem:[%s2608 + $0x30] sm:$0xff]
      %v2614 = vld [vmem:[%s2608 + $0x38] sm:$0xff]
      %v2615 = vld [vmem:[%s2608 + $0x48] sm:$0xff]
      %v2616 = vld [vmem:[%s2608 + $0x50] sm:$0xff]
      %v2617 = vld [vmem:[%s2608 + $0x60] sm:$0xff]
      %v2618 = vld [vmem:[%s2608 + $0x68] sm:$0xff]
      %v2619 = vld [vmem:[%s2608 + $0x78] sm:$0xff]
      %v2620 = vld [vmem:[%s2608 + $0x80] sm:$0xff]
      %v2621 = vld [vmem:[%s2608 + $0x90] sm:$0xff]
      %v2622 = vld [vmem:[%s2608 + $0x98] sm:$0xff]
      %v2623 = vld [vmem:[%s2608 + $0xa8] sm:$0xff]
      %v2624 = vld [vmem:[%s2608 + $0xb0] sm:$0xff]
      %v2625 = vld [vmem:[%s2608 + $0xc0] sm:$0xff]
      %v2626 = vld [vmem:[%s2608 + $0xc8] sm:$0xff]
      %v2627 = vld [vmem:[%s2608 + $0xd8] sm:$0xff]
      %v2628 = vld [vmem:[%s2608 + $0xe0] sm:$0xff]
      %v2629 = vld [vmem:[%s2608 + $0xf0] sm:$0xff]
      %v2630 = vld [vmem:[%s2608 + $0xf8] sm:$0xff]
      %v2631 = vld [vmem:[%s2608 + $0x108] sm:$0xff]
      %v2632 = vld [vmem:[%s2608 + $0x110] sm:$0xff]
      %v2633 = vld [vmem:[%s2608 + $0x120] sm:$0xff]
      %v2634 = vld [vmem:[%s2608 + $0x128] sm:$0xff]
      %v2635 = vld [vmem:[%s2608 + $0x138] sm:$0xff]
      %v2636 = vld [vmem:[%s2608 + $0x140] sm:$0xff]
      %v2637 = vld [vmem:[%s2608 + $0x150] sm:$0xff]
      %v2638 = vld [vmem:[%s2608 + $0x158] sm:$0xff]
      %v2639 = vld [vmem:[%s2608 + $0x168] sm:$0xff]
      %v2640 = vld [vmem:[%s2608 + $0x170] sm:$0xff]
      %v2641 = vld [vmem:[%s2608 + $0x1] sm:$0xff]
      %v2642 = vld [vmem:[%s2608 + $0x9] sm:$0xff]
      %v2643 = vld [vmem:[%s2608 + $0x19] sm:$0xff]
      %v2644 = vld [vmem:[%s2608 + $0x21] sm:$0xff]
      %v2645 = vld [vmem:[%s2608 + $0x31] sm:$0xff]
      %v2646 = vld [vmem:[%s2608 + $0x39] sm:$0xff]
      %v2647 = vld [vmem:[%s2608 + $0x49] sm:$0xff]
      %v2648 = vld [vmem:[%s2608 + $0x51] sm:$0xff]
      %v2649 = vld [vmem:[%s2608 + $0x61] sm:$0xff]
      %v2650 = vld [vmem:[%s2608 + $0x69] sm:$0xff]
      %v2651 = vld [vmem:[%s2608 + $0x79] sm:$0xff]
      %v2652 = vld [vmem:[%s2608 + $0x81] sm:$0xff]
      %v2653 = vld [vmem:[%s2608 + $0x91] sm:$0xff]
      %v2654 = vld [vmem:[%s2608 + $0x99] sm:$0xff]
      %v2655 = vld [vmem:[%s2608 + $0xa9] sm:$0xff]
      %v2656 = vld [vmem:[%s2608 + $0xb1] sm:$0xff]
      %v2657 = vld [vmem:[%s2608 + $0xc1] sm:$0xff]
      %v2658 = vld [vmem:[%s2608 + $0xc9] sm:$0xff]
      %v2659 = vld [vmem:[%s2608 + $0xd9] sm:$0xff]
      %v2660 = vld [vmem:[%s2608 + $0xe1] sm:$0xff]
      %v2661 = vld [vmem:[%s2608 + $0xf1] sm:$0xff]
      %v2662 = vld [vmem:[%s2608 + $0xf9] sm:$0xff]
      %v2663 = vld [vmem:[%s2608 + $0x109] sm:$0xff]
      %v2664 = vld [vmem:[%s2608 + $0x111] sm:$0xff]
      %v2665 = vld [vmem:[%s2608 + $0x121] sm:$0xff]
      %v2666 = vld [vmem:[%s2608 + $0x129] sm:$0xff]
      %v2667 = vld [vmem:[%s2608 + $0x139] sm:$0xff]
      %v2668 = vld [vmem:[%s2608 + $0x141] sm:$0xff]
      %v2669 = vld [vmem:[%s2608 + $0x151] sm:$0xff]
      %v2670 = vld [vmem:[%s2608 + $0x159] sm:$0xff]
      %v2671 = vld [vmem:[%s2608 + $0x169] sm:$0xff]
      %v2672 = vld [vmem:[%s2608 + $0x171] sm:$0xff]
      %2705 = vrot.lane.b32.xlu0 %v2576, 4
      %v2706 = vpop.permute.xlu0 %2705
      %2707 = vrot.lane.b32.xlu0 %v2577, 4
      %v2708 = vpop.permute.xlu0 %2707
      %2709 = vrot.lane.b32.xlu0 %v2578, 4
      %v2710 = vpop.permute.xlu0 %2709
      %2711 = vrot.lane.b32.xlu0 %v2579, 4
      %v2712 = vpop.permute.xlu0 %2711
      %2713 = vrot.lane.b32.xlu0 %v2580, 4
      %v2714 = vpop.permute.xlu0 %2713
      %2715 = vrot.lane.b32.xlu0 %v2581, 4
      %v2716 = vpop.permute.xlu0 %2715
      %2717 = vrot.lane.b32.xlu0 %v2582, 4
      %v2718 = vpop.permute.xlu0 %2717
      %2719 = vrot.lane.b32.xlu0 %v2583, 4
      %v2720 = vpop.permute.xlu0 %2719
      %2721 = vrot.lane.b32.xlu0 %v2584, 4
      %v2722 = vpop.permute.xlu0 %2721
      %2723 = vrot.lane.b32.xlu0 %v2585, 4
      %v2724 = vpop.permute.xlu0 %2723
      %2725 = vrot.lane.b32.xlu0 %v2586, 4
      %v2726 = vpop.permute.xlu0 %2725
      %2727 = vrot.lane.b32.xlu0 %v2587, 4
      %v2728 = vpop.permute.xlu0 %2727
      %2729 = vrot.lane.b32.xlu0 %v2588, 4
      %v2730 = vpop.permute.xlu0 %2729
      %2731 = vrot.lane.b32.xlu0 %v2589, 4
      %v2732 = vpop.permute.xlu0 %2731
      %2733 = vrot.lane.b32.xlu0 %v2590, 4
      %v2734 = vpop.permute.xlu0 %2733
      %2735 = vrot.lane.b32.xlu0 %v2591, 4
      %v2736 = vpop.permute.xlu0 %2735
      %2737 = vrot.lane.b32.xlu0 %v2592, 4
      %v2738 = vpop.permute.xlu0 %2737
      %2739 = vrot.lane.b32.xlu0 %v2593, 4
      %v2740 = vpop.permute.xlu0 %2739
      %2741 = vrot.lane.b32.xlu0 %v2594, 4
      %v2742 = vpop.permute.xlu0 %2741
      %2743 = vrot.lane.b32.xlu0 %v2595, 4
      %v2744 = vpop.permute.xlu0 %2743
      %2745 = vrot.lane.b32.xlu0 %v2596, 4
      %v2746 = vpop.permute.xlu0 %2745
      %2747 = vrot.lane.b32.xlu0 %v2597, 4
      %v2748 = vpop.permute.xlu0 %2747
      %2749 = vrot.lane.b32.xlu0 %v2598, 4
      %v2750 = vpop.permute.xlu0 %2749
      %2751 = vrot.lane.b32.xlu0 %v2599, 4
      %v2752 = vpop.permute.xlu0 %2751
      %2753 = vrot.lane.b32.xlu0 %v2600, 4
      %v2754 = vpop.permute.xlu0 %2753
      %2755 = vrot.lane.b32.xlu0 %v2601, 4
      %v2756 = vpop.permute.xlu0 %2755
      %2757 = vrot.lane.b32.xlu0 %v2602, 4
      %v2758 = vpop.permute.xlu0 %2757
      %2759 = vrot.lane.b32.xlu0 %v2603, 4
      %v2760 = vpop.permute.xlu0 %2759
      %2761 = vrot.lane.b32.xlu0 %v2604, 4
      %v2762 = vpop.permute.xlu0 %2761
      %2763 = vrot.lane.b32.xlu0 %v2605, 4
      %v2764 = vpop.permute.xlu0 %2763
      %2765 = vrot.lane.b32.xlu0 %v2606, 4
      %v2766 = vpop.permute.xlu0 %2765
      %2767 = vrot.lane.b32.xlu0 %v2607, 4
      %v2768 = vpop.permute.xlu0 %2767
      %2833 = vrot.lane.b32.xlu0 %v2609, 8
      %v2834 = vpop.permute.xlu0 %2833
      %2835 = vrot.lane.b32.xlu0 %v2610, 8
      %v2836 = vpop.permute.xlu0 %2835
      %2837 = vrot.lane.b32.xlu0 %v2611, 8
      %v2838 = vpop.permute.xlu0 %2837
      %2839 = vrot.lane.b32.xlu0 %v2612, 8
      %v2840 = vpop.permute.xlu0 %2839
      %2841 = vrot.lane.b32.xlu0 %v2613, 8
      %v2842 = vpop.permute.xlu0 %2841
      %2843 = vrot.lane.b32.xlu0 %v2614, 8
      %v2844 = vpop.permute.xlu0 %2843
      %2845 = vrot.lane.b32.xlu0 %v2615, 8
      %v2846 = vpop.permute.xlu0 %2845
      %2847 = vrot.lane.b32.xlu0 %v2616, 8
      %v2848 = vpop.permute.xlu0 %2847
      %2849 = vrot.lane.b32.xlu0 %v2617, 8
      %v2850 = vpop.permute.xlu0 %2849
      %2851 = vrot.lane.b32.xlu0 %v2618, 8
      %v2852 = vpop.permute.xlu0 %2851
      %2853 = vrot.lane.b32.xlu0 %v2619, 8
      %v2854 = vpop.permute.xlu0 %2853
      %2855 = vrot.lane.b32.xlu0 %v2620, 8
      %v2856 = vpop.permute.xlu0 %2855
      %2857 = vrot.lane.b32.xlu0 %v2621, 8
      %v2858 = vpop.permute.xlu0 %2857
      %2859 = vrot.lane.b32.xlu0 %v2622, 8
      %v2860 = vpop.permute.xlu0 %2859
      %2861 = vrot.lane.b32.xlu0 %v2623, 8
      %v2862 = vpop.permute.xlu0 %2861
      %2863 = vrot.lane.b32.xlu0 %v2624, 8
      %v2864 = vpop.permute.xlu0 %2863
      %2865 = vrot.lane.b32.xlu0 %v2625, 8
      %v2866 = vpop.permute.xlu0 %2865
      %2867 = vrot.lane.b32.xlu0 %v2626, 8
      %v2868 = vpop.permute.xlu0 %2867
      %2869 = vrot.lane.b32.xlu0 %v2627, 8
      %v2870 = vpop.permute.xlu0 %2869
      %2871 = vrot.lane.b32.xlu0 %v2628, 8
      %v2872 = vpop.permute.xlu0 %2871
      %2873 = vrot.lane.b32.xlu0 %v2629, 8
      %v2874 = vpop.permute.xlu0 %2873
      %2875 = vrot.lane.b32.xlu0 %v2630, 8
      %v2876 = vpop.permute.xlu0 %2875
      %2877 = vrot.lane.b32.xlu0 %v2631, 8
      %v2878 = vpop.permute.xlu0 %2877
      %2879 = vrot.lane.b32.xlu0 %v2632, 8
      %v2880 = vpop.permute.xlu0 %2879
      %2881 = vrot.lane.b32.xlu0 %v2633, 8
      %v2882 = vpop.permute.xlu0 %2881
      %2883 = vrot.lane.b32.xlu0 %v2634, 8
      %v2884 = vpop.permute.xlu0 %2883
      %2885 = vrot.lane.b32.xlu0 %v2635, 8
      %v2886 = vpop.permute.xlu0 %2885
      %2887 = vrot.lane.b32.xlu0 %v2636, 8
      %v2888 = vpop.permute.xlu0 %2887
      %2889 = vrot.lane.b32.xlu0 %v2637, 8
      %v2890 = vpop.permute.xlu0 %2889
      %2891 = vrot.lane.b32.xlu0 %v2638, 8
      %v2892 = vpop.permute.xlu0 %2891
      %2893 = vrot.lane.b32.xlu0 %v2639, 8
      %v2894 = vpop.permute.xlu0 %2893
      %2895 = vrot.lane.b32.xlu0 %v2640, 8
      %v2896 = vpop.permute.xlu0 %2895
      %2961 = vrot.lane.b32.xlu0 %v2641, 12
      %v2962 = vpop.permute.xlu0 %2961
      %2963 = vrot.lane.b32.xlu0 %v2642, 12
      %v2964 = vpop.permute.xlu0 %2963
      %2965 = vrot.lane.b32.xlu0 %v2643, 12
      %v2966 = vpop.permute.xlu0 %2965
      %2967 = vrot.lane.b32.xlu0 %v2644, 12
      %v2968 = vpop.permute.xlu0 %2967
      %2969 = vrot.lane.b32.xlu0 %v2645, 12
      %v2970 = vpop.permute.xlu0 %2969
      %2971 = vrot.lane.b32.xlu0 %v2646, 12
      %v2972 = vpop.permute.xlu0 %2971
      %2973 = vrot.lane.b32.xlu0 %v2647, 12
      %v2974 = vpop.permute.xlu0 %2973
      %2975 = vrot.lane.b32.xlu0 %v2648, 12
      %v2976 = vpop.permute.xlu0 %2975
      %2977 = vrot.lane.b32.xlu0 %v2649, 12
      %v2978 = vpop.permute.xlu0 %2977
      %2979 = vrot.lane.b32.xlu0 %v2650, 12
      %v2980 = vpop.permute.xlu0 %2979
      %2981 = vrot.lane.b32.xlu0 %v2651, 12
      %v2982 = vpop.permute.xlu0 %2981
      %2983 = vrot.lane.b32.xlu0 %v2652, 12
      %v2984 = vpop.permute.xlu0 %2983
      %2985 = vrot.lane.b32.xlu0 %v2653, 12
      %v2986 = vpop.permute.xlu0 %2985
      %2987 = vrot.lane.b32.xlu0 %v2654, 12
      %v2988 = vpop.permute.xlu0 %2987
      %2989 = vrot.lane.b32.xlu0 %v2655, 12
      %v2990 = vpop.permute.xlu0 %2989
      %2991 = vrot.lane.b32.xlu0 %v2656, 12
      %v2992 = vpop.permute.xlu0 %2991
      %2993 = vrot.lane.b32.xlu0 %v2657, 12
      %v2994 = vpop.permute.xlu0 %2993
      %2995 = vrot.lane.b32.xlu0 %v2658, 12
      %v2996 = vpop.permute.xlu0 %2995
      %2997 = vrot.lane.b32.xlu0 %v2659, 12
      %v2998 = vpop.permute.xlu0 %2997
      %2999 = vrot.lane.b32.xlu0 %v2660, 12
      %v3000 = vpop.permute.xlu0 %2999
      %3001 = vrot.lane.b32.xlu0 %v2661, 12
      %v3002 = vpop.permute.xlu0 %3001
      %3003 = vrot.lane.b32.xlu0 %v2662, 12
      %v3004 = vpop.permute.xlu0 %3003
      %3005 = vrot.lane.b32.xlu0 %v2663, 12
      %v3006 = vpop.permute.xlu0 %3005
      %3007 = vrot.lane.b32.xlu0 %v2664, 12
      %v3008 = vpop.permute.xlu0 %3007
      %3009 = vrot.lane.b32.xlu0 %v2665, 12
      %v3010 = vpop.permute.xlu0 %3009
      %3011 = vrot.lane.b32.xlu0 %v2666, 12
      %v3012 = vpop.permute.xlu0 %3011
      %3013 = vrot.lane.b32.xlu0 %v2667, 12
      %v3014 = vpop.permute.xlu0 %3013
      %3015 = vrot.lane.b32.xlu0 %v2668, 12
      %v3016 = vpop.permute.xlu0 %3015
      %3017 = vrot.lane.b32.xlu0 %v2669, 12
      %v3018 = vpop.permute.xlu0 %3017
      %3019 = vrot.lane.b32.xlu0 %v2670, 12
      %v3020 = vpop.permute.xlu0 %3019
      %3021 = vrot.lane.b32.xlu0 %v2671, 12
      %v3022 = vpop.permute.xlu0 %3021
      %3023 = vrot.lane.b32.xlu0 %v2672, 12
      %v3024 = vpop.permute.xlu0 %3023
      %v3057 = vsel %vm414, %v2544, %v2706
      %v3058 = vsel %vm414, %v2545, %v2708
      %v3059 = vsel %vm414, %v2546, %v2710
      %v3060 = vsel %vm414, %v2547, %v2712
      %v3061 = vsel %vm414, %v2548, %v2714
      %v3062 = vsel %vm414, %v2549, %v2716
      %v3063 = vsel %vm414, %v2550, %v2718
      %v3064 = vsel %vm414, %v2551, %v2720
      %v3065 = vsel %vm414, %v2552, %v2722
      %v3066 = vsel %vm414, %v2553, %v2724
      %v3067 = vsel %vm414, %v2554, %v2726
      %v3068 = vsel %vm414, %v2555, %v2728
      %v3069 = vsel %vm414, %v2556, %v2730
      %v3070 = vsel %vm414, %v2557, %v2732
      %v3071 = vsel %vm414, %v2558, %v2734
      %v3072 = vsel %vm414, %v2559, %v2736
      %v3073 = vsel %vm414, %v2560, %v2738
      %v3074 = vsel %vm414, %v2561, %v2740
      %v3075 = vsel %vm414, %v2562, %v2742
      %v3076 = vsel %vm414, %v2563, %v2744
      %v3077 = vsel %vm414, %v2564, %v2746
      %v3078 = vsel %vm414, %v2565, %v2748
      %v3079 = vsel %vm414, %v2566, %v2750
      %v3080 = vsel %vm414, %v2567, %v2752
      %v3081 = vsel %vm414, %v2568, %v2754
      %v3082 = vsel %vm414, %v2569, %v2756
      %v3083 = vsel %vm414, %v2570, %v2758
      %v3084 = vsel %vm414, %v2571, %v2760
      %v3085 = vsel %vm414, %v2572, %v2762
      %v3086 = vsel %vm414, %v2573, %v2764
      %v3087 = vsel %vm414, %v2574, %v2766
      %v3088 = vsel %vm414, %v2575, %v2768
      %v3089 = vsel %vm1023, %v3057, %v2834
      %v3090 = vsel %vm1023, %v3058, %v2836
      %v3091 = vsel %vm1023, %v3059, %v2838
      %v3092 = vsel %vm1023, %v3060, %v2840
      %v3093 = vsel %vm1023, %v3061, %v2842
      %v3094 = vsel %vm1023, %v3062, %v2844
      %v3095 = vsel %vm1023, %v3063, %v2846
      %v3096 = vsel %vm1023, %v3064, %v2848
      %v3097 = vsel %vm1023, %v3065, %v2850
      %v3098 = vsel %vm1023, %v3066, %v2852
      %v3099 = vsel %vm1023, %v3067, %v2854
      %v3100 = vsel %vm1023, %v3068, %v2856
      %v3101 = vsel %vm1023, %v3069, %v2858
      %v3102 = vsel %vm1023, %v3070, %v2860
      %v3103 = vsel %vm1023, %v3071, %v2862
      %v3104 = vsel %vm1023, %v3072, %v2864
      %v3105 = vsel %vm1023, %v3073, %v2866
      %v3106 = vsel %vm1023, %v3074, %v2868
      %v3107 = vsel %vm1023, %v3075, %v2870
      %v3108 = vsel %vm1023, %v3076, %v2872
      %v3109 = vsel %vm1023, %v3077, %v2874
      %v3110 = vsel %vm1023, %v3078, %v2876
      %v3111 = vsel %vm1023, %v3079, %v2878
      %v3112 = vsel %vm1023, %v3080, %v2880
      %v3113 = vsel %vm1023, %v3081, %v2882
      %v3114 = vsel %vm1023, %v3082, %v2884
      %v3115 = vsel %vm1023, %v3083, %v2886
      %v3116 = vsel %vm1023, %v3084, %v2888
      %v3117 = vsel %vm1023, %v3085, %v2890
      %v3118 = vsel %vm1023, %v3086, %v2892
      %v3119 = vsel %vm1023, %v3087, %v2894
      %v3120 = vsel %vm1023, %v3088, %v2896
      %v3121 = vsel %vm1056, %v3089, %v2962
      %v3122 = vsel %vm1056, %v3090, %v2964
      %v3123 = vsel %vm1056, %v3091, %v2966
      %v3124 = vsel %vm1056, %v3092, %v2968
      %v3125 = vsel %vm1056, %v3093, %v2970
      %v3126 = vsel %vm1056, %v3094, %v2972
      %v3127 = vsel %vm1056, %v3095, %v2974
      %v3128 = vsel %vm1056, %v3096, %v2976
      %v3129 = vsel %vm1056, %v3097, %v2978
      %v3130 = vsel %vm1056, %v3098, %v2980
      %v3131 = vsel %vm1056, %v3099, %v2982
      %v3132 = vsel %vm1056, %v3100, %v2984
      %v3133 = vsel %vm1056, %v3101, %v2986
      %v3134 = vsel %vm1056, %v3102, %v2988
      %v3135 = vsel %vm1056, %v3103, %v2990
      %v3136 = vsel %vm1056, %v3104, %v2992
      %v3137 = vsel %vm1056, %v3105, %v2994
      %v3138 = vsel %vm1056, %v3106, %v2996
      %v3139 = vsel %vm1056, %v3107, %v2998
      %v3140 = vsel %vm1056, %v3108, %v3000
      %v3141 = vsel %vm1056, %v3109, %v3002
      %v3142 = vsel %vm1056, %v3110, %v3004
      %v3143 = vsel %vm1056, %v3111, %v3006
      %v3144 = vsel %vm1056, %v3112, %v3008
      %v3145 = vsel %vm1056, %v3113, %v3010
      %v3146 = vsel %vm1056, %v3114, %v3012
      %v3147 = vsel %vm1056, %v3115, %v3014
      %v3148 = vsel %vm1056, %v3116, %v3016
      %v3149 = vsel %vm1056, %v3117, %v3018
      %v3150 = vsel %vm1056, %v3118, %v3020
      %v3151 = vsel %vm1056, %v3119, %v3022
      %v3152 = vsel %vm1056, %v3120, %v3024
      %s3153 = scalar_lea.vmem %s348, 32
      %v3154 = vld [vmem:[%s3153] sm:$0xff]
      %v3155 = vld [vmem:[%s3153 + $0x8] sm:$0xff]
      %v3157 = vsel %vm1097, %v3121, 0
      %v3160 = vsel %vm1097, %v3122, 0
      %v3163 = vsel %vm1097, %v3123, 0
      %v3166 = vsel %vm1097, %v3124, 0
      %v3169 = vsel %vm1097, %v3125, 0
      %v3172 = vsel %vm1097, %v3126, 0
      %v3175 = vsel %vm1097, %v3127, 0
      %v3178 = vsel %vm1097, %v3128, 0
      %v3181 = vsel %vm1097, %v3129, 0
      %v3184 = vsel %vm1097, %v3130, 0
      %v3187 = vsel %vm1097, %v3131, 0
      %v3190 = vsel %vm1097, %v3132, 0
      %v3193 = vsel %vm1097, %v3133, 0
      %v3196 = vsel %vm1097, %v3134, 0
      %v3199 = vsel %vm1097, %v3135, 0
      %v3202 = vsel %vm1097, %v3136, 0
      %v3205 = vsel %vm1097, %v3137, 0
      %v3208 = vsel %vm1097, %v3138, 0
      %v3211 = vsel %vm1097, %v3139, 0
      %v3214 = vsel %vm1097, %v3140, 0
      %v3217 = vsel %vm1097, %v3141, 0
      %v3220 = vsel %vm1097, %v3142, 0
      %v3223 = vsel %vm1097, %v3143, 0
      %v3226 = vsel %vm1097, %v3144, 0
      %v3229 = vsel %vm1097, %v3145, 0
      %v3232 = vsel %vm1097, %v3146, 0
      %v3235 = vsel %vm1097, %v3147, 0
      %v3238 = vsel %vm1097, %v3148, 0
      %v3241 = vsel %vm1097, %v3149, 0
      %v3244 = vsel %vm1097, %v3150, 0
      %v3247 = vsel %vm1097, %v3151, 0
      %v3250 = vsel %vm1097, %v3152, 0
      %3252 = vmatprep.subr.mxu0 0.0
      %3253 = vmatpush1.msra.mxu0 %v3154
      %3254 = vmatprep.subr.mxu0 0.0
      %3255 = vmatpush1.msra.mxu0 %v3155
      %3256 = vmatprep.subr.mxu0 0.0
      %3257 = vmatpush1.msra.mxu0 0.0
      %3258 = vmatprep.subr.mxu0 0.0
      %3259 = vmatpush1.msra.mxu0 0.0
      %3260 = vmatprep.subr.mxu0 0.0
      %3261 = vmatpush1.msra.mxu0 0.0
      %3262 = vmatprep.subr.mxu0 0.0
      %3263 = vmatpush1.msra.mxu0 0.0
      %3264 = vmatprep.subr.mxu0 0.0
      %3265 = vmatpush1.msra.mxu0 0.0
      %3266 = vmatprep.subr.mxu0 0.0
      %3267 = vmatpush1.msra.mxu0 0.0
      %3268 = vmatprep.subr.mxu0 0.0
      %3269 = vmatpush1.msra.mxu0 0.0
      %3270 = vmatprep.subr.mxu0 0.0
      %3271 = vmatpush1.msra.mxu0 0.0
      %3272 = vmatprep.subr.mxu0 0.0
      %3273 = vmatpush1.msra.mxu0 0.0
      %3274 = vmatprep.subr.mxu0 0.0
      %3275 = vmatpush1.msra.mxu0 0.0
      %3276 = vmatprep.subr.mxu0 0.0
      %3277 = vmatpush1.msra.mxu0 0.0
      %3278 = vmatprep.subr.mxu0 0.0
      %3279 = vmatpush1.msra.mxu0 0.0
      %3280 = vmatprep.subr.mxu0 0.0
      %3281 = vmatpush1.msra.mxu0 0.0
      %3282 = vmatprep.subr.mxu0 0.0
      %3283 = vmatpush1.msra.mxu0 0.0
      %3284 = vmatprep.subr.mxu0 0.0
      %3285 = vmatpush1.msra.mxu0 0.0
      %3286 = vmatprep.subr.mxu0 0.0
      %3287 = vmatpush1.msra.mxu0 0.0
      %3288 = vmatprep.subr.mxu0 0.0
      %3289 = vmatpush1.msra.mxu0 0.0
      %3290 = vmatprep.subr.mxu0 0.0
      %3291 = vmatpush1.msra.mxu0 0.0
      %3292 = vmatprep.subr.mxu0 0.0
      %3293 = vmatpush1.msra.mxu0 0.0
      %3294 = vmatprep.subr.mxu0 0.0
      %3295 = vmatpush1.msra.mxu0 0.0
      %3296 = vmatprep.subr.mxu0 0.0
      %3297 = vmatpush1.msra.mxu0 0.0
      %3298 = vmatprep.subr.mxu0 0.0
      %3299 = vmatpush1.msra.mxu0 0.0
      %3300 = vmatprep.subr.mxu0 0.0
      %3301 = vmatpush1.msra.mxu0 0.0
      %3302 = vmatprep.subr.mxu0 0.0
      %3303 = vmatpush1.msra.mxu0 0.0
      %3304 = vmatprep.subr.mxu0 0.0
      %3305 = vmatpush1.msra.mxu0 0.0
      %3306 = vmatprep.subr.mxu0 0.0
      %3307 = vmatpush1.msra.mxu0 0.0
      %3308 = vmatprep.subr.mxu0 0.0
      %3309 = vmatpush1.msra.mxu0 0.0
      %3310 = vmatprep.subr.mxu0 0.0
      %3311 = vmatpush1.msra.mxu0 0.0
      %3312 = vmatprep.subr.mxu0 0.0
      %3313 = vmatpush1.msra.mxu0 0.0
      %3314 = vmatprep.subr.mxu0 0.0
      %3315 = vmatpush1.msra.mxu0 0.0
      %3316 = vmatprep.mubr.f32.mxu0 0.0
      %3317 = vmatmul.mubr.f32.gmra.mrb[0].mxu0 %v3157
      %v3318 = vpop.f32.mrb[0].mxu0
      %v3319 = vadd.f32 %v1095, %v3318
      %v3320 = vpop.f32.mrb[0].mxu0
      %3321 = vmatprep.mubr.f32.mxu0 0.0
      %3322 = vmatmul.mubr.f32.gmra.mrb[0].mxu0 %v3160
      %v3323 = vpop.f32.mrb[0].mxu0
      %v3324 = vadd.f32 %v1095, %v3323
      %v3325 = vpop.f32.mrb[0].mxu0
      %3326 = vmatprep.mubr.f32.mxu0 0.0
      %3327 = vmatmul.mubr.f32.gmra.mrb[0].mxu0 %v3163
      %v3328 = vpop.f32.mrb[0].mxu0
      %v3329 = vadd.f32 %v1095, %v3328
      %v3330 = vpop.f32.mrb[0].mxu0
      %3331 = vmatprep.mubr.f32.mxu0 0.0
      %3332 = vmatmul.mubr.f32.gmra.mrb[0].mxu0 %v3166
      %v3333 = vpop.f32.mrb[0].mxu0
      %v3334 = vadd.f32 %v1095, %v3333
      %v3335 = vpop.f32.mrb[0].mxu0
      %3336 = vmatprep.mubr.f32.mxu0 0.0
      %3337 = vmatmul.mubr.f32.gmra.mrb[0].mxu0 %v3169
      %v3338 = vpop.f32.mrb[0].mxu0
      %v3339 = vadd.f32 %v1095, %v3338
      %v3340 = vpop.f32.mrb[0].mxu0
      %3341 = vmatprep.mubr.f32.mxu0 0.0
      %3342 = vmatmul.mubr.f32.gmra.mrb[0].mxu0 %v3172
      %v3343 = vpop.f32.mrb[0].mxu0
      %v3344 = vadd.f32 %v1095, %v3343
      %v3345 = vpop.f32.mrb[0].mxu0
      %3346 = vmatprep.mubr.f32.mxu0 0.0
      %3347 = vmatmul.mubr.f32.gmra.mrb[0].mxu0 %v3175
      %v3348 = vpop.f32.mrb[0].mxu0
      %v3349 = vadd.f32 %v1095, %v3348
      %v3350 = vpop.f32.mrb[0].mxu0
      %3351 = vmatprep.mubr.f32.mxu0 0.0
      %3352 = vmatmul.mubr.f32.gmra.mrb[0].mxu0 %v3178
      %v3353 = vpop.f32.mrb[0].mxu0
      %v3354 = vadd.f32 %v1095, %v3353
      %v3355 = vpop.f32.mrb[0].mxu0
      %3356 = vmatprep.mubr.f32.mxu0 0.0
      %3357 = vmatmul.mubr.f32.gmra.mrb[0].mxu0 %v3181
      %v3358 = vpop.f32.mrb[0].mxu0
      %v3359 = vadd.f32 %v1095, %v3358
      %v3360 = vpop.f32.mrb[0].mxu0
      %3361 = vmatprep.mubr.f32.mxu0 0.0
      %3362 = vmatmul.mubr.f32.gmra.mrb[0].mxu0 %v3184
      %v3363 = vpop.f32.mrb[0].mxu0
      %v3364 = vadd.f32 %v1095, %v3363
      %v3365 = vpop.f32.mrb[0].mxu0
      %3366 = vmatprep.mubr.f32.mxu0 0.0
      %3367 = vmatmul.mubr.f32.gmra.mrb[0].mxu0 %v3187
      %v3368 = vpop.f32.mrb[0].mxu0
      %v3369 = vadd.f32 %v1095, %v3368
      %v3370 = vpop.f32.mrb[0].mxu0
      %3371 = vmatprep.mubr.f32.mxu0 0.0
      %3372 = vmatmul.mubr.f32.gmra.mrb[0].mxu0 %v3190
      %v3373 = vpop.f32.mrb[0].mxu0
      %v3374 = vadd.f32 %v1095, %v3373
      %v3375 = vpop.f32.mrb[0].mxu0
      %3376 = vmatprep.mubr.f32.mxu0 0.0
      %3377 = vmatmul.mubr.f32.gmra.mrb[0].mxu0 %v3193
      %v3378 = vpop.f32.mrb[0].mxu0
      %v3379 = vadd.f32 %v1095, %v3378
      %v3380 = vpop.f32.mrb[0].mxu0
      %3381 = vmatprep.mubr.f32.mxu0 0.0
      %3382 = vmatmul.mubr.f32.gmra.mrb[0].mxu0 %v3196
      %v3383 = vpop.f32.mrb[0].mxu0
      %v3384 = vadd.f32 %v1095, %v3383
      %v3385 = vpop.f32.mrb[0].mxu0
      %3386 = vmatprep.mubr.f32.mxu0 0.0
      %3387 = vmatmul.mubr.f32.gmra.mrb[0].mxu0 %v3199
      %v3388 = vpop.f32.mrb[0].mxu0
      %v3389 = vadd.f32 %v1095, %v3388
      %v3390 = vpop.f32.mrb[0].mxu0
      %3391 = vmatprep.mubr.f32.mxu0 0.0
      %3392 = vmatmul.mubr.f32.gmra.mrb[0].mxu0 %v3202
      %v3393 = vpop.f32.mrb[0].mxu0
      %v3394 = vadd.f32 %v1095, %v3393
      %v3395 = vpop.f32.mrb[0].mxu0
      %3396 = vmatprep.mubr.f32.mxu0 0.0
      %3397 = vmatmul.mubr.f32.gmra.mrb[0].mxu0 %v3205
      %v3398 = vpop.f32.mrb[0].mxu0
      %v3399 = vadd.f32 %v1095, %v3398
      %v3400 = vpop.f32.mrb[0].mxu0
      %3401 = vmatprep.mubr.f32.mxu0 0.0
      %3402 = vmatmul.mubr.f32.gmra.mrb[0].mxu0 %v3208
      %v3403 = vpop.f32.mrb[0].mxu0
      %v3404 = vadd.f32 %v1095, %v3403
      %v3405 = vpop.f32.mrb[0].mxu0
      %3406 = vmatprep.mubr.f32.mxu0 0.0
      %3407 = vmatmul.mubr.f32.gmra.mrb[0].mxu0 %v3211
      %v3408 = vpop.f32.mrb[0].mxu0
      %v3409 = vadd.f32 %v1095, %v3408
      %v3410 = vpop.f32.mrb[0].mxu0
      %3411 = vmatprep.mubr.f32.mxu0 0.0
      %3412 = vmatmul.mubr.f32.gmra.mrb[0].mxu0 %v3214
      %v3413 = vpop.f32.mrb[0].mxu0
      %v3414 = vadd.f32 %v1095, %v3413
      %v3415 = vpop.f32.mrb[0].mxu0
      %3416 = vmatprep.mubr.f32.mxu0 0.0
      %3417 = vmatmul.mubr.f32.gmra.mrb[0].mxu0 %v3217
      %v3418 = vpop.f32.mrb[0].mxu0
      %v3419 = vadd.f32 %v1095, %v3418
      %v3420 = vpop.f32.mrb[0].mxu0
      %3421 = vmatprep.mubr.f32.mxu0 0.0
      %3422 = vmatmul.mubr.f32.gmra.mrb[0].mxu0 %v3220
      %v3423 = vpop.f32.mrb[0].mxu0
      %v3424 = vadd.f32 %v1095, %v3423
      %v3425 = vpop.f32.mrb[0].mxu0
      %3426 = vmatprep.mubr.f32.mxu0 0.0
      %3427 = vmatmul.mubr.f32.gmra.mrb[0].mxu0 %v3223
      %v3428 = vpop.f32.mrb[0].mxu0
      %v3429 = vadd.f32 %v1095, %v3428
      %v3430 = vpop.f32.mrb[0].mxu0
      %3431 = vmatprep.mubr.f32.mxu0 0.0
      %3432 = vmatmul.mubr.f32.gmra.mrb[0].mxu0 %v3226
      %v3433 = vpop.f32.mrb[0].mxu0
      %v3434 = vadd.f32 %v1095, %v3433
      %v3435 = vpop.f32.mrb[0].mxu0
      %3436 = vmatprep.mubr.f32.mxu0 0.0
      %3437 = vmatmul.mubr.f32.gmra.mrb[0].mxu0 %v3229
      %v3438 = vpop.f32.mrb[0].mxu0
      %v3439 = vadd.f32 %v1095, %v3438
      %v3440 = vpop.f32.mrb[0].mxu0
      %3441 = vmatprep.mubr.f32.mxu0 0.0
      %3442 = vmatmul.mubr.f32.gmra.mrb[0].mxu0 %v3232
      %v3443 = vpop.f32.mrb[0].mxu0
      %v3444 = vadd.f32 %v1095, %v3443
      %v3445 = vpop.f32.mrb[0].mxu0
      %3446 = vmatprep.mubr.f32.mxu0 0.0
      %3447 = vmatmul.mubr.f32.gmra.mrb[0].mxu0 %v3235
      %v3448 = vpop.f32.mrb[0].mxu0
      %v3449 = vadd.f32 %v1095, %v3448
      %v3450 = vpop.f32.mrb[0].mxu0
      %3451 = vmatprep.mubr.f32.mxu0 0.0
      %3452 = vmatmul.mubr.f32.gmra.mrb[0].mxu0 %v3238
      %v3453 = vpop.f32.mrb[0].mxu0
      %v3454 = vadd.f32 %v1095, %v3453
      %v3455 = vpop.f32.mrb[0].mxu0
      %3456 = vmatprep.mubr.f32.mxu0 0.0
      %3457 = vmatmul.mubr.f32.gmra.mrb[0].mxu0 %v3241
      %v3458 = vpop.f32.mrb[0].mxu0
      %v3459 = vadd.f32 %v1095, %v3458
      %v3460 = vpop.f32.mrb[0].mxu0
      %3461 = vmatprep.mubr.f32.mxu0 0.0
      %3462 = vmatmul.mubr.f32.gmra.mrb[0].mxu0 %v3244
      %v3463 = vpop.f32.mrb[0].mxu0
      %v3464 = vadd.f32 %v1095, %v3463
      %v3465 = vpop.f32.mrb[0].mxu0
      %3466 = vmatprep.mubr.f32.mxu0 0.0
      %3467 = vmatmul.mubr.f32.gmra.mrb[0].mxu0 %v3247
      %v3468 = vpop.f32.mrb[0].mxu0
      %v3469 = vadd.f32 %v1095, %v3468
      %v3470 = vpop.f32.mrb[0].mxu0
      %3471 = vmatprep.mubr.f32.mxu0 0.0
      %3472 = vmatmul.mubr.f32.gmra.mrb[0].mxu0 %v3250
      %v3473 = vpop.f32.mrb[0].mxu0
      %v3474 = vadd.f32 %v1095, %v3473
      %v3475 = vpop.f32.mrb[0].mxu0
      %3476 = vdwg.mxu0
      %3509 = vrot.lane.b32.xlu0 %v3319, 8
      %v3510 = vpop.permute.xlu0 %3509
      %3511 = vrot.lane.b32.xlu0 %v3324, 8
      %v3512 = vpop.permute.xlu0 %3511
      %3513 = vrot.lane.b32.xlu0 %v3329, 8
      %v3514 = vpop.permute.xlu0 %3513
      %3515 = vrot.lane.b32.xlu0 %v3334, 8
      %v3516 = vpop.permute.xlu0 %3515
      %3517 = vrot.lane.b32.xlu0 %v3339, 8
      %v3518 = vpop.permute.xlu0 %3517
      %3519 = vrot.lane.b32.xlu0 %v3344, 8
      %v3520 = vpop.permute.xlu0 %3519
      %3521 = vrot.lane.b32.xlu0 %v3349, 8
      %v3522 = vpop.permute.xlu0 %3521
      %3523 = vrot.lane.b32.xlu0 %v3354, 8
      %v3524 = vpop.permute.xlu0 %3523
      %3525 = vrot.lane.b32.xlu0 %v3359, 8
      %v3526 = vpop.permute.xlu0 %3525
      %3527 = vrot.lane.b32.xlu0 %v3364, 8
      %v3528 = vpop.permute.xlu0 %3527
      %3529 = vrot.lane.b32.xlu0 %v3369, 8
      %v3530 = vpop.permute.xlu0 %3529
      %3531 = vrot.lane.b32.xlu0 %v3374, 8
      %v3532 = vpop.permute.xlu0 %3531
      %3533 = vrot.lane.b32.xlu0 %v3379, 8
      %v3534 = vpop.permute.xlu0 %3533
      %3535 = vrot.lane.b32.xlu0 %v3384, 8
      %v3536 = vpop.permute.xlu0 %3535
      %3537 = vrot.lane.b32.xlu0 %v3389, 8
      %v3538 = vpop.permute.xlu0 %3537
      %3539 = vrot.lane.b32.xlu0 %v3394, 8
      %v3540 = vpop.permute.xlu0 %3539
      %3541 = vrot.lane.b32.xlu0 %v3399, 8
      %v3542 = vpop.permute.xlu0 %3541
      %3543 = vrot.lane.b32.xlu0 %v3404, 8
      %v3544 = vpop.permute.xlu0 %3543
      %3545 = vrot.lane.b32.xlu0 %v3409, 8
      %v3546 = vpop.permute.xlu0 %3545
      %3547 = vrot.lane.b32.xlu0 %v3414, 8
      %v3548 = vpop.permute.xlu0 %3547
      %3549 = vrot.lane.b32.xlu0 %v3419, 8
      %v3550 = vpop.permute.xlu0 %3549
      %3551 = vrot.lane.b32.xlu0 %v3424, 8
      %v3552 = vpop.permute.xlu0 %3551
      %3553 = vrot.lane.b32.xlu0 %v3429, 8
      %v3554 = vpop.permute.xlu0 %3553
      %3555 = vrot.lane.b32.xlu0 %v3434, 8
      %v3556 = vpop.permute.xlu0 %3555
      %3557 = vrot.lane.b32.xlu0 %v3439, 8
      %v3558 = vpop.permute.xlu0 %3557
      %3559 = vrot.lane.b32.xlu0 %v3444, 8
      %v3560 = vpop.permute.xlu0 %3559
      %3561 = vrot.lane.b32.xlu0 %v3449, 8
      %v3562 = vpop.permute.xlu0 %3561
      %3563 = vrot.lane.b32.xlu0 %v3454, 8
      %v3564 = vpop.permute.xlu0 %3563
      %3565 = vrot.lane.b32.xlu0 %v3459, 8
      %v3566 = vpop.permute.xlu0 %3565
      %3567 = vrot.lane.b32.xlu0 %v3464, 8
      %v3568 = vpop.permute.xlu0 %3567
      %3569 = vrot.lane.b32.xlu0 %v3469, 8
      %v3570 = vpop.permute.xlu0 %3569
      %3571 = vrot.lane.b32.xlu0 %v3474, 8
      %v3572 = vpop.permute.xlu0 %3571
      %vm3605 = vcmask 97344
      %3606 = vst.msk [vmem:[%s364] sm:$0xff] %vm3605, %v3510
      %3607 = vst.msk [vmem:[%s364 + $0x8] sm:$0xff] %vm3605, %v3512
      %3608 = vst.msk [vmem:[%s364 + $0x10] sm:$0xff] %vm3605, %v3514
      %3609 = vst.msk [vmem:[%s364 + $0x18] sm:$0xff] %vm3605, %v3516
      %3610 = vst.msk [vmem:[%s364 + $0x20] sm:$0xff] %vm3605, %v3518
      %3611 = vst.msk [vmem:[%s364 + $0x28] sm:$0xff] %vm3605, %v3520
      %3612 = vst.msk [vmem:[%s364 + $0x30] sm:$0xff] %vm3605, %v3522
      %3613 = vst.msk [vmem:[%s364 + $0x38] sm:$0xff] %vm3605, %v3524
      %3614 = vst.msk [vmem:[%s364 + $0x40] sm:$0xff] %vm3605, %v3526
      %3615 = vst.msk [vmem:[%s364 + $0x48] sm:$0xff] %vm3605, %v3528
      %3616 = vst.msk [vmem:[%s364 + $0x50] sm:$0xff] %vm3605, %v3530
      %3617 = vst.msk [vmem:[%s364 + $0x58] sm:$0xff] %vm3605, %v3532
      %3618 = vst.msk [vmem:[%s364 + $0x60] sm:$0xff] %vm3605, %v3534
      %3619 = vst.msk [vmem:[%s364 + $0x68] sm:$0xff] %vm3605, %v3536
      %3620 = vst.msk [vmem:[%s364 + $0x70] sm:$0xff] %vm3605, %v3538
      %3621 = vst.msk [vmem:[%s364 + $0x78] sm:$0xff] %vm3605, %v3540
      %3622 = vst.msk [vmem:[%s364 + $0x80] sm:$0xff] %vm3605, %v3542
      %3623 = vst.msk [vmem:[%s364 + $0x88] sm:$0xff] %vm3605, %v3544
      %3624 = vst.msk [vmem:[%s364 + $0x90] sm:$0xff] %vm3605, %v3546
      %3625 = vst.msk [vmem:[%s364 + $0x98] sm:$0xff] %vm3605, %v3548
      %3626 = vst.msk [vmem:[%s364 + $0xa0] sm:$0xff] %vm3605, %v3550
      %3627 = vst.msk [vmem:[%s364 + $0xa8] sm:$0xff] %vm3605, %v3552
      %3628 = vst.msk [vmem:[%s364 + $0xb0] sm:$0xff] %vm3605, %v3554
      %3629 = vst.msk [vmem:[%s364 + $0xb8] sm:$0xff] %vm3605, %v3556
      %3630 = vst.msk [vmem:[%s364 + $0xc0] sm:$0xff] %vm3605, %v3558
      %3631 = vst.msk [vmem:[%s364 + $0xc8] sm:$0xff] %vm3605, %v3560
      %3632 = vst.msk [vmem:[%s364 + $0xd0] sm:$0xff] %vm3605, %v3562
      %3633 = vst.msk [vmem:[%s364 + $0xd8] sm:$0xff] %vm3605, %v3564
      %3634 = vst.msk [vmem:[%s364 + $0xe0] sm:$0xff] %vm3605, %v3566
      %3635 = vst.msk [vmem:[%s364 + $0xe8] sm:$0xff] %vm3605, %v3568
      %3636 = vst.msk [vmem:[%s364 + $0xf0] sm:$0xff] %vm3605, %v3570
      %3637 = vst.msk [vmem:[%s364 + $0xf8] sm:$0xff] %vm3605, %v3572
      %v3638 = vld [vmem:[%s542 + $0x1] sm:$0xff]
      %v3639 = vld [vmem:[%s542 + $0x9] sm:$0xff]
      %v3640 = vld [vmem:[%s542 + $0x19] sm:$0xff]
      %v3641 = vld [vmem:[%s542 + $0x21] sm:$0xff]
      %v3642 = vld [vmem:[%s542 + $0x31] sm:$0xff]
      %v3643 = vld [vmem:[%s542 + $0x39] sm:$0xff]
      %v3644 = vld [vmem:[%s542 + $0x49] sm:$0xff]
      %v3645 = vld [vmem:[%s542 + $0x51] sm:$0xff]
      %v3646 = vld [vmem:[%s542 + $0x61] sm:$0xff]
      %v3647 = vld [vmem:[%s542 + $0x69] sm:$0xff]
      %v3648 = vld [vmem:[%s542 + $0x79] sm:$0xff]
      %v3649 = vld [vmem:[%s542 + $0x81] sm:$0xff]
      %v3650 = vld [vmem:[%s542 + $0x91] sm:$0xff]
      %v3651 = vld [vmem:[%s542 + $0x99] sm:$0xff]
      %v3652 = vld [vmem:[%s542 + $0xa9] sm:$0xff]
      %v3653 = vld [vmem:[%s542 + $0xb1] sm:$0xff]
      %v3654 = vld [vmem:[%s542 + $0xc1] sm:$0xff]
      %v3655 = vld [vmem:[%s542 + $0xc9] sm:$0xff]
      %v3656 = vld [vmem:[%s542 + $0xd9] sm:$0xff]
      %v3657 = vld [vmem:[%s542 + $0xe1] sm:$0xff]
      %v3658 = vld [vmem:[%s542 + $0xf1] sm:$0xff]
      %v3659 = vld [vmem:[%s542 + $0xf9] sm:$0xff]
      %v3660 = vld [vmem:[%s542 + $0x109] sm:$0xff]
      %v3661 = vld [vmem:[%s542 + $0x111] sm:$0xff]
      %v3662 = vld [vmem:[%s542 + $0x121] sm:$0xff]
      %v3663 = vld [vmem:[%s542 + $0x129] sm:$0xff]
      %v3664 = vld [vmem:[%s542 + $0x139] sm:$0xff]
      %v3665 = vld [vmem:[%s542 + $0x141] sm:$0xff]
      %v3666 = vld [vmem:[%s542 + $0x151] sm:$0xff]
      %v3667 = vld [vmem:[%s542 + $0x159] sm:$0xff]
      %v3668 = vld [vmem:[%s542 + $0x169] sm:$0xff]
      %v3669 = vld [vmem:[%s542 + $0x171] sm:$0xff]
      %v3670 = vld [vmem:[%s542 + $0x2] sm:$0xff]
      %v3671 = vld [vmem:[%s542 + $0xa] sm:$0xff]
      %v3672 = vld [vmem:[%s542 + $0x1a] sm:$0xff]
      %v3673 = vld [vmem:[%s542 + $0x22] sm:$0xff]
      %v3674 = vld [vmem:[%s542 + $0x32] sm:$0xff]
      %v3675 = vld [vmem:[%s542 + $0x3a] sm:$0xff]
      %v3676 = vld [vmem:[%s542 + $0x4a] sm:$0xff]
      %v3677 = vld [vmem:[%s542 + $0x52] sm:$0xff]
      %v3678 = vld [vmem:[%s542 + $0x62] sm:$0xff]
      %v3679 = vld [vmem:[%s542 + $0x6a] sm:$0xff]
      %v3680 = vld [vmem:[%s542 + $0x7a] sm:$0xff]
      %v3681 = vld [vmem:[%s542 + $0x82] sm:$0xff]
      %v3682 = vld [vmem:[%s542 + $0x92] sm:$0xff]
      %v3683 = vld [vmem:[%s542 + $0x9a] sm:$0xff]
      %v3684 = vld [vmem:[%s542 + $0xaa] sm:$0xff]
      %v3685 = vld [vmem:[%s542 + $0xb2] sm:$0xff]
      %v3686 = vld [vmem:[%s542 + $0xc2] sm:$0xff]
      %v3687 = vld [vmem:[%s542 + $0xca] sm:$0xff]
      %v3688 = vld [vmem:[%s542 + $0xda] sm:$0xff]
      %v3689 = vld [vmem:[%s542 + $0xe2] sm:$0xff]
      %v3690 = vld [vmem:[%s542 + $0xf2] sm:$0xff]
      %v3691 = vld [vmem:[%s542 + $0xfa] sm:$0xff]
      %v3692 = vld [vmem:[%s542 + $0x10a] sm:$0xff]
      %v3693 = vld [vmem:[%s542 + $0x112] sm:$0xff]
      %v3694 = vld [vmem:[%s542 + $0x122] sm:$0xff]
      %v3695 = vld [vmem:[%s542 + $0x12a] sm:$0xff]
      %v3696 = vld [vmem:[%s542 + $0x13a] sm:$0xff]
      %v3697 = vld [vmem:[%s542 + $0x142] sm:$0xff]
      %v3698 = vld [vmem:[%s542 + $0x152] sm:$0xff]
      %v3699 = vld [vmem:[%s542 + $0x15a] sm:$0xff]
      %v3700 = vld [vmem:[%s542 + $0x16a] sm:$0xff]
      %v3701 = vld [vmem:[%s542 + $0x172] sm:$0xff]
      %v3702 = vld [vmem:[%s2608 + $0x1] sm:$0xff]
      %v3703 = vld [vmem:[%s2608 + $0x9] sm:$0xff]
      %v3704 = vld [vmem:[%s2608 + $0x19] sm:$0xff]
      %v3705 = vld [vmem:[%s2608 + $0x21] sm:$0xff]
      %v3706 = vld [vmem:[%s2608 + $0x31] sm:$0xff]
      %v3707 = vld [vmem:[%s2608 + $0x39] sm:$0xff]
      %v3708 = vld [vmem:[%s2608 + $0x49] sm:$0xff]
      %v3709 = vld [vmem:[%s2608 + $0x51] sm:$0xff]
      %v3710 = vld [vmem:[%s2608 + $0x61] sm:$0xff]
      %v3711 = vld [vmem:[%s2608 + $0x69] sm:$0xff]
      %v3712 = vld [vmem:[%s2608 + $0x79] sm:$0xff]
      %v3713 = vld [vmem:[%s2608 + $0x81] sm:$0xff]
      %v3714 = vld [vmem:[%s2608 + $0x91] sm:$0xff]
      %v3715 = vld [vmem:[%s2608 + $0x99] sm:$0xff]
      %v3716 = vld [vmem:[%s2608 + $0xa9] sm:$0xff]
      %v3717 = vld [vmem:[%s2608 + $0xb1] sm:$0xff]
      %v3718 = vld [vmem:[%s2608 + $0xc1] sm:$0xff]
      %v3719 = vld [vmem:[%s2608 + $0xc9] sm:$0xff]
      %v3720 = vld [vmem:[%s2608 + $0xd9] sm:$0xff]
      %v3721 = vld [vmem:[%s2608 + $0xe1] sm:$0xff]
      %v3722 = vld [vmem:[%s2608 + $0xf1] sm:$0xff]
      %v3723 = vld [vmem:[%s2608 + $0xf9] sm:$0xff]
      %v3724 = vld [vmem:[%s2608 + $0x109] sm:$0xff]
      %v3725 = vld [vmem:[%s2608 + $0x111] sm:$0xff]
      %v3726 = vld [vmem:[%s2608 + $0x121] sm:$0xff]
      %v3727 = vld [vmem:[%s2608 + $0x129] sm:$0xff]
      %v3728 = vld [vmem:[%s2608 + $0x139] sm:$0xff]
      %v3729 = vld [vmem:[%s2608 + $0x141] sm:$0xff]
      %v3730 = vld [vmem:[%s2608 + $0x151] sm:$0xff]
      %v3731 = vld [vmem:[%s2608 + $0x159] sm:$0xff]
      %v3732 = vld [vmem:[%s2608 + $0x169] sm:$0xff]
      %v3733 = vld [vmem:[%s2608 + $0x171] sm:$0xff]
      %v3734 = vld [vmem:[%s2608 + $0x2] sm:$0xff]
      %v3735 = vld [vmem:[%s2608 + $0xa] sm:$0xff]
      %v3736 = vld [vmem:[%s2608 + $0x1a] sm:$0xff]
      %v3737 = vld [vmem:[%s2608 + $0x22] sm:$0xff]
      %v3738 = vld [vmem:[%s2608 + $0x32] sm:$0xff]
      %v3739 = vld [vmem:[%s2608 + $0x3a] sm:$0xff]
      %v3740 = vld [vmem:[%s2608 + $0x4a] sm:$0xff]
      %v3741 = vld [vmem:[%s2608 + $0x52] sm:$0xff]
      %v3742 = vld [vmem:[%s2608 + $0x62] sm:$0xff]
      %v3743 = vld [vmem:[%s2608 + $0x6a] sm:$0xff]
      %v3744 = vld [vmem:[%s2608 + $0x7a] sm:$0xff]
      %v3745 = vld [vmem:[%s2608 + $0x82] sm:$0xff]
      %v3746 = vld [vmem:[%s2608 + $0x92] sm:$0xff]
      %v3747 = vld [vmem:[%s2608 + $0x9a] sm:$0xff]
      %v3748 = vld [vmem:[%s2608 + $0xaa] sm:$0xff]
      %v3749 = vld [vmem:[%s2608 + $0xb2] sm:$0xff]
      %v3750 = vld [vmem:[%s2608 + $0xc2] sm:$0xff]
      %v3751 = vld [vmem:[%s2608 + $0xca] sm:$0xff]
      %v3752 = vld [vmem:[%s2608 + $0xda] sm:$0xff]
      %v3753 = vld [vmem:[%s2608 + $0xe2] sm:$0xff]
      %v3754 = vld [vmem:[%s2608 + $0xf2] sm:$0xff]
      %v3755 = vld [vmem:[%s2608 + $0xfa] sm:$0xff]
      %v3756 = vld [vmem:[%s2608 + $0x10a] sm:$0xff]
      %v3757 = vld [vmem:[%s2608 + $0x112] sm:$0xff]
      %v3758 = vld [vmem:[%s2608 + $0x122] sm:$0xff]
      %v3759 = vld [vmem:[%s2608 + $0x12a] sm:$0xff]
      %v3760 = vld [vmem:[%s2608 + $0x13a] sm:$0xff]
      %v3761 = vld [vmem:[%s2608 + $0x142] sm:$0xff]
      %v3762 = vld [vmem:[%s2608 + $0x152] sm:$0xff]
      %v3763 = vld [vmem:[%s2608 + $0x15a] sm:$0xff]
      %v3764 = vld [vmem:[%s2608 + $0x16a] sm:$0xff]
      %v3765 = vld [vmem:[%s2608 + $0x172] sm:$0xff]
      %3798 = vrot.lane.b32.xlu0 %v3670, 4
      %v3799 = vpop.permute.xlu0 %3798
      %3800 = vrot.lane.b32.xlu0 %v3671, 4
      %v3801 = vpop.permute.xlu0 %3800
      %3802 = vrot.lane.b32.xlu0 %v3672, 4
      %v3803 = vpop.permute.xlu0 %3802
      %3804 = vrot.lane.b32.xlu0 %v3673, 4
      %v3805 = vpop.permute.xlu0 %3804
      %3806 = vrot.lane.b32.xlu0 %v3674, 4
      %v3807 = vpop.permute.xlu0 %3806
      %3808 = vrot.lane.b32.xlu0 %v3675, 4
      %v3809 = vpop.permute.xlu0 %3808
      %3810 = vrot.lane.b32.xlu0 %v3676, 4
      %v3811 = vpop.permute.xlu0 %3810
      %3812 = vrot.lane.b32.xlu0 %v3677, 4
      %v3813 = vpop.permute.xlu0 %3812
      %3814 = vrot.lane.b32.xlu0 %v3678, 4
      %v3815 = vpop.permute.xlu0 %3814
      %3816 = vrot.lane.b32.xlu0 %v3679, 4
      %v3817 = vpop.permute.xlu0 %3816
      %3818 = vrot.lane.b32.xlu0 %v3680, 4
      %v3819 = vpop.permute.xlu0 %3818
      %3820 = vrot.lane.b32.xlu0 %v3681, 4
      %v3821 = vpop.permute.xlu0 %3820
      %3822 = vrot.lane.b32.xlu0 %v3682, 4
      %v3823 = vpop.permute.xlu0 %3822
      %3824 = vrot.lane.b32.xlu0 %v3683, 4
      %v3825 = vpop.permute.xlu0 %3824
      %3826 = vrot.lane.b32.xlu0 %v3684, 4
      %v3827 = vpop.permute.xlu0 %3826
      %3828 = vrot.lane.b32.xlu0 %v3685, 4
      %v3829 = vpop.permute.xlu0 %3828
      %3830 = vrot.lane.b32.xlu0 %v3686, 4
      %v3831 = vpop.permute.xlu0 %3830
      %3832 = vrot.lane.b32.xlu0 %v3687, 4
      %v3833 = vpop.permute.xlu0 %3832
      %3834 = vrot.lane.b32.xlu0 %v3688, 4
      %v3835 = vpop.permute.xlu0 %3834
      %3836 = vrot.lane.b32.xlu0 %v3689, 4
      %v3837 = vpop.permute.xlu0 %3836
      %3838 = vrot.lane.b32.xlu0 %v3690, 4
      %v3839 = vpop.permute.xlu0 %3838
      %3840 = vrot.lane.b32.xlu0 %v3691, 4
      %v3841 = vpop.permute.xlu0 %3840
      %3842 = vrot.lane.b32.xlu0 %v3692, 4
      %v3843 = vpop.permute.xlu0 %3842
      %3844 = vrot.lane.b32.xlu0 %v3693, 4
      %v3845 = vpop.permute.xlu0 %3844
      %3846 = vrot.lane.b32.xlu0 %v3694, 4
      %v3847 = vpop.permute.xlu0 %3846
      %3848 = vrot.lane.b32.xlu0 %v3695, 4
      %v3849 = vpop.permute.xlu0 %3848
      %3850 = vrot.lane.b32.xlu0 %v3696, 4
      %v3851 = vpop.permute.xlu0 %3850
      %3852 = vrot.lane.b32.xlu0 %v3697, 4
      %v3853 = vpop.permute.xlu0 %3852
      %3854 = vrot.lane.b32.xlu0 %v3698, 4
      %v3855 = vpop.permute.xlu0 %3854
      %3856 = vrot.lane.b32.xlu0 %v3699, 4
      %v3857 = vpop.permute.xlu0 %3856
      %3858 = vrot.lane.b32.xlu0 %v3700, 4
      %v3859 = vpop.permute.xlu0 %3858
      %3860 = vrot.lane.b32.xlu0 %v3701, 4
      %v3861 = vpop.permute.xlu0 %3860
      %3926 = vrot.lane.b32.xlu0 %v3702, 8
      %v3927 = vpop.permute.xlu0 %3926
      %3928 = vrot.lane.b32.xlu0 %v3703, 8
      %v3929 = vpop.permute.xlu0 %3928
      %3930 = vrot.lane.b32.xlu0 %v3704, 8
      %v3931 = vpop.permute.xlu0 %3930
      %3932 = vrot.lane.b32.xlu0 %v3705, 8
      %v3933 = vpop.permute.xlu0 %3932
      %3934 = vrot.lane.b32.xlu0 %v3706, 8
      %v3935 = vpop.permute.xlu0 %3934
      %3936 = vrot.lane.b32.xlu0 %v3707, 8
      %v3937 = vpop.permute.xlu0 %3936
      %3938 = vrot.lane.b32.xlu0 %v3708, 8
      %v3939 = vpop.permute.xlu0 %3938
      %3940 = vrot.lane.b32.xlu0 %v3709, 8
      %v3941 = vpop.permute.xlu0 %3940
      %3942 = vrot.lane.b32.xlu0 %v3710, 8
      %v3943 = vpop.permute.xlu0 %3942
      %3944 = vrot.lane.b32.xlu0 %v3711, 8
      %v3945 = vpop.permute.xlu0 %3944
      %3946 = vrot.lane.b32.xlu0 %v3712, 8
      %v3947 = vpop.permute.xlu0 %3946
      %3948 = vrot.lane.b32.xlu0 %v3713, 8
      %v3949 = vpop.permute.xlu0 %3948
      %3950 = vrot.lane.b32.xlu0 %v3714, 8
      %v3951 = vpop.permute.xlu0 %3950
      %3952 = vrot.lane.b32.xlu0 %v3715, 8
      %v3953 = vpop.permute.xlu0 %3952
      %3954 = vrot.lane.b32.xlu0 %v3716, 8
      %v3955 = vpop.permute.xlu0 %3954
      %3956 = vrot.lane.b32.xlu0 %v3717, 8
      %v3957 = vpop.permute.xlu0 %3956
      %3958 = vrot.lane.b32.xlu0 %v3718, 8
      %v3959 = vpop.permute.xlu0 %3958
      %3960 = vrot.lane.b32.xlu0 %v3719, 8
      %v3961 = vpop.permute.xlu0 %3960
      %3962 = vrot.lane.b32.xlu0 %v3720, 8
      %v3963 = vpop.permute.xlu0 %3962
      %3964 = vrot.lane.b32.xlu0 %v3721, 8
      %v3965 = vpop.permute.xlu0 %3964
      %3966 = vrot.lane.b32.xlu0 %v3722, 8
      %v3967 = vpop.permute.xlu0 %3966
      %3968 = vrot.lane.b32.xlu0 %v3723, 8
      %v3969 = vpop.permute.xlu0 %3968
      %3970 = vrot.lane.b32.xlu0 %v3724, 8
      %v3971 = vpop.permute.xlu0 %3970
      %3972 = vrot.lane.b32.xlu0 %v3725, 8
      %v3973 = vpop.permute.xlu0 %3972
      %3974 = vrot.lane.b32.xlu0 %v3726, 8
      %v3975 = vpop.permute.xlu0 %3974
      %3976 = vrot.lane.b32.xlu0 %v3727, 8
      %v3977 = vpop.permute.xlu0 %3976
      %3978 = vrot.lane.b32.xlu0 %v3728, 8
      %v3979 = vpop.permute.xlu0 %3978
      %3980 = vrot.lane.b32.xlu0 %v3729, 8
      %v3981 = vpop.permute.xlu0 %3980
      %3982 = vrot.lane.b32.xlu0 %v3730, 8
      %v3983 = vpop.permute.xlu0 %3982
      %3984 = vrot.lane.b32.xlu0 %v3731, 8
      %v3985 = vpop.permute.xlu0 %3984
      %3986 = vrot.lane.b32.xlu0 %v3732, 8
      %v3987 = vpop.permute.xlu0 %3986
      %3988 = vrot.lane.b32.xlu0 %v3733, 8
      %v3989 = vpop.permute.xlu0 %3988
      %4054 = vrot.lane.b32.xlu0 %v3734, 12
      %v4055 = vpop.permute.xlu0 %4054
      %4056 = vrot.lane.b32.xlu0 %v3735, 12
      %v4057 = vpop.permute.xlu0 %4056
      %4058 = vrot.lane.b32.xlu0 %v3736, 12
      %v4059 = vpop.permute.xlu0 %4058
      %4060 = vrot.lane.b32.xlu0 %v3737, 12
      %v4061 = vpop.permute.xlu0 %4060
      %4062 = vrot.lane.b32.xlu0 %v3738, 12
      %v4063 = vpop.permute.xlu0 %4062
      %4064 = vrot.lane.b32.xlu0 %v3739, 12
      %v4065 = vpop.permute.xlu0 %4064
      %4066 = vrot.lane.b32.xlu0 %v3740, 12
      %v4067 = vpop.permute.xlu0 %4066
      %4068 = vrot.lane.b32.xlu0 %v3741, 12
      %v4069 = vpop.permute.xlu0 %4068
      %4070 = vrot.lane.b32.xlu0 %v3742, 12
      %v4071 = vpop.permute.xlu0 %4070
      %4072 = vrot.lane.b32.xlu0 %v3743, 12
      %v4073 = vpop.permute.xlu0 %4072
      %4074 = vrot.lane.b32.xlu0 %v3744, 12
      %v4075 = vpop.permute.xlu0 %4074
      %4076 = vrot.lane.b32.xlu0 %v3745, 12
      %v4077 = vpop.permute.xlu0 %4076
      %4078 = vrot.lane.b32.xlu0 %v3746, 12
      %v4079 = vpop.permute.xlu0 %4078
      %4080 = vrot.lane.b32.xlu0 %v3747, 12
      %v4081 = vpop.permute.xlu0 %4080
      %4082 = vrot.lane.b32.xlu0 %v3748, 12
      %v4083 = vpop.permute.xlu0 %4082
      %4084 = vrot.lane.b32.xlu0 %v3749, 12
      %v4085 = vpop.permute.xlu0 %4084
      %4086 = vrot.lane.b32.xlu0 %v3750, 12
      %v4087 = vpop.permute.xlu0 %4086
      %4088 = vrot.lane.b32.xlu0 %v3751, 12
      %v4089 = vpop.permute.xlu0 %4088
      %4090 = vrot.lane.b32.xlu0 %v3752, 12
      %v4091 = vpop.permute.xlu0 %4090
      %4092 = vrot.lane.b32.xlu0 %v3753, 12
      %v4093 = vpop.permute.xlu0 %4092
      %4094 = vrot.lane.b32.xlu0 %v3754, 12
      %v4095 = vpop.permute.xlu0 %4094
      %4096 = vrot.lane.b32.xlu0 %v3755, 12
      %v4097 = vpop.permute.xlu0 %4096
      %4098 = vrot.lane.b32.xlu0 %v3756, 12
      %v4099 = vpop.permute.xlu0 %4098
      %4100 = vrot.lane.b32.xlu0 %v3757, 12
      %v4101 = vpop.permute.xlu0 %4100
      %4102 = vrot.lane.b32.xlu0 %v3758, 12
      %v4103 = vpop.permute.xlu0 %4102
      %4104 = vrot.lane.b32.xlu0 %v3759, 12
      %v4105 = vpop.permute.xlu0 %4104
      %4106 = vrot.lane.b32.xlu0 %v3760, 12
      %v4107 = vpop.permute.xlu0 %4106
      %4108 = vrot.lane.b32.xlu0 %v3761, 12
      %v4109 = vpop.permute.xlu0 %4108
      %4110 = vrot.lane.b32.xlu0 %v3762, 12
      %v4111 = vpop.permute.xlu0 %4110
      %4112 = vrot.lane.b32.xlu0 %v3763, 12
      %v4113 = vpop.permute.xlu0 %4112
      %4114 = vrot.lane.b32.xlu0 %v3764, 12
      %v4115 = vpop.permute.xlu0 %4114
      %4116 = vrot.lane.b32.xlu0 %v3765, 12
      %v4117 = vpop.permute.xlu0 %4116
      %v4150 = vsel %vm414, %v3638, %v3799
      %v4151 = vsel %vm414, %v3639, %v3801
      %v4152 = vsel %vm414, %v3640, %v3803
      %v4153 = vsel %vm414, %v3641, %v3805
      %v4154 = vsel %vm414, %v3642, %v3807
      %v4155 = vsel %vm414, %v3643, %v3809
      %v4156 = vsel %vm414, %v3644, %v3811
      %v4157 = vsel %vm414, %v3645, %v3813
      %v4158 = vsel %vm414, %v3646, %v3815
      %v4159 = vsel %vm414, %v3647, %v3817
      %v4160 = vsel %vm414, %v3648, %v3819
      %v4161 = vsel %vm414, %v3649, %v3821
      %v4162 = vsel %vm414, %v3650, %v3823
      %v4163 = vsel %vm414, %v3651, %v3825
      %v4164 = vsel %vm414, %v3652, %v3827
      %v4165 = vsel %vm414, %v3653, %v3829
      %v4166 = vsel %vm414, %v3654, %v3831
      %v4167 = vsel %vm414, %v3655, %v3833
      %v4168 = vsel %vm414, %v3656, %v3835
      %v4169 = vsel %vm414, %v3657, %v3837
      %v4170 = vsel %vm414, %v3658, %v3839
      %v4171 = vsel %vm414, %v3659, %v3841
      %v4172 = vsel %vm414, %v3660, %v3843
      %v4173 = vsel %vm414, %v3661, %v3845
      %v4174 = vsel %vm414, %v3662, %v3847
      %v4175 = vsel %vm414, %v3663, %v3849
      %v4176 = vsel %vm414, %v3664, %v3851
      %v4177 = vsel %vm414, %v3665, %v3853
      %v4178 = vsel %vm414, %v3666, %v3855
      %v4179 = vsel %vm414, %v3667, %v3857
      %v4180 = vsel %vm414, %v3668, %v3859
      %v4181 = vsel %vm414, %v3669, %v3861
      %v4182 = vsel %vm1023, %v4150, %v3927
      %v4183 = vsel %vm1023, %v4151, %v3929
      %v4184 = vsel %vm1023, %v4152, %v3931
      %v4185 = vsel %vm1023, %v4153, %v3933
      %v4186 = vsel %vm1023, %v4154, %v3935
      %v4187 = vsel %vm1023, %v4155, %v3937
      %v4188 = vsel %vm1023, %v4156, %v3939
      %v4189 = vsel %vm1023, %v4157, %v3941
      %v4190 = vsel %vm1023, %v4158, %v3943
      %v4191 = vsel %vm1023, %v4159, %v3945
      %v4192 = vsel %vm1023, %v4160, %v3947
      %v4193 = vsel %vm1023, %v4161, %v3949
      %v4194 = vsel %vm1023, %v4162, %v3951
      %v4195 = vsel %vm1023, %v4163, %v3953
      %v4196 = vsel %vm1023, %v4164, %v3955
      %v4197 = vsel %vm1023, %v4165, %v3957
      %v4198 = vsel %vm1023, %v4166, %v3959
      %v4199 = vsel %vm1023, %v4167, %v3961
      %v4200 = vsel %vm1023, %v4168, %v3963
      %v4201 = vsel %vm1023, %v4169, %v3965
      %v4202 = vsel %vm1023, %v4170, %v3967
      %v4203 = vsel %vm1023, %v4171, %v3969
      %v4204 = vsel %vm1023, %v4172, %v3971
      %v4205 = vsel %vm1023, %v4173, %v3973
      %v4206 = vsel %vm1023, %v4174, %v3975
      %v4207 = vsel %vm1023, %v4175, %v3977
      %v4208 = vsel %vm1023, %v4176, %v3979
      %v4209 = vsel %vm1023, %v4177, %v3981
      %v4210 = vsel %vm1023, %v4178, %v3983
      %v4211 = vsel %vm1023, %v4179, %v3985
      %v4212 = vsel %vm1023, %v4180, %v3987
      %v4213 = vsel %vm1023, %v4181, %v3989
      %v4214 = vsel %vm1056, %v4182, %v4055
      %v4215 = vsel %vm1056, %v4183, %v4057
      %v4216 = vsel %vm1056, %v4184, %v4059
      %v4217 = vsel %vm1056, %v4185, %v4061
      %v4218 = vsel %vm1056, %v4186, %v4063
      %v4219 = vsel %vm1056, %v4187, %v4065
      %v4220 = vsel %vm1056, %v4188, %v4067
      %v4221 = vsel %vm1056, %v4189, %v4069
      %v4222 = vsel %vm1056, %v4190, %v4071
      %v4223 = vsel %vm1056, %v4191, %v4073
      %v4224 = vsel %vm1056, %v4192, %v4075
      %v4225 = vsel %vm1056, %v4193, %v4077
      %v4226 = vsel %vm1056, %v4194, %v4079
      %v4227 = vsel %vm1056, %v4195, %v4081
      %v4228 = vsel %vm1056, %v4196, %v4083
      %v4229 = vsel %vm1056, %v4197, %v4085
      %v4230 = vsel %vm1056, %v4198, %v4087
      %v4231 = vsel %vm1056, %v4199, %v4089
      %v4232 = vsel %vm1056, %v4200, %v4091
      %v4233 = vsel %vm1056, %v4201, %v4093
      %v4234 = vsel %vm1056, %v4202, %v4095
      %v4235 = vsel %vm1056, %v4203, %v4097
      %v4236 = vsel %vm1056, %v4204, %v4099
      %v4237 = vsel %vm1056, %v4205, %v4101
      %v4238 = vsel %vm1056, %v4206, %v4103
      %v4239 = vsel %vm1056, %v4207, %v4105
      %v4240 = vsel %vm1056, %v4208, %v4107
      %v4241 = vsel %vm1056, %v4209, %v4109
      %v4242 = vsel %vm1056, %v4210, %v4111
      %v4243 = vsel %vm1056, %v4211, %v4113
      %v4244 = vsel %vm1056, %v4212, %v4115
      %v4245 = vsel %vm1056, %v4213, %v4117
      %s4246 = scalar_lea.vmem %s348, 48
      %v4247 = vld [vmem:[%s4246] sm:$0xff]
      %v4248 = vld [vmem:[%s4246 + $0x8] sm:$0xff]
      %v4250 = vsel %vm1097, %v4214, 0
      %v4253 = vsel %vm1097, %v4215, 0
      %v4256 = vsel %vm1097, %v4216, 0
      %v4259 = vsel %vm1097, %v4217, 0
      %v4262 = vsel %vm1097, %v4218, 0
      %v4265 = vsel %vm1097, %v4219, 0
      %v4268 = vsel %vm1097, %v4220, 0
      %v4271 = vsel %vm1097, %v4221, 0
      %v4274 = vsel %vm1097, %v4222, 0
      %v4277 = vsel %vm1097, %v4223, 0
      %v4280 = vsel %vm1097, %v4224, 0
      %v4283 = vsel %vm1097, %v4225, 0
      %v4286 = vsel %vm1097, %v4226, 0
      %v4289 = vsel %vm1097, %v4227, 0
      %v4292 = vsel %vm1097, %v4228, 0
      %v4295 = vsel %vm1097, %v4229, 0
      %v4298 = vsel %vm1097, %v4230, 0
      %v4301 = vsel %vm1097, %v4231, 0
      %v4304 = vsel %vm1097, %v4232, 0
      %v4307 = vsel %vm1097, %v4233, 0
      %v4310 = vsel %vm1097, %v4234, 0
      %v4313 = vsel %vm1097, %v4235, 0
      %v4316 = vsel %vm1097, %v4236, 0
      %v4319 = vsel %vm1097, %v4237, 0
      %v4322 = vsel %vm1097, %v4238, 0
      %v4325 = vsel %vm1097, %v4239, 0
      %v4328 = vsel %vm1097, %v4240, 0
      %v4331 = vsel %vm1097, %v4241, 0
      %v4334 = vsel %vm1097, %v4242, 0
      %v4337 = vsel %vm1097, %v4243, 0
      %v4340 = vsel %vm1097, %v4244, 0
      %v4343 = vsel %vm1097, %v4245, 0
      %4345 = vmatprep.subr.mxu0 0.0
      %4346 = vmatpush1.msra.mxu0 %v4247
      %4347 = vmatprep.subr.mxu0 0.0
      %4348 = vmatpush1.msra.mxu0 %v4248
      %4349 = vmatprep.subr.mxu0 0.0
      %4350 = vmatpush1.msra.mxu0 0.0
      %4351 = vmatprep.subr.mxu0 0.0
      %4352 = vmatpush1.msra.mxu0 0.0
      %4353 = vmatprep.subr.mxu0 0.0
      %4354 = vmatpush1.msra.mxu0 0.0
      %4355 = vmatprep.subr.mxu0 0.0
      %4356 = vmatpush1.msra.mxu0 0.0
      %4357 = vmatprep.subr.mxu0 0.0
      %4358 = vmatpush1.msra.mxu0 0.0
      %4359 = vmatprep.subr.mxu0 0.0
      %4360 = vmatpush1.msra.mxu0 0.0
      %4361 = vmatprep.subr.mxu0 0.0
      %4362 = vmatpush1.msra.mxu0 0.0
      %4363 = vmatprep.subr.mxu0 0.0
      %4364 = vmatpush1.msra.mxu0 0.0
      %4365 = vmatprep.subr.mxu0 0.0
      %4366 = vmatpush1.msra.mxu0 0.0
      %4367 = vmatprep.subr.mxu0 0.0
      %4368 = vmatpush1.msra.mxu0 0.0
      %4369 = vmatprep.subr.mxu0 0.0
      %4370 = vmatpush1.msra.mxu0 0.0
      %4371 = vmatprep.subr.mxu0 0.0
      %4372 = vmatpush1.msra.mxu0 0.0
      %4373 = vmatprep.subr.mxu0 0.0
      %4374 = vmatpush1.msra.mxu0 0.0
      %4375 = vmatprep.subr.mxu0 0.0
      %4376 = vmatpush1.msra.mxu0 0.0
      %4377 = vmatprep.subr.mxu0 0.0
      %4378 = vmatpush1.msra.mxu0 0.0
      %4379 = vmatprep.subr.mxu0 0.0
      %4380 = vmatpush1.msra.mxu0 0.0
      %4381 = vmatprep.subr.mxu0 0.0
      %4382 = vmatpush1.msra.mxu0 0.0
      %4383 = vmatprep.subr.mxu0 0.0
      %4384 = vmatpush1.msra.mxu0 0.0
      %4385 = vmatprep.subr.mxu0 0.0
      %4386 = vmatpush1.msra.mxu0 0.0
      %4387 = vmatprep.subr.mxu0 0.0
      %4388 = vmatpush1.msra.mxu0 0.0
      %4389 = vmatprep.subr.mxu0 0.0
      %4390 = vmatpush1.msra.mxu0 0.0
      %4391 = vmatprep.subr.mxu0 0.0
      %4392 = vmatpush1.msra.mxu0 0.0
      %4393 = vmatprep.subr.mxu0 0.0
      %4394 = vmatpush1.msra.mxu0 0.0
      %4395 = vmatprep.subr.mxu0 0.0
      %4396 = vmatpush1.msra.mxu0 0.0
      %4397 = vmatprep.subr.mxu0 0.0
      %4398 = vmatpush1.msra.mxu0 0.0
      %4399 = vmatprep.subr.mxu0 0.0
      %4400 = vmatpush1.msra.mxu0 0.0
      %4401 = vmatprep.subr.mxu0 0.0
      %4402 = vmatpush1.msra.mxu0 0.0
      %4403 = vmatprep.subr.mxu0 0.0
      %4404 = vmatpush1.msra.mxu0 0.0
      %4405 = vmatprep.subr.mxu0 0.0
      %4406 = vmatpush1.msra.mxu0 0.0
      %4407 = vmatprep.subr.mxu0 0.0
      %4408 = vmatpush1.msra.mxu0 0.0
      %4409 = vmatprep.mubr.f32.mxu0 0.0
      %4410 = vmatmul.mubr.f32.gmra.mrb[0].mxu0 %v4250
      %v4411 = vpop.f32.mrb[0].mxu0
      %v4412 = vadd.f32 %v1095, %v4411
      %v4413 = vpop.f32.mrb[0].mxu0
      %4414 = vmatprep.mubr.f32.mxu0 0.0
      %4415 = vmatmul.mubr.f32.gmra.mrb[0].mxu0 %v4253
      %v4416 = vpop.f32.mrb[0].mxu0
      %v4417 = vadd.f32 %v1095, %v4416
      %v4418 = vpop.f32.mrb[0].mxu0
      %4419 = vmatprep.mubr.f32.mxu0 0.0
      %4420 = vmatmul.mubr.f32.gmra.mrb[0].mxu0 %v4256
      %v4421 = vpop.f32.mrb[0].mxu0
      %v4422 = vadd.f32 %v1095, %v4421
      %v4423 = vpop.f32.mrb[0].mxu0
      %4424 = vmatprep.mubr.f32.mxu0 0.0
      %4425 = vmatmul.mubr.f32.gmra.mrb[0].mxu0 %v4259
      %v4426 = vpop.f32.mrb[0].mxu0
      %v4427 = vadd.f32 %v1095, %v4426
      %v4428 = vpop.f32.mrb[0].mxu0
      %4429 = vmatprep.mubr.f32.mxu0 0.0
      %4430 = vmatmul.mubr.f32.gmra.mrb[0].mxu0 %v4262
      %v4431 = vpop.f32.mrb[0].mxu0
      %v4432 = vadd.f32 %v1095, %v4431
      %v4433 = vpop.f32.mrb[0].mxu0
      %4434 = vmatprep.mubr.f32.mxu0 0.0
      %4435 = vmatmul.mubr.f32.gmra.mrb[0].mxu0 %v4265
      %v4436 = vpop.f32.mrb[0].mxu0
      %v4437 = vadd.f32 %v1095, %v4436
      %v4438 = vpop.f32.mrb[0].mxu0
      %4439 = vmatprep.mubr.f32.mxu0 0.0
      %4440 = vmatmul.mubr.f32.gmra.mrb[0].mxu0 %v4268
      %v4441 = vpop.f32.mrb[0].mxu0
      %v4442 = vadd.f32 %v1095, %v4441
      %v4443 = vpop.f32.mrb[0].mxu0
      %4444 = vmatprep.mubr.f32.mxu0 0.0
      %4445 = vmatmul.mubr.f32.gmra.mrb[0].mxu0 %v4271
      %v4446 = vpop.f32.mrb[0].mxu0
      %v4447 = vadd.f32 %v1095, %v4446
      %v4448 = vpop.f32.mrb[0].mxu0
      %4449 = vmatprep.mubr.f32.mxu0 0.0
      %4450 = vmatmul.mubr.f32.gmra.mrb[0].mxu0 %v4274
      %v4451 = vpop.f32.mrb[0].mxu0
      %v4452 = vadd.f32 %v1095, %v4451
      %v4453 = vpop.f32.mrb[0].mxu0
      %4454 = vmatprep.mubr.f32.mxu0 0.0
      %4455 = vmatmul.mubr.f32.gmra.mrb[0].mxu0 %v4277
      %v4456 = vpop.f32.mrb[0].mxu0
      %v4457 = vadd.f32 %v1095, %v4456
      %v4458 = vpop.f32.mrb[0].mxu0
      %4459 = vmatprep.mubr.f32.mxu0 0.0
      %4460 = vmatmul.mubr.f32.gmra.mrb[0].mxu0 %v4280
      %v4461 = vpop.f32.mrb[0].mxu0
      %v4462 = vadd.f32 %v1095, %v4461
      %v4463 = vpop.f32.mrb[0].mxu0
      %4464 = vmatprep.mubr.f32.mxu0 0.0
      %4465 = vmatmul.mubr.f32.gmra.mrb[0].mxu0 %v4283
      %v4466 = vpop.f32.mrb[0].mxu0
      %v4467 = vadd.f32 %v1095, %v4466
      %v4468 = vpop.f32.mrb[0].mxu0
      %4469 = vmatprep.mubr.f32.mxu0 0.0
      %4470 = vmatmul.mubr.f32.gmra.mrb[0].mxu0 %v4286
      %v4471 = vpop.f32.mrb[0].mxu0
      %v4472 = vadd.f32 %v1095, %v4471
      %v4473 = vpop.f32.mrb[0].mxu0
      %4474 = vmatprep.mubr.f32.mxu0 0.0
      %4475 = vmatmul.mubr.f32.gmra.mrb[0].mxu0 %v4289
      %v4476 = vpop.f32.mrb[0].mxu0
      %v4477 = vadd.f32 %v1095, %v4476
      %v4478 = vpop.f32.mrb[0].mxu0
      %4479 = vmatprep.mubr.f32.mxu0 0.0
      %4480 = vmatmul.mubr.f32.gmra.mrb[0].mxu0 %v4292
      %v4481 = vpop.f32.mrb[0].mxu0
      %v4482 = vadd.f32 %v1095, %v4481
      %v4483 = vpop.f32.mrb[0].mxu0
      %4484 = vmatprep.mubr.f32.mxu0 0.0
      %4485 = vmatmul.mubr.f32.gmra.mrb[0].mxu0 %v4295
      %v4486 = vpop.f32.mrb[0].mxu0
      %v4487 = vadd.f32 %v1095, %v4486
      %v4488 = vpop.f32.mrb[0].mxu0
      %4489 = vmatprep.mubr.f32.mxu0 0.0
      %4490 = vmatmul.mubr.f32.gmra.mrb[0].mxu0 %v4298
      %v4491 = vpop.f32.mrb[0].mxu0
      %v4492 = vadd.f32 %v1095, %v4491
      %v4493 = vpop.f32.mrb[0].mxu0
      %4494 = vmatprep.mubr.f32.mxu0 0.0
      %4495 = vmatmul.mubr.f32.gmra.mrb[0].mxu0 %v4301
      %v4496 = vpop.f32.mrb[0].mxu0
      %v4497 = vadd.f32 %v1095, %v4496
      %v4498 = vpop.f32.mrb[0].mxu0
      %4499 = vmatprep.mubr.f32.mxu0 0.0
      %4500 = vmatmul.mubr.f32.gmra.mrb[0].mxu0 %v4304
      %v4501 = vpop.f32.mrb[0].mxu0
      %v4502 = vadd.f32 %v1095, %v4501
      %v4503 = vpop.f32.mrb[0].mxu0
      %4504 = vmatprep.mubr.f32.mxu0 0.0
      %4505 = vmatmul.mubr.f32.gmra.mrb[0].mxu0 %v4307
      %v4506 = vpop.f32.mrb[0].mxu0
      %v4507 = vadd.f32 %v1095, %v4506
      %v4508 = vpop.f32.mrb[0].mxu0
      %4509 = vmatprep.mubr.f32.mxu0 0.0
      %4510 = vmatmul.mubr.f32.gmra.mrb[0].mxu0 %v4310
      %v4511 = vpop.f32.mrb[0].mxu0
      %v4512 = vadd.f32 %v1095, %v4511
      %v4513 = vpop.f32.mrb[0].mxu0
      %4514 = vmatprep.mubr.f32.mxu0 0.0
      %4515 = vmatmul.mubr.f32.gmra.mrb[0].mxu0 %v4313
      %v4516 = vpop.f32.mrb[0].mxu0
      %v4517 = vadd.f32 %v1095, %v4516
      %v4518 = vpop.f32.mrb[0].mxu0
      %4519 = vmatprep.mubr.f32.mxu0 0.0
      %4520 = vmatmul.mubr.f32.gmra.mrb[0].mxu0 %v4316
      %v4521 = vpop.f32.mrb[0].mxu0
      %v4522 = vadd.f32 %v1095, %v4521
      %v4523 = vpop.f32.mrb[0].mxu0
      %4524 = vmatprep.mubr.f32.mxu0 0.0
      %4525 = vmatmul.mubr.f32.gmra.mrb[0].mxu0 %v4319
      %v4526 = vpop.f32.mrb[0].mxu0
      %v4527 = vadd.f32 %v1095, %v4526
      %v4528 = vpop.f32.mrb[0].mxu0
      %4529 = vmatprep.mubr.f32.mxu0 0.0
      %4530 = vmatmul.mubr.f32.gmra.mrb[0].mxu0 %v4322
      %v4531 = vpop.f32.mrb[0].mxu0
      %v4532 = vadd.f32 %v1095, %v4531
      %v4533 = vpop.f32.mrb[0].mxu0
      %4534 = vmatprep.mubr.f32.mxu0 0.0
      %4535 = vmatmul.mubr.f32.gmra.mrb[0].mxu0 %v4325
      %v4536 = vpop.f32.mrb[0].mxu0
      %v4537 = vadd.f32 %v1095, %v4536
      %v4538 = vpop.f32.mrb[0].mxu0
      %4539 = vmatprep.mubr.f32.mxu0 0.0
      %4540 = vmatmul.mubr.f32.gmra.mrb[0].mxu0 %v4328
      %v4541 = vpop.f32.mrb[0].mxu0
      %v4542 = vadd.f32 %v1095, %v4541
      %v4543 = vpop.f32.mrb[0].mxu0
      %4544 = vmatprep.mubr.f32.mxu0 0.0
      %4545 = vmatmul.mubr.f32.gmra.mrb[0].mxu0 %v4331
      %v4546 = vpop.f32.mrb[0].mxu0
      %v4547 = vadd.f32 %v1095, %v4546
      %v4548 = vpop.f32.mrb[0].mxu0
      %4549 = vmatprep.mubr.f32.mxu0 0.0
      %4550 = vmatmul.mubr.f32.gmra.mrb[0].mxu0 %v4334
      %v4551 = vpop.f32.mrb[0].mxu0
      %v4552 = vadd.f32 %v1095, %v4551
      %v4553 = vpop.f32.mrb[0].mxu0
      %4554 = vmatprep.mubr.f32.mxu0 0.0
      %4555 = vmatmul.mubr.f32.gmra.mrb[0].mxu0 %v4337
      %v4556 = vpop.f32.mrb[0].mxu0
      %v4557 = vadd.f32 %v1095, %v4556
      %v4558 = vpop.f32.mrb[0].mxu0
      %4559 = vmatprep.mubr.f32.mxu0 0.0
      %4560 = vmatmul.mubr.f32.gmra.mrb[0].mxu0 %v4340
      %v4561 = vpop.f32.mrb[0].mxu0
      %v4562 = vadd.f32 %v1095, %v4561
      %v4563 = vpop.f32.mrb[0].mxu0
      %4564 = vmatprep.mubr.f32.mxu0 0.0
      %4565 = vmatmul.mubr.f32.gmra.mrb[0].mxu0 %v4343
      %v4566 = vpop.f32.mrb[0].mxu0
      %v4567 = vadd.f32 %v1095, %v4566
      %v4568 = vpop.f32.mrb[0].mxu0
      %4569 = vdwg.mxu0
      %4602 = vrot.lane.b32.xlu0 %v4412, 12
      %v4603 = vpop.permute.xlu0 %4602
      %4604 = vrot.lane.b32.xlu0 %v4417, 12
      %v4605 = vpop.permute.xlu0 %4604
      %4606 = vrot.lane.b32.xlu0 %v4422, 12
      %v4607 = vpop.permute.xlu0 %4606
      %4608 = vrot.lane.b32.xlu0 %v4427, 12
      %v4609 = vpop.permute.xlu0 %4608
      %4610 = vrot.lane.b32.xlu0 %v4432, 12
      %v4611 = vpop.permute.xlu0 %4610
      %4612 = vrot.lane.b32.xlu0 %v4437, 12
      %v4613 = vpop.permute.xlu0 %4612
      %4614 = vrot.lane.b32.xlu0 %v4442, 12
      %v4615 = vpop.permute.xlu0 %4614
      %4616 = vrot.lane.b32.xlu0 %v4447, 12
      %v4617 = vpop.permute.xlu0 %4616
      %4618 = vrot.lane.b32.xlu0 %v4452, 12
      %v4619 = vpop.permute.xlu0 %4618
      %4620 = vrot.lane.b32.xlu0 %v4457, 12
      %v4621 = vpop.permute.xlu0 %4620
      %4622 = vrot.lane.b32.xlu0 %v4462, 12
      %v4623 = vpop.permute.xlu0 %4622
      %4624 = vrot.lane.b32.xlu0 %v4467, 12
      %v4625 = vpop.permute.xlu0 %4624
      %4626 = vrot.lane.b32.xlu0 %v4472, 12
      %v4627 = vpop.permute.xlu0 %4626
      %4628 = vrot.lane.b32.xlu0 %v4477, 12
      %v4629 = vpop.permute.xlu0 %4628
      %4630 = vrot.lane.b32.xlu0 %v4482, 12
      %v4631 = vpop.permute.xlu0 %4630
      %4632 = vrot.lane.b32.xlu0 %v4487, 12
      %v4633 = vpop.permute.xlu0 %4632
      %4634 = vrot.lane.b32.xlu0 %v4492, 12
      %v4635 = vpop.permute.xlu0 %4634
      %4636 = vrot.lane.b32.xlu0 %v4497, 12
      %v4637 = vpop.permute.xlu0 %4636
      %4638 = vrot.lane.b32.xlu0 %v4502, 12
      %v4639 = vpop.permute.xlu0 %4638
      %4640 = vrot.lane.b32.xlu0 %v4507, 12
      %v4641 = vpop.permute.xlu0 %4640
      %4642 = vrot.lane.b32.xlu0 %v4512, 12
      %v4643 = vpop.permute.xlu0 %4642
      %4644 = vrot.lane.b32.xlu0 %v4517, 12
      %v4645 = vpop.permute.xlu0 %4644
      %4646 = vrot.lane.b32.xlu0 %v4522, 12
      %v4647 = vpop.permute.xlu0 %4646
      %4648 = vrot.lane.b32.xlu0 %v4527, 12
      %v4649 = vpop.permute.xlu0 %4648
      %4650 = vrot.lane.b32.xlu0 %v4532, 12
      %v4651 = vpop.permute.xlu0 %4650
      %4652 = vrot.lane.b32.xlu0 %v4537, 12
      %v4653 = vpop.permute.xlu0 %4652
      %4654 = vrot.lane.b32.xlu0 %v4542, 12
      %v4655 = vpop.permute.xlu0 %4654
      %4656 = vrot.lane.b32.xlu0 %v4547, 12
      %v4657 = vpop.permute.xlu0 %4656
      %4658 = vrot.lane.b32.xlu0 %v4552, 12
      %v4659 = vpop.permute.xlu0 %4658
      %4660 = vrot.lane.b32.xlu0 %v4557, 12
      %v4661 = vpop.permute.xlu0 %4660
      %4662 = vrot.lane.b32.xlu0 %v4562, 12
      %v4663 = vpop.permute.xlu0 %4662
      %4664 = vrot.lane.b32.xlu0 %v4567, 12
      %v4665 = vpop.permute.xlu0 %4664
      %vm4698 = vcmask 130144
      %4699 = vst.msk [vmem:[%s364] sm:$0xff] %vm4698, %v4603
      %4700 = vst.msk [vmem:[%s364 + $0x8] sm:$0xff] %vm4698, %v4605
      %4701 = vst.msk [vmem:[%s364 + $0x10] sm:$0xff] %vm4698, %v4607
      %4702 = vst.msk [vmem:[%s364 + $0x18] sm:$0xff] %vm4698, %v4609
      %4703 = vst.msk [vmem:[%s364 + $0x20] sm:$0xff] %vm4698, %v4611
      %4704 = vst.msk [vmem:[%s364 + $0x28] sm:$0xff] %vm4698, %v4613
      %4705 = vst.msk [vmem:[%s364 + $0x30] sm:$0xff] %vm4698, %v4615
      %4706 = vst.msk [vmem:[%s364 + $0x38] sm:$0xff] %vm4698, %v4617
      %4707 = vst.msk [vmem:[%s364 + $0x40] sm:$0xff] %vm4698, %v4619
      %4708 = vst.msk [vmem:[%s364 + $0x48] sm:$0xff] %vm4698, %v4621
      %4709 = vst.msk [vmem:[%s364 + $0x50] sm:$0xff] %vm4698, %v4623
      %4710 = vst.msk [vmem:[%s364 + $0x58] sm:$0xff] %vm4698, %v4625
      %4711 = vst.msk [vmem:[%s364 + $0x60] sm:$0xff] %vm4698, %v4627
      %4712 = vst.msk [vmem:[%s364 + $0x68] sm:$0xff] %vm4698, %v4629
      %4713 = vst.msk [vmem:[%s364 + $0x70] sm:$0xff] %vm4698, %v4631
      %4714 = vst.msk [vmem:[%s364 + $0x78] sm:$0xff] %vm4698, %v4633
      %4715 = vst.msk [vmem:[%s364 + $0x80] sm:$0xff] %vm4698, %v4635
      %4716 = vst.msk [vmem:[%s364 + $0x88] sm:$0xff] %vm4698, %v4637
      %4717 = vst.msk [vmem:[%s364 + $0x90] sm:$0xff] %vm4698, %v4639
      %4718 = vst.msk [vmem:[%s364 + $0x98] sm:$0xff] %vm4698, %v4641
      %4719 = vst.msk [vmem:[%s364 + $0xa0] sm:$0xff] %vm4698, %v4643
      %4720 = vst.msk [vmem:[%s364 + $0xa8] sm:$0xff] %vm4698, %v4645
      %4721 = vst.msk [vmem:[%s364 + $0xb0] sm:$0xff] %vm4698, %v4647
      %4722 = vst.msk [vmem:[%s364 + $0xb8] sm:$0xff] %vm4698, %v4649
      %4723 = vst.msk [vmem:[%s364 + $0xc0] sm:$0xff] %vm4698, %v4651
      %4724 = vst.msk [vmem:[%s364 + $0xc8] sm:$0xff] %vm4698, %v4653
      %4725 = vst.msk [vmem:[%s364 + $0xd0] sm:$0xff] %vm4698, %v4655
      %4726 = vst.msk [vmem:[%s364 + $0xd8] sm:$0xff] %vm4698, %v4657
      %4727 = vst.msk [vmem:[%s364 + $0xe0] sm:$0xff] %vm4698, %v4659
      %4728 = vst.msk [vmem:[%s364 + $0xe8] sm:$0xff] %vm4698, %v4661
      %4729 = vst.msk [vmem:[%s364 + $0xf0] sm:$0xff] %vm4698, %v4663
      %4730 = vst.msk [vmem:[%s364 + $0xf8] sm:$0xff] %vm4698, %v4665
      %s4731 = smul.u32 32, %s21
      %p4732 = scmp.lt.s32.totalorder %s20, 1
      %s4733 = scalar_select %p4732, %s20, 1
      %p4734 = scmp.lt.s32.totalorder %s22, 0
      %s4735 = scalar_select %p4734, %s22, 0
      %p4736 = scmp.lt.s32.totalorder %s4731, 31
      %s4737 = scalar_select %p4736, %s4731, 31
      %s4738 = smul.addr %s4735, 32
      %s4739 = sadd.s32 %s4737, %s4738
      %s4740 = smul.addr %s4733, 32
      %s4741 = sadd.s32 %s4739, %s4740
      %s4742 = smul.addr %s4741, 8
      %s4743 = scalar_lea.vmem %s4, %s4742
      // Predicated region
      $region37: #{tpu_custom_call.1} parent=35 // pred_check
        %p4744 = pneg %p168
      $region38: #{tpu_custom_call.1} parent=35 // pred_check_branch
        %4746 = sbr.rel (%p4744) target = $region40
      $region39: #{tpu_custom_call.1} parent=35 // pred_region
        %s4747 = smul.u32 32, %s21
      $region40: #{tpu_custom_call.1} parent=35 // pred_fallthru
        _
    $region36: #{tpu_custom_call.1} parent=5 // pred_fallthru
      _
    %p4748 = scmp.le.s32.totalorder 2, %s10
    // Predicated region
    $region41: #{tpu_custom_call.1} parent=5 // pred_check
      %p4749 = pneg %p4748
    $region42: #{tpu_custom_call.1} parent=5 // pred_check_branch
      %4751 = sbr.rel (%p4749) target = $region44
    $region43: #{tpu_custom_call.1} parent=5 // pred_region
      %s4752 = ssub.s32 %s10, 2
      // Predicated region
      $region45: #{tpu_custom_call.1} parent=43 // pred_check
        %p4753 = pneg %p174
      $region46: #{tpu_custom_call.1} parent=43 // pred_check_branch
        %4755 = sbr.rel (%p4753) target = $region48
      $region47: #{tpu_custom_call.1} parent=43 // pred_region
        %s4756 = smul.u32 32, %s24
        %p4757 = scmp.lt.s32.totalorder %s23, 1
        %s4758 = scalar_select %p4757, %s23, 1
        %p4759 = scmp.lt.s32.totalorder %s25, 0
        %s4760 = scalar_select %p4759, %s25, 0
        %p4761 = scmp.lt.s32.totalorder %s4756, 31
        %s4762 = scalar_select %p4761, %s4756, 31
        %s4763 = smul.addr %s4760, 32
        %s4764 = sadd.s32 %s4762, %s4763
        %s4765 = smul.addr %s4758, 32
        %s4766 = sadd.s32 %s4764, %s4765
        %s4767 = smul.addr %s4766, 8
        %s4768 = scalar_lea.vmem %s4, %s4767
      $region48: #{tpu_custom_call.1} parent=43 // pred_fallthru
        _
    $region44: #{tpu_custom_call.1} parent=5 // pred_fallthru
      _
  $region6: #{tpu_custom_call.1} parent=0 // loop_footer
    %s14 = sadd.s32 1, %s10
  $region7: #{tpu_custom_call.1} parent=0 // loop_footer_branch
    %9 = sbr.rel target = $region3
  $region8: #{tpu_custom_call.1} parent=0 // loop_exit
    _

</llo_original>
